<compile_context>
chip_gen: v7x
topology: tpu7x:2x2x1
jax: 0.10.0
libtpu: 0.0.40
codegen_flags: <defaults>
</compile_context>

<pallas_src>
from functools import partial

import jax
import jax.numpy as jnp
from jax.experimental import pallas as pl
from jax.experimental.pallas import tpu as pltpu

EPS = 1e-5

# Tap visit order: centre tap (t=4) first so it initializes the accumulator.
_TAPS = (4, 0, 1, 2, 3, 5, 6, 7, 8)


def conv_block_kernel(H, W, x_ref, w1_ref, w2_ref, g1_ref, b1_ref, g2_ref, b2_ref,
                      masks_ref, o_ref):
    nhw = x_ref.shape[1]

    def conv3x3(inp, w_ref):
        # inp: (cin, nhw); w_ref: (9, cout, cin); returns (cout, nhw) f32.
        acc = None
        for t in _TAPS:
            ky, kx = divmod(t, 3)
            dy, dx = ky - 1, kx - 1
            if dy == 0 and dx == 0:
                xs = inp                                     # centre tap: no roll, no mask
            else:
                shift = dy * W + dx                          # flat-index offset of this tap
                # lane roll (XLU) + per-tap validity mask (replaces the physical zero halo)
                xs = pltpu.roll(inp, (-shift) % nhw, axis=1) * masks_ref[t]
            # tiny (Cout, Cin) x (Cin, NHW) matmul -> MXU, f32 accumulate
            p = jnp.dot(w_ref[t], xs, preferred_element_type=jnp.float32)
            acc = p if acc is None else acc + p
        return acc

    def bn_relu(y, g_ref, b_ref):
        # Training-mode BatchNorm2d: per-channel batch mean / biased variance over N*H*W.
        # Single-pass statistics (sum & sum of squares), fused affine + ReLU.
        inv_n = 1.0 / nhw
        mean = jnp.sum(y, axis=1, keepdims=True) * inv_n
        ex2 = jnp.sum(y * y, axis=1, keepdims=True) * inv_n
        var = ex2 - mean * mean
        scale = jax.lax.rsqrt(var + EPS) * g_ref[...]        # (cout, 1)
        offs = b_ref[...] - mean * scale                     # (cout, 1)
        return jnp.maximum(y * scale + offs, 0.0)

    x = x_ref[...]
    h1 = bn_relu(conv3x3(x, w1_ref), g1_ref, b1_ref)
    o_ref[...] = bn_relu(conv3x3(h1, w2_ref), g2_ref, b2_ref)


@jax.jit
def conv_block(x_nchw, w1, g1, b1, w2, g2, b2):
    """NCHW in / NCHW out, matching nn.Conv2d / nn.BatchNorm2d conventions."""
    N, Cin, H, W = x_nchw.shape
    Cout = w1.shape[0]
    NHW = N * H * W

    # Lane-dense activation layout: (C, N*H*W), flat index f = n*H*W + y*W + x.
    x_flat = jnp.transpose(x_nchw, (1, 0, 2, 3)).reshape(Cin, NHW).astype(jnp.float32)

    # PyTorch conv weight (Cout, Cin, kH, kW) -> per-tap matrices (9, Cout, Cin).
    w1_t = jnp.transpose(w1, (2, 3, 0, 1)).reshape(9, Cout, Cin).astype(jnp.float32)
    w2_t = jnp.transpose(w2, (2, 3, 0, 1)).reshape(9, Cout, Cout).astype(jnp.float32)

    # Per-tap validity masks (replace the physical zero halo). Static-shape only;
    # constant-folded by XLA outside the kernel.
    f = jnp.arange(NHW)
    yy = (f // W) % H
    xx = f % W
    masks = []
    for t in range(9):
        ky, kx = divmod(t, 3)
        dy, dx = ky - 1, kx - 1
        valid = (yy + dy >= 0) & (yy + dy < H) & (xx + dx >= 0) & (xx + dx < W)
        masks.append(valid)
    masks = jnp.stack(masks).astype(jnp.float32).reshape(9, 1, NHW)

    out_flat = pl.pallas_call(
        partial(conv_block_kernel, H, W),
        out_shape=jax.ShapeDtypeStruct((Cout, NHW), jnp.float32),
        in_specs=[pl.BlockSpec(memory_space=pltpu.MemorySpace.VMEM)] * 8,
        out_specs=pl.BlockSpec(memory_space=pltpu.MemorySpace.VMEM),
    )(x_flat, w1_t, w2_t,
      g1.reshape(Cout, 1).astype(jnp.float32), b1.reshape(Cout, 1).astype(jnp.float32),
      g2.reshape(Cout, 1).astype(jnp.float32), b2.reshape(Cout, 1).astype(jnp.float32),
      masks)

    return jnp.transpose(out_flat.reshape(Cout, N, H, W), (1, 0, 2, 3))


def ref_conv_block(x, w1, g1, b1, w2, g2, b2):
    """Plain-JAX reference matching the PyTorch forward (training-mode BN)."""
    def conv(y, w):
        return jax.lax.conv_general_dilated(
            y, w, window_strides=(1, 1), padding=((1, 1), (1, 1)),
            dimension_numbers=("NCHW", "OIHW", "NCHW"),
            precision=jax.lax.Precision.HIGHEST)

    def bn_relu(y, g, b):
        mean = jnp.mean(y, axis=(0, 2, 3), keepdims=True)
        var = jnp.mean((y - mean) ** 2, axis=(0, 2, 3), keepdims=True)
        yn = (y - mean) * jax.lax.rsqrt(var + EPS)
        return jnp.maximum(yn * g.reshape(1, -1, 1, 1) + b.reshape(1, -1, 1, 1), 0.0)

    return bn_relu(conv(bn_relu(conv(x, w1), g1, b1), w2), g2, b2)


if __name__ == "__main__":
    key = jax.random.PRNGKey(0)
    k = jax.random.split(key, 7)
    N, Cin, Cout, H, W = 2, 4, 8, 16, 16   # N*H*W = 512 -> lane-dense (multiple of 128)

    x = jax.random.normal(k[0], (N, Cin, H, W), jnp.float32)
    w1 = jax.random.normal(k[1], (Cout, Cin, 3, 3), jnp.float32) * 0.3
    w2 = jax.random.normal(k[2], (Cout, Cout, 3, 3), jnp.float32) * 0.3
    g1 = 1.0 + 0.1 * jax.random.normal(k[3], (Cout,), jnp.float32)
    b1 = 0.1 * jax.random.normal(k[4], (Cout,), jnp.float32)
    g2 = 1.0 + 0.1 * jax.random.normal(k[5], (Cout,), jnp.float32)
    b2 = 0.1 * jax.random.normal(k[6], (Cout,), jnp.float32)

    out = jax.block_until_ready(conv_block(x, w1, g1, b1, w2, g2, b2))
    assert out.shape == (N, Cout, H, W)

    ref = ref_conv_block(x, w1, g1, b1, w2, g2, b2)
    max_err = float(jnp.max(jnp.abs(out - ref)))
    if max_err > 2e-3:
        raise AssertionError(f"kernel/reference mismatch: max abs err {max_err}")

    print("KERNEL_OK")
</pallas_src>

<mosaic_0001>
module attributes {stable_mosaic.version = 11 : i64} {
  func.func @conv_block_kernel(%arg0: memref<4x512xf32, #tpu.memory_space<vmem>>, %arg1: memref<9x8x4xf32, #tpu.memory_space<vmem>>, %arg2: memref<9x8x8xf32, #tpu.memory_space<vmem>>, %arg3: memref<8x1xf32, #tpu.memory_space<vmem>>, %arg4: memref<8x1xf32, #tpu.memory_space<vmem>>, %arg5: memref<8x1xf32, #tpu.memory_space<vmem>>, %arg6: memref<8x1xf32, #tpu.memory_space<vmem>>, %arg7: memref<9x1x512xf32, #tpu.memory_space<vmem>>, %arg8: memref<8x512xf32, #tpu.memory_space<vmem>>) attributes {dimension_semantics = [], scalar_prefetch = 0 : i64, scratch_operands = 0 : i64, tpu.core_type = #tpu.core_type<tc>} {
    %c0 = arith.constant 0 : index
    %c0_0 = arith.constant 0 : index
    %0 = vector.load %arg0[%c0, %c0_0] : memref<4x512xf32, #tpu.memory_space<vmem>>, vector<4x512xf32>
    %c4 = arith.constant 4 : index
    %c0_1 = arith.constant 0 : index
    %c0_2 = arith.constant 0 : index
    %1 = vector.load %arg1[%c4, %c0_1, %c0_2] : memref<9x8x4xf32, #tpu.memory_space<vmem>>, vector<1x8x4xf32>
    %2 = vector.shape_cast %1 : vector<1x8x4xf32> to vector<8x4xf32>
    %cst = arith.constant dense<0.000000e+00> : vector<8x512xf32>
    %3 = tpu.matmul %2, %0, %cst {dimension_numbers = #tpu.dot_dimension_numbers<[1], [0], [0], [1], [0, 0, 1, 1], [], []>} : vector<8x4xf32>, vector<4x512xf32>, vector<8x512xf32> -> vector<8x512xf32>
    %c17_i32 = arith.constant 17 : i32
    %4 = tpu.dynamic_rotate %0 by %c17_i32 dim 1 : vector<4x512xf32>, i32 -> vector<4x512xf32>
    %c0_3 = arith.constant 0 : index
    %c0_4 = arith.constant 0 : index
    %c0_5 = arith.constant 0 : index
    %5 = vector.load %arg7[%c0_3, %c0_4, %c0_5] : memref<9x1x512xf32, #tpu.memory_space<vmem>>, vector<1x1x512xf32>
    %6 = vector.shape_cast %5 : vector<1x1x512xf32> to vector<1x512xf32>
    %7 = vector.broadcast %6 : vector<1x512xf32> to vector<4x512xf32>
    %8 = arith.mulf %4, %7 : vector<4x512xf32>
    %c0_6 = arith.constant 0 : index
    %c0_7 = arith.constant 0 : index
    %c0_8 = arith.constant 0 : index
    %9 = vector.load %arg1[%c0_6, %c0_7, %c0_8] : memref<9x8x4xf32, #tpu.memory_space<vmem>>, vector<1x8x4xf32>
    %10 = vector.shape_cast %9 : vector<1x8x4xf32> to vector<8x4xf32>
    %cst_9 = arith.constant dense<0.000000e+00> : vector<8x512xf32>
    %11 = tpu.matmul %10, %8, %cst_9 {dimension_numbers = #tpu.dot_dimension_numbers<[1], [0], [0], [1], [0, 0, 1, 1], [], []>} : vector<8x4xf32>, vector<4x512xf32>, vector<8x512xf32> -> vector<8x512xf32>
    %12 = arith.addf %3, %11 : vector<8x512xf32>
    %c16_i32 = arith.constant 16 : i32
    %13 = tpu.dynamic_rotate %0 by %c16_i32 dim 1 : vector<4x512xf32>, i32 -> vector<4x512xf32>
    %c1 = arith.constant 1 : index
    %c0_10 = arith.constant 0 : index
    %c0_11 = arith.constant 0 : index
    %14 = vector.load %arg7[%c1, %c0_10, %c0_11] : memref<9x1x512xf32, #tpu.memory_space<vmem>>, vector<1x1x512xf32>
    %15 = vector.shape_cast %14 : vector<1x1x512xf32> to vector<1x512xf32>
    %16 = vector.broadcast %15 : vector<1x512xf32> to vector<4x512xf32>
    %17 = arith.mulf %13, %16 : vector<4x512xf32>
    %c1_12 = arith.constant 1 : index
    %c0_13 = arith.constant 0 : index
    %c0_14 = arith.constant 0 : index
    %18 = vector.load %arg1[%c1_12, %c0_13, %c0_14] : memref<9x8x4xf32, #tpu.memory_space<vmem>>, vector<1x8x4xf32>
    %19 = vector.shape_cast %18 : vector<1x8x4xf32> to vector<8x4xf32>
    %cst_15 = arith.constant dense<0.000000e+00> : vector<8x512xf32>
    %20 = tpu.matmul %19, %17, %cst_15 {dimension_numbers = #tpu.dot_dimension_numbers<[1], [0], [0], [1], [0, 0, 1, 1], [], []>} : vector<8x4xf32>, vector<4x512xf32>, vector<8x512xf32> -> vector<8x512xf32>
    %21 = arith.addf %12, %20 : vector<8x512xf32>
    %c15_i32 = arith.constant 15 : i32
    %22 = tpu.dynamic_rotate %0 by %c15_i32 dim 1 : vector<4x512xf32>, i32 -> vector<4x512xf32>
    %c2 = arith.constant 2 : index
    %c0_16 = arith.constant 0 : index
    %c0_17 = arith.constant 0 : index
    %23 = vector.load %arg7[%c2, %c0_16, %c0_17] : memref<9x1x512xf32, #tpu.memory_space<vmem>>, vector<1x1x512xf32>
    %24 = vector.shape_cast %23 : vector<1x1x512xf32> to vector<1x512xf32>
    %25 = vector.broadcast %24 : vector<1x512xf32> to vector<4x512xf32>
    %26 = arith.mulf %22, %25 : vector<4x512xf32>
    %c2_18 = arith.constant 2 : index
    %c0_19 = arith.constant 0 : index
    %c0_20 = arith.constant 0 : index
    %27 = vector.load %arg1[%c2_18, %c0_19, %c0_20] : memref<9x8x4xf32, #tpu.memory_space<vmem>>, vector<1x8x4xf32>
    %28 = vector.shape_cast %27 : vector<1x8x4xf32> to vector<8x4xf32>
    %cst_21 = arith.constant dense<0.000000e+00> : vector<8x512xf32>
    %29 = tpu.matmul %28, %26, %cst_21 {dimension_numbers = #tpu.dot_dimension_numbers<[1], [0], [0], [1], [0, 0, 1, 1], [], []>} : vector<8x4xf32>, vector<4x512xf32>, vector<8x512xf32> -> vector<8x512xf32>
    %30 = arith.addf %21, %29 : vector<8x512xf32>
    %c1_i32 = arith.constant 1 : i32
    %31 = tpu.dynamic_rotate %0 by %c1_i32 dim 1 : vector<4x512xf32>, i32 -> vector<4x512xf32>
    %c3 = arith.constant 3 : index
    %c0_22 = arith.constant 0 : index
    %c0_23 = arith.constant 0 : index
    %32 = vector.load %arg7[%c3, %c0_22, %c0_23] : memref<9x1x512xf32, #tpu.memory_space<vmem>>, vector<1x1x512xf32>
    %33 = vector.shape_cast %32 : vector<1x1x512xf32> to vector<1x512xf32>
    %34 = vector.broadcast %33 : vector<1x512xf32> to vector<4x512xf32>
    %35 = arith.mulf %31, %34 : vector<4x512xf32>
    %c3_24 = arith.constant 3 : index
    %c0_25 = arith.constant 0 : index
    %c0_26 = arith.constant 0 : index
    %36 = vector.load %arg1[%c3_24, %c0_25, %c0_26] : memref<9x8x4xf32, #tpu.memory_space<vmem>>, vector<1x8x4xf32>
    %37 = vector.shape_cast %36 : vector<1x8x4xf32> to vector<8x4xf32>
    %cst_27 = arith.constant dense<0.000000e+00> : vector<8x512xf32>
    %38 = tpu.matmul %37, %35, %cst_27 {dimension_numbers = #tpu.dot_dimension_numbers<[1], [0], [0], [1], [0, 0, 1, 1], [], []>} : vector<8x4xf32>, vector<4x512xf32>, vector<8x512xf32> -> vector<8x512xf32>
    %39 = arith.addf %30, %38 : vector<8x512xf32>
    %c511_i32 = arith.constant 511 : i32
    %40 = tpu.dynamic_rotate %0 by %c511_i32 dim 1 : vector<4x512xf32>, i32 -> vector<4x512xf32>
    %c5 = arith.constant 5 : index
    %c0_28 = arith.constant 0 : index
    %c0_29 = arith.constant 0 : index
    %41 = vector.load %arg7[%c5, %c0_28, %c0_29] : memref<9x1x512xf32, #tpu.memory_space<vmem>>, vector<1x1x512xf32>
    %42 = vector.shape_cast %41 : vector<1x1x512xf32> to vector<1x512xf32>
    %43 = vector.broadcast %42 : vector<1x512xf32> to vector<4x512xf32>
    %44 = arith.mulf %40, %43 : vector<4x512xf32>
    %c5_30 = arith.constant 5 : index
    %c0_31 = arith.constant 0 : index
    %c0_32 = arith.constant 0 : index
    %45 = vector.load %arg1[%c5_30, %c0_31, %c0_32] : memref<9x8x4xf32, #tpu.memory_space<vmem>>, vector<1x8x4xf32>
    %46 = vector.shape_cast %45 : vector<1x8x4xf32> to vector<8x4xf32>
    %cst_33 = arith.constant dense<0.000000e+00> : vector<8x512xf32>
    %47 = tpu.matmul %46, %44, %cst_33 {dimension_numbers = #tpu.dot_dimension_numbers<[1], [0], [0], [1], [0, 0, 1, 1], [], []>} : vector<8x4xf32>, vector<4x512xf32>, vector<8x512xf32> -> vector<8x512xf32>
    %48 = arith.addf %39, %47 : vector<8x512xf32>
    %c497_i32 = arith.constant 497 : i32
    %49 = tpu.dynamic_rotate %0 by %c497_i32 dim 1 : vector<4x512xf32>, i32 -> vector<4x512xf32>
    %c6 = arith.constant 6 : index
    %c0_34 = arith.constant 0 : index
    %c0_35 = arith.constant 0 : index
    %50 = vector.load %arg7[%c6, %c0_34, %c0_35] : memref<9x1x512xf32, #tpu.memory_space<vmem>>, vector<1x1x512xf32>
    %51 = vector.shape_cast %50 : vector<1x1x512xf32> to vector<1x512xf32>
    %52 = vector.broadcast %51 : vector<1x512xf32> to vector<4x512xf32>
    %53 = arith.mulf %49, %52 : vector<4x512xf32>
    %c6_36 = arith.constant 6 : index
    %c0_37 = arith.constant 0 : index
    %c0_38 = arith.constant 0 : index
    %54 = vector.load %arg1[%c6_36, %c0_37, %c0_38] : memref<9x8x4xf32, #tpu.memory_space<vmem>>, vector<1x8x4xf32>
    %55 = vector.shape_cast %54 : vector<1x8x4xf32> to vector<8x4xf32>
    %cst_39 = arith.constant dense<0.000000e+00> : vector<8x512xf32>
    %56 = tpu.matmul %55, %53, %cst_39 {dimension_numbers = #tpu.dot_dimension_numbers<[1], [0], [0], [1], [0, 0, 1, 1], [], []>} : vector<8x4xf32>, vector<4x512xf32>, vector<8x512xf32> -> vector<8x512xf32>
    %57 = arith.addf %48, %56 : vector<8x512xf32>
    %c496_i32 = arith.constant 496 : i32
    %58 = tpu.dynamic_rotate %0 by %c496_i32 dim 1 : vector<4x512xf32>, i32 -> vector<4x512xf32>
    %c7 = arith.constant 7 : index
    %c0_40 = arith.constant 0 : index
    %c0_41 = arith.constant 0 : index
    %59 = vector.load %arg7[%c7, %c0_40, %c0_41] : memref<9x1x512xf32, #tpu.memory_space<vmem>>, vector<1x1x512xf32>
    %60 = vector.shape_cast %59 : vector<1x1x512xf32> to vector<1x512xf32>
    %61 = vector.broadcast %60 : vector<1x512xf32> to vector<4x512xf32>
    %62 = arith.mulf %58, %61 : vector<4x512xf32>
    %c7_42 = arith.constant 7 : index
    %c0_43 = arith.constant 0 : index
    %c0_44 = arith.constant 0 : index
    %63 = vector.load %arg1[%c7_42, %c0_43, %c0_44] : memref<9x8x4xf32, #tpu.memory_space<vmem>>, vector<1x8x4xf32>
    %64 = vector.shape_cast %63 : vector<1x8x4xf32> to vector<8x4xf32>
    %cst_45 = arith.constant dense<0.000000e+00> : vector<8x512xf32>
    %65 = tpu.matmul %64, %62, %cst_45 {dimension_numbers = #tpu.dot_dimension_numbers<[1], [0], [0], [1], [0, 0, 1, 1], [], []>} : vector<8x4xf32>, vector<4x512xf32>, vector<8x512xf32> -> vector<8x512xf32>
    %66 = arith.addf %57, %65 : vector<8x512xf32>
    %c495_i32 = arith.constant 495 : i32
    %67 = tpu.dynamic_rotate %0 by %c495_i32 dim 1 : vector<4x512xf32>, i32 -> vector<4x512xf32>
    %c8 = arith.constant 8 : index
    %c0_46 = arith.constant 0 : index
    %c0_47 = arith.constant 0 : index
    %68 = vector.load %arg7[%c8, %c0_46, %c0_47] : memref<9x1x512xf32, #tpu.memory_space<vmem>>, vector<1x1x512xf32>
    %69 = vector.shape_cast %68 : vector<1x1x512xf32> to vector<1x512xf32>
    %70 = vector.broadcast %69 : vector<1x512xf32> to vector<4x512xf32>
    %71 = arith.mulf %67, %70 : vector<4x512xf32>
    %c8_48 = arith.constant 8 : index
    %c0_49 = arith.constant 0 : index
    %c0_50 = arith.constant 0 : index
    %72 = vector.load %arg1[%c8_48, %c0_49, %c0_50] : memref<9x8x4xf32, #tpu.memory_space<vmem>>, vector<1x8x4xf32>
    %73 = vector.shape_cast %72 : vector<1x8x4xf32> to vector<8x4xf32>
    %cst_51 = arith.constant dense<0.000000e+00> : vector<8x512xf32>
    %74 = tpu.matmul %73, %71, %cst_51 {dimension_numbers = #tpu.dot_dimension_numbers<[1], [0], [0], [1], [0, 0, 1, 1], [], []>} : vector<8x4xf32>, vector<4x512xf32>, vector<8x512xf32> -> vector<8x512xf32>
    %75 = arith.addf %66, %74 : vector<8x512xf32>
    %cst_52 = arith.constant dense<0.000000e+00> : vector<8xf32>
    %76 = vector.multi_reduction <add>, %75, %cst_52 [1] : vector<8x512xf32> to vector<8xf32>
    %77 = vector.shape_cast %76 : vector<8xf32> to vector<8x1xf32>
    %cst_53 = arith.constant 0.001953125 : f32
    %78 = vector.broadcast %cst_53 : f32 to vector<8x1xf32>
    %79 = arith.mulf %77, %78 : vector<8x1xf32>
    %80 = arith.mulf %75, %75 : vector<8x512xf32>
    %cst_54 = arith.constant dense<0.000000e+00> : vector<8xf32>
    %81 = vector.multi_reduction <add>, %80, %cst_54 [1] : vector<8x512xf32> to vector<8xf32>
    %82 = vector.shape_cast %81 : vector<8xf32> to vector<8x1xf32>
    %cst_55 = arith.constant 0.001953125 : f32
    %83 = vector.broadcast %cst_55 : f32 to vector<8x1xf32>
    %84 = arith.mulf %82, %83 : vector<8x1xf32>
    %85 = arith.mulf %79, %79 : vector<8x1xf32>
    %86 = arith.subf %84, %85 : vector<8x1xf32>
    %cst_56 = arith.constant 9.99999974E-6 : f32
    %87 = vector.broadcast %cst_56 : f32 to vector<8x1xf32>
    %88 = arith.addf %86, %87 : vector<8x1xf32>
    %89 = math.rsqrt %88 : vector<8x1xf32>
    %c0_57 = arith.constant 0 : index
    %c0_58 = arith.constant 0 : index
    %90 = vector.load %arg3[%c0_57, %c0_58] : memref<8x1xf32, #tpu.memory_space<vmem>>, vector<8x1xf32>
    %91 = arith.mulf %89, %90 : vector<8x1xf32>
    %c0_59 = arith.constant 0 : index
    %c0_60 = arith.constant 0 : index
    %92 = vector.load %arg4[%c0_59, %c0_60] : memref<8x1xf32, #tpu.memory_space<vmem>>, vector<8x1xf32>
    %93 = arith.mulf %79, %91 : vector<8x1xf32>
    %94 = arith.subf %92, %93 : vector<8x1xf32>
    %95 = vector.broadcast %91 : vector<8x1xf32> to vector<8x512xf32>
    %96 = arith.mulf %75, %95 : vector<8x512xf32>
    %97 = vector.broadcast %94 : vector<8x1xf32> to vector<8x512xf32>
    %98 = arith.addf %96, %97 : vector<8x512xf32>
    %cst_61 = arith.constant 0.000000e+00 : f32
    %99 = vector.broadcast %cst_61 : f32 to vector<8x512xf32>
    %100 = arith.maximumf %98, %99 : vector<8x512xf32>
    %c4_62 = arith.constant 4 : index
    %c0_63 = arith.constant 0 : index
    %c0_64 = arith.constant 0 : index
    %101 = vector.load %arg2[%c4_62, %c0_63, %c0_64] : memref<9x8x8xf32, #tpu.memory_space<vmem>>, vector<1x8x8xf32>
    %102 = vector.shape_cast %101 : vector<1x8x8xf32> to vector<8x8xf32>
    %cst_65 = arith.constant dense<0.000000e+00> : vector<8x512xf32>
    %103 = tpu.matmul %102, %100, %cst_65 {dimension_numbers = #tpu.dot_dimension_numbers<[1], [0], [0], [1], [0, 0, 1, 1], [], []>} : vector<8x8xf32>, vector<8x512xf32>, vector<8x512xf32> -> vector<8x512xf32>
    %c17_i32_66 = arith.constant 17 : i32
    %104 = tpu.dynamic_rotate %100 by %c17_i32_66 dim 1 : vector<8x512xf32>, i32 -> vector<8x512xf32>
    %c0_67 = arith.constant 0 : index
    %c0_68 = arith.constant 0 : index
    %c0_69 = arith.constant 0 : index
    %105 = vector.load %arg7[%c0_67, %c0_68, %c0_69] : memref<9x1x512xf32, #tpu.memory_space<vmem>>, vector<1x1x512xf32>
    %106 = vector.shape_cast %105 : vector<1x1x512xf32> to vector<1x512xf32>
    %107 = vector.broadcast %106 : vector<1x512xf32> to vector<8x512xf32>
    %108 = arith.mulf %104, %107 : vector<8x512xf32>
    %c0_70 = arith.constant 0 : index
    %c0_71 = arith.constant 0 : index
    %c0_72 = arith.constant 0 : index
    %109 = vector.load %arg2[%c0_70, %c0_71, %c0_72] : memref<9x8x8xf32, #tpu.memory_space<vmem>>, vector<1x8x8xf32>
    %110 = vector.shape_cast %109 : vector<1x8x8xf32> to vector<8x8xf32>
    %cst_73 = arith.constant dense<0.000000e+00> : vector<8x512xf32>
    %111 = tpu.matmul %110, %108, %cst_73 {dimension_numbers = #tpu.dot_dimension_numbers<[1], [0], [0], [1], [0, 0, 1, 1], [], []>} : vector<8x8xf32>, vector<8x512xf32>, vector<8x512xf32> -> vector<8x512xf32>
    %112 = arith.addf %103, %111 : vector<8x512xf32>
    %c16_i32_74 = arith.constant 16 : i32
    %113 = tpu.dynamic_rotate %100 by %c16_i32_74 dim 1 : vector<8x512xf32>, i32 -> vector<8x512xf32>
    %c1_75 = arith.constant 1 : index
    %c0_76 = arith.constant 0 : index
    %c0_77 = arith.constant 0 : index
    %114 = vector.load %arg7[%c1_75, %c0_76, %c0_77] : memref<9x1x512xf32, #tpu.memory_space<vmem>>, vector<1x1x512xf32>
    %115 = vector.shape_cast %114 : vector<1x1x512xf32> to vector<1x512xf32>
    %116 = vector.broadcast %115 : vector<1x512xf32> to vector<8x512xf32>
    %117 = arith.mulf %113, %116 : vector<8x512xf32>
    %c1_78 = arith.constant 1 : index
    %c0_79 = arith.constant 0 : index
    %c0_80 = arith.constant 0 : index
    %118 = vector.load %arg2[%c1_78, %c0_79, %c0_80] : memref<9x8x8xf32, #tpu.memory_space<vmem>>, vector<1x8x8xf32>
    %119 = vector.shape_cast %118 : vector<1x8x8xf32> to vector<8x8xf32>
    %cst_81 = arith.constant dense<0.000000e+00> : vector<8x512xf32>
    %120 = tpu.matmul %119, %117, %cst_81 {dimension_numbers = #tpu.dot_dimension_numbers<[1], [0], [0], [1], [0, 0, 1, 1], [], []>} : vector<8x8xf32>, vector<8x512xf32>, vector<8x512xf32> -> vector<8x512xf32>
    %121 = arith.addf %112, %120 : vector<8x512xf32>
    %c15_i32_82 = arith.constant 15 : i32
    %122 = tpu.dynamic_rotate %100 by %c15_i32_82 dim 1 : vector<8x512xf32>, i32 -> vector<8x512xf32>
    %c2_83 = arith.constant 2 : index
    %c0_84 = arith.constant 0 : index
    %c0_85 = arith.constant 0 : index
    %123 = vector.load %arg7[%c2_83, %c0_84, %c0_85] : memref<9x1x512xf32, #tpu.memory_space<vmem>>, vector<1x1x512xf32>
    %124 = vector.shape_cast %123 : vector<1x1x512xf32> to vector<1x512xf32>
    %125 = vector.broadcast %124 : vector<1x512xf32> to vector<8x512xf32>
    %126 = arith.mulf %122, %125 : vector<8x512xf32>
    %c2_86 = arith.constant 2 : index
    %c0_87 = arith.constant 0 : index
    %c0_88 = arith.constant 0 : index
    %127 = vector.load %arg2[%c2_86, %c0_87, %c0_88] : memref<9x8x8xf32, #tpu.memory_space<vmem>>, vector<1x8x8xf32>
    %128 = vector.shape_cast %127 : vector<1x8x8xf32> to vector<8x8xf32>
    %cst_89 = arith.constant dense<0.000000e+00> : vector<8x512xf32>
    %129 = tpu.matmul %128, %126, %cst_89 {dimension_numbers = #tpu.dot_dimension_numbers<[1], [0], [0], [1], [0, 0, 1, 1], [], []>} : vector<8x8xf32>, vector<8x512xf32>, vector<8x512xf32> -> vector<8x512xf32>
    %130 = arith.addf %121, %129 : vector<8x512xf32>
    %c1_i32_90 = arith.constant 1 : i32
    %131 = tpu.dynamic_rotate %100 by %c1_i32_90 dim 1 : vector<8x512xf32>, i32 -> vector<8x512xf32>
    %c3_91 = arith.constant 3 : index
    %c0_92 = arith.constant 0 : index
    %c0_93 = arith.constant 0 : index
    %132 = vector.load %arg7[%c3_91, %c0_92, %c0_93] : memref<9x1x512xf32, #tpu.memory_space<vmem>>, vector<1x1x512xf32>
    %133 = vector.shape_cast %132 : vector<1x1x512xf32> to vector<1x512xf32>
    %134 = vector.broadcast %133 : vector<1x512xf32> to vector<8x512xf32>
    %135 = arith.mulf %131, %134 : vector<8x512xf32>
    %c3_94 = arith.constant 3 : index
    %c0_95 = arith.constant 0 : index
    %c0_96 = arith.constant 0 : index
    %136 = vector.load %arg2[%c3_94, %c0_95, %c0_96] : memref<9x8x8xf32, #tpu.memory_space<vmem>>, vector<1x8x8xf32>
    %137 = vector.shape_cast %136 : vector<1x8x8xf32> to vector<8x8xf32>
    %cst_97 = arith.constant dense<0.000000e+00> : vector<8x512xf32>
    %138 = tpu.matmul %137, %135, %cst_97 {dimension_numbers = #tpu.dot_dimension_numbers<[1], [0], [0], [1], [0, 0, 1, 1], [], []>} : vector<8x8xf32>, vector<8x512xf32>, vector<8x512xf32> -> vector<8x512xf32>
    %139 = arith.addf %130, %138 : vector<8x512xf32>
    %c511_i32_98 = arith.constant 511 : i32
    %140 = tpu.dynamic_rotate %100 by %c511_i32_98 dim 1 : vector<8x512xf32>, i32 -> vector<8x512xf32>
    %c5_99 = arith.constant 5 : index
    %c0_100 = arith.constant 0 : index
    %c0_101 = arith.constant 0 : index
    %141 = vector.load %arg7[%c5_99, %c0_100, %c0_101] : memref<9x1x512xf32, #tpu.memory_space<vmem>>, vector<1x1x512xf32>
    %142 = vector.shape_cast %141 : vector<1x1x512xf32> to vector<1x512xf32>
    %143 = vector.broadcast %142 : vector<1x512xf32> to vector<8x512xf32>
    %144 = arith.mulf %140, %143 : vector<8x512xf32>
    %c5_102 = arith.constant 5 : index
    %c0_103 = arith.constant 0 : index
    %c0_104 = arith.constant 0 : index
    %145 = vector.load %arg2[%c5_102, %c0_103, %c0_104] : memref<9x8x8xf32, #tpu.memory_space<vmem>>, vector<1x8x8xf32>
    %146 = vector.shape_cast %145 : vector<1x8x8xf32> to vector<8x8xf32>
    %cst_105 = arith.constant dense<0.000000e+00> : vector<8x512xf32>
    %147 = tpu.matmul %146, %144, %cst_105 {dimension_numbers = #tpu.dot_dimension_numbers<[1], [0], [0], [1], [0, 0, 1, 1], [], []>} : vector<8x8xf32>, vector<8x512xf32>, vector<8x512xf32> -> vector<8x512xf32>
    %148 = arith.addf %139, %147 : vector<8x512xf32>
    %c497_i32_106 = arith.constant 497 : i32
    %149 = tpu.dynamic_rotate %100 by %c497_i32_106 dim 1 : vector<8x512xf32>, i32 -> vector<8x512xf32>
    %c6_107 = arith.constant 6 : index
    %c0_108 = arith.constant 0 : index
    %c0_109 = arith.constant 0 : index
    %150 = vector.load %arg7[%c6_107, %c0_108, %c0_109] : memref<9x1x512xf32, #tpu.memory_space<vmem>>, vector<1x1x512xf32>
    %151 = vector.shape_cast %150 : vector<1x1x512xf32> to vector<1x512xf32>
    %152 = vector.broadcast %151 : vector<1x512xf32> to vector<8x512xf32>
    %153 = arith.mulf %149, %152 : vector<8x512xf32>
    %c6_110 = arith.constant 6 : index
    %c0_111 = arith.constant 0 : index
    %c0_112 = arith.constant 0 : index
    %154 = vector.load %arg2[%c6_110, %c0_111, %c0_112] : memref<9x8x8xf32, #tpu.memory_space<vmem>>, vector<1x8x8xf32>
    %155 = vector.shape_cast %154 : vector<1x8x8xf32> to vector<8x8xf32>
    %cst_113 = arith.constant dense<0.000000e+00> : vector<8x512xf32>
    %156 = tpu.matmul %155, %153, %cst_113 {dimension_numbers = #tpu.dot_dimension_numbers<[1], [0], [0], [1], [0, 0, 1, 1], [], []>} : vector<8x8xf32>, vector<8x512xf32>, vector<8x512xf32> -> vector<8x512xf32>
    %157 = arith.addf %148, %156 : vector<8x512xf32>
    %c496_i32_114 = arith.constant 496 : i32
    %158 = tpu.dynamic_rotate %100 by %c496_i32_114 dim 1 : vector<8x512xf32>, i32 -> vector<8x512xf32>
    %c7_115 = arith.constant 7 : index
    %c0_116 = arith.constant 0 : index
    %c0_117 = arith.constant 0 : index
    %159 = vector.load %arg7[%c7_115, %c0_116, %c0_117] : memref<9x1x512xf32, #tpu.memory_space<vmem>>, vector<1x1x512xf32>
    %160 = vector.shape_cast %159 : vector<1x1x512xf32> to vector<1x512xf32>
    %161 = vector.broadcast %160 : vector<1x512xf32> to vector<8x512xf32>
    %162 = arith.mulf %158, %161 : vector<8x512xf32>
    %c7_118 = arith.constant 7 : index
    %c0_119 = arith.constant 0 : index
    %c0_120 = arith.constant 0 : index
    %163 = vector.load %arg2[%c7_118, %c0_119, %c0_120] : memref<9x8x8xf32, #tpu.memory_space<vmem>>, vector<1x8x8xf32>
    %164 = vector.shape_cast %163 : vector<1x8x8xf32> to vector<8x8xf32>
    %cst_121 = arith.constant dense<0.000000e+00> : vector<8x512xf32>
    %165 = tpu.matmul %164, %162, %cst_121 {dimension_numbers = #tpu.dot_dimension_numbers<[1], [0], [0], [1], [0, 0, 1, 1], [], []>} : vector<8x8xf32>, vector<8x512xf32>, vector<8x512xf32> -> vector<8x512xf32>
    %166 = arith.addf %157, %165 : vector<8x512xf32>
    %c495_i32_122 = arith.constant 495 : i32
    %167 = tpu.dynamic_rotate %100 by %c495_i32_122 dim 1 : vector<8x512xf32>, i32 -> vector<8x512xf32>
    %c8_123 = arith.constant 8 : index
    %c0_124 = arith.constant 0 : index
    %c0_125 = arith.constant 0 : index
    %168 = vector.load %arg7[%c8_123, %c0_124, %c0_125] : memref<9x1x512xf32, #tpu.memory_space<vmem>>, vector<1x1x512xf32>
    %169 = vector.shape_cast %168 : vector<1x1x512xf32> to vector<1x512xf32>
    %170 = vector.broadcast %169 : vector<1x512xf32> to vector<8x512xf32>
    %171 = arith.mulf %167, %170 : vector<8x512xf32>
    %c8_126 = arith.constant 8 : index
    %c0_127 = arith.constant 0 : index
    %c0_128 = arith.constant 0 : index
    %172 = vector.load %arg2[%c8_126, %c0_127, %c0_128] : memref<9x8x8xf32, #tpu.memory_space<vmem>>, vector<1x8x8xf32>
    %173 = vector.shape_cast %172 : vector<1x8x8xf32> to vector<8x8xf32>
    %cst_129 = arith.constant dense<0.000000e+00> : vector<8x512xf32>
    %174 = tpu.matmul %173, %171, %cst_129 {dimension_numbers = #tpu.dot_dimension_numbers<[1], [0], [0], [1], [0, 0, 1, 1], [], []>} : vector<8x8xf32>, vector<8x512xf32>, vector<8x512xf32> -> vector<8x512xf32>
    %175 = arith.addf %166, %174 : vector<8x512xf32>
    %cst_130 = arith.constant dense<0.000000e+00> : vector<8xf32>
    %176 = vector.multi_reduction <add>, %175, %cst_130 [1] : vector<8x512xf32> to vector<8xf32>
    %177 = vector.shape_cast %176 : vector<8xf32> to vector<8x1xf32>
    %cst_131 = arith.constant 0.001953125 : f32
    %178 = vector.broadcast %cst_131 : f32 to vector<8x1xf32>
    %179 = arith.mulf %177, %178 : vector<8x1xf32>
    %180 = arith.mulf %175, %175 : vector<8x512xf32>
    %cst_132 = arith.constant dense<0.000000e+00> : vector<8xf32>
    %181 = vector.multi_reduction <add>, %180, %cst_132 [1] : vector<8x512xf32> to vector<8xf32>
    %182 = vector.shape_cast %181 : vector<8xf32> to vector<8x1xf32>
    %cst_133 = arith.constant 0.001953125 : f32
    %183 = vector.broadcast %cst_133 : f32 to vector<8x1xf32>
    %184 = arith.mulf %182, %183 : vector<8x1xf32>
    %185 = arith.mulf %179, %179 : vector<8x1xf32>
    %186 = arith.subf %184, %185 : vector<8x1xf32>
    %cst_134 = arith.constant 9.99999974E-6 : f32
    %187 = vector.broadcast %cst_134 : f32 to vector<8x1xf32>
    %188 = arith.addf %186, %187 : vector<8x1xf32>
    %189 = math.rsqrt %188 : vector<8x1xf32>
    %c0_135 = arith.constant 0 : index
    %c0_136 = arith.constant 0 : index
    %190 = vector.load %arg5[%c0_135, %c0_136] : memref<8x1xf32, #tpu.memory_space<vmem>>, vector<8x1xf32>
    %191 = arith.mulf %189, %190 : vector<8x1xf32>
    %c0_137 = arith.constant 0 : index
    %c0_138 = arith.constant 0 : index
    %192 = vector.load %arg6[%c0_137, %c0_138] : memref<8x1xf32, #tpu.memory_space<vmem>>, vector<8x1xf32>
    %193 = arith.mulf %179, %191 : vector<8x1xf32>
    %194 = arith.subf %192, %193 : vector<8x1xf32>
    %195 = vector.broadcast %191 : vector<8x1xf32> to vector<8x512xf32>
    %196 = arith.mulf %175, %195 : vector<8x512xf32>
    %197 = vector.broadcast %194 : vector<8x1xf32> to vector<8x512xf32>
    %198 = arith.addf %196, %197 : vector<8x512xf32>
    %cst_139 = arith.constant 0.000000e+00 : f32
    %199 = vector.broadcast %cst_139 : f32 to vector<8x512xf32>
    %200 = arith.maximumf %198, %199 : vector<8x512xf32>
    %c0_140 = arith.constant 0 : index
    %c0_141 = arith.constant 0 : index
    %201 = vector.load %arg8[%c0_140, %c0_141] : memref<8x512xf32, #tpu.memory_space<vmem>>, vector<8x512xf32>
    tpu.vector_store %arg8[%c0_140, %c0_141], %200 {strides = array<i32>} : memref<8x512xf32, #tpu.memory_space<vmem>>, vector<8x512xf32>,
    return
  }
}

</mosaic_0001>

<llo_original>
// kernel: conv_block.1
$region0: #{conv_block.1}
  #allocation0 [shape = 'u32[]', space=smem, size = 0x4, offset = 0x4, fixed_abs, tag = 'smem constant byte address 0x4 - core index']
  #allocation1 [shape = 'u32[144,128]{1,0:T(1,128)}', space=vmem, size = 0x12000, scoped, tag = 'internal scratch']
  %s0 = inlined_call_operand.vmem [shape: f32[4,512], index: 0, kind: input, shape index: {}]
  %s1 = inlined_call_operand.vmem [shape: f32[9,8,4], index: 1, kind: input, shape index: {}]
  %s2 = inlined_call_operand.vmem [shape: f32[9,8,8], index: 2, kind: input, shape index: {}]
  %s3 = inlined_call_operand.vmem [shape: f32[8,1], index: 3, kind: input, shape index: {}]
  %s4 = inlined_call_operand.vmem [shape: f32[8,1], index: 4, kind: input, shape index: {}]
  %s5 = inlined_call_operand.vmem [shape: f32[8,1], index: 5, kind: input, shape index: {}]
  %s6 = inlined_call_operand.vmem [shape: f32[8,1], index: 6, kind: input, shape index: {}]
  %s7 = inlined_call_operand.vmem [shape: f32[9,1,512], index: 7, kind: input, shape index: {}]
  %s8 = inlined_call_operand.vmem [shape: f32[8,512], index: 8, kind: output, shape index: {}]
  %s9 = sld [smem:[#allocation0]]
  $region42: #{conv_block.1} parent=0
    _
  %s11 = ssub.s32 1, %s9
  %s12 = scalar_select 0, %s11, %s9
  // Predicated region
  $region2: #{conv_block.1} parent=0 // pred_check
    _
  $region3: #{conv_block.1} parent=0 // pred_check_branch
    %14 = sbr.rel (0) target = $region5
  $region4: #{conv_block.1} parent=0 // pred_region
    _
  $region5: #{conv_block.1} parent=0 // pred_fallthru
    _
  // Predicated region
  $region6: #{conv_block.1} parent=0 // pred_check
    _
  $region7: #{conv_block.1} parent=0 // pred_check_branch
    %16 = sbr.rel (0) target = $region9
  $region8: #{conv_block.1} parent=0 // pred_region
    _
  $region9: #{conv_block.1} parent=0 // pred_fallthru
    _
  // Predicated region
  $region10: #{conv_block.1} parent=0 // pred_check
    _
  $region11: #{conv_block.1} parent=0 // pred_check_branch
    %18 = sbr.rel (0) target = $region13
  $region12: #{conv_block.1} parent=0 // pred_region
    _
  $region13: #{conv_block.1} parent=0 // pred_fallthru
    _
  // Predicated region
  $region14: #{conv_block.1} parent=0 // pred_check
    _
  $region15: #{conv_block.1} parent=0 // pred_check_branch
    %20 = sbr.rel (0) target = $region17
  $region16: #{conv_block.1} parent=0 // pred_region
    _
  $region17: #{conv_block.1} parent=0 // pred_fallthru
    _
  // Predicated region
  $region18: #{conv_block.1} parent=0 // pred_check
    _
  $region19: #{conv_block.1} parent=0 // pred_check_branch
    %22 = sbr.rel (0) target = $region21
  $region20: #{conv_block.1} parent=0 // pred_region
    _
  $region21: #{conv_block.1} parent=0 // pred_fallthru
    _
  // Predicated region
  $region22: #{conv_block.1} parent=0 // pred_check
    _
  $region23: #{conv_block.1} parent=0 // pred_check_branch
    %24 = sbr.rel (0) target = $region25
  $region24: #{conv_block.1} parent=0 // pred_region
    _
  $region25: #{conv_block.1} parent=0 // pred_fallthru
    _
  // Predicated region
  $region26: #{conv_block.1} parent=0 // pred_check
    _
  $region27: #{conv_block.1} parent=0 // pred_check_branch
    %26 = sbr.rel (0) target = $region29
  $region28: #{conv_block.1} parent=0 // pred_region
    _
  $region29: #{conv_block.1} parent=0 // pred_fallthru
    _
  // Predicated region
  $region30: #{conv_block.1} parent=0 // pred_check
    _
  $region31: #{conv_block.1} parent=0 // pred_check_branch
    %28 = sbr.rel (0) target = $region33
  $region32: #{conv_block.1} parent=0 // pred_region
    _
  $region33: #{conv_block.1} parent=0 // pred_fallthru
    _
  %v29 = vld [vmem:[%s0] sm:$0xff]
  %v30 = vld [vmem:[%s0 + $0x8] sm:$0xff]
  %s31 = scalar_lea.vmem %s1, 32
  %v32 = vld [vmem:[%s31] sm:$0xff]
  %v35 = vcombine.high %v29, %v29
  %v36 = vcombine.high %v30, %v30
  %39 = vrot.lane.b32.xlu0 %v29, 17
  %v40 = vpop.permute.xlu0 %39
  %41 = vrot.lane.b32.xlu0 %v35, 17
  %v42 = vpop.permute.xlu0 %41
  %43 = vrot.lane.b32.xlu0 %v30, 17
  %v44 = vpop.permute.xlu0 %43
  %45 = vrot.lane.b32.xlu0 %v36, 17
  %v46 = vpop.permute.xlu0 %45
  %v47 = vlaneseq
  %v48 = vand.u32 %v47, 127
  %vm49 = vcmp.lt.s32.totalorder %v48, 17
  %v50 = vsel %vm49, %v44, %v46
  %v51 = vsel %vm49, %v42, %v44
  %v52 = vsel %vm49, %v40, %v42
  %v53 = vsel %vm49, %v46, %v40
  %v54 = vld [vmem:[%s7] sm:$0xf]
  %v56 = vlaneseq
  %v57 = vshrl.u32 %v56, 7
  %v58 = vsub.s32 0, %v57
  %v59 = vrot.slane %v54, %v58
  %v60 = vlaneseq
  %v61 = vshrl.u32 %v60, 7
  %v62 = vsub.s32 1, %v61
  %v63 = vrot.slane %v54, %v62
  %v64 = vlaneseq
  %v65 = vshrl.u32 %v64, 7
  %v66 = vsub.s32 2, %v65
  %v67 = vrot.slane %v54, %v66
  %v68 = vlaneseq
  %v69 = vshrl.u32 %v68, 7
  %v70 = vsub.s32 3, %v69
  %v71 = vrot.slane %v54, %v70
  %v76 = vmul.f32 %v53, %v59
  %v77 = vmul.f32 %v52, %v63
  %v78 = vmul.f32 %v51, %v67
  %v79 = vmul.f32 %v50, %v71
  %v80 = vld [vmem:[%s1] sm:$0xff]
  %vm81 = vcmask 31744
  %v83 = vsel %vm81, %v80, 0
  %vm85 = vcmask 1043456
  %v87 = vsel %vm85, %v76, 0
  %v90 = vsel %vm85, %v77, 0
  %v93 = vsel %vm85, %v78, 0
  %v96 = vsel %vm85, %v79, 0
  %98 = vmatprep.subr.mxu0 %v90
  %99 = vmatpush1.msra.mxu0 %v87
  %100 = vmatprep.subr.mxu0 0.0
  %101 = vmatpush1.msra.mxu0 0.0
  %102 = vmatprep.subr.mxu0 0.0
  %103 = vmatpush1.msra.mxu0 0.0
  %104 = vmatprep.subr.mxu0 0.0
  %105 = vmatpush1.msra.mxu0 0.0
  %106 = vmatprep.subr.mxu0 0.0
  %107 = vmatpush1.msra.mxu0 0.0
  %108 = vmatprep.subr.mxu0 0.0
  %109 = vmatpush1.msra.mxu0 0.0
  %110 = vmatprep.subr.mxu0 0.0
  %111 = vmatpush1.msra.mxu0 0.0
  %112 = vmatprep.subr.mxu0 0.0
  %113 = vmatpush1.msra.mxu0 0.0
  %114 = vmatprep.subr.mxu0 0.0
  %115 = vmatpush1.msra.mxu0 0.0
  %116 = vmatprep.subr.mxu0 0.0
  %117 = vmatpush1.msra.mxu0 0.0
  %118 = vmatprep.subr.mxu0 0.0
  %119 = vmatpush1.msra.mxu0 0.0
  %120 = vmatprep.subr.mxu0 0.0
  %121 = vmatpush1.msra.mxu0 0.0
  %122 = vmatprep.subr.mxu0 0.0
  %123 = vmatpush1.msra.mxu0 0.0
  %124 = vmatprep.subr.mxu0 0.0
  %125 = vmatpush1.msra.mxu0 0.0
  %126 = vmatprep.subr.mxu0 0.0
  %127 = vmatpush1.msra.mxu0 0.0
  %128 = vmatprep.subr.mxu0 0.0
  %129 = vmatpush1.msra.mxu0 0.0
  %130 = vmatprep.subr.mxu0 0.0
  %131 = vmatpush1.msra.mxu0 0.0
  %132 = vmatprep.subr.mxu0 0.0
  %133 = vmatpush1.msra.mxu0 0.0
  %134 = vmatprep.subr.mxu0 0.0
  %135 = vmatpush1.msra.mxu0 0.0
  %136 = vmatprep.subr.mxu0 0.0
  %137 = vmatpush1.msra.mxu0 0.0
  %138 = vmatprep.subr.mxu0 0.0
  %139 = vmatpush1.msra.mxu0 0.0
  %140 = vmatprep.subr.mxu0 0.0
  %141 = vmatpush1.msra.mxu0 0.0
  %142 = vmatprep.subr.mxu0 0.0
  %143 = vmatpush1.msra.mxu0 0.0
  %144 = vmatprep.subr.mxu0 0.0
  %145 = vmatpush1.msra.mxu0 0.0
  %146 = vmatprep.subr.mxu0 0.0
  %147 = vmatpush1.msra.mxu0 0.0
  %148 = vmatprep.subr.mxu0 0.0
  %149 = vmatpush1.msra.mxu0 0.0
  %150 = vmatprep.subr.mxu0 0.0
  %151 = vmatpush1.msra.mxu0 0.0
  %152 = vmatprep.subr.mxu0 0.0
  %153 = vmatpush1.msra.mxu0 0.0
  %154 = vmatprep.subr.mxu0 0.0
  %155 = vmatpush1.msra.mxu0 0.0
  %156 = vmatprep.subr.mxu0 0.0
  %157 = vmatpush1.msra.mxu0 0.0
  %158 = vmatprep.subr.mxu0 0.0
  %159 = vmatpush1.msra.mxu0 0.0
  %160 = vmatprep.subr.mxu0 0.0
  %161 = vmatpush1.msra.mxu0 0.0
  %162 = vmatprep.mubr.f32.mxu0 0.0
  %163 = vmatmul.mubr.f32.gmra.mrb[0].mxu0 %v83
  %v164 = vpop.f32.mrb[0].mxu0
  %v165 = vadd.f32 0.0, %v164
  %v166 = vpop.f32.mrb[0].mxu0
  %v167 = vadd.f32 0.0, %v166
  %168 = vdwg.mxu0
  %169 = vmatprep.subr.mxu0 %v96
  %170 = vmatpush1.msra.mxu0 %v93
  %171 = vmatprep.subr.mxu0 0.0
  %172 = vmatpush1.msra.mxu0 0.0
  %173 = vmatprep.subr.mxu0 0.0
  %174 = vmatpush1.msra.mxu0 0.0
  %175 = vmatprep.subr.mxu0 0.0
  %176 = vmatpush1.msra.mxu0 0.0
  %177 = vmatprep.subr.mxu0 0.0
  %178 = vmatpush1.msra.mxu0 0.0
  %179 = vmatprep.subr.mxu0 0.0
  %180 = vmatpush1.msra.mxu0 0.0
  %181 = vmatprep.subr.mxu0 0.0
  %182 = vmatpush1.msra.mxu0 0.0
  %183 = vmatprep.subr.mxu0 0.0
  %184 = vmatpush1.msra.mxu0 0.0
  %185 = vmatprep.subr.mxu0 0.0
  %186 = vmatpush1.msra.mxu0 0.0
  %187 = vmatprep.subr.mxu0 0.0
  %188 = vmatpush1.msra.mxu0 0.0
  %189 = vmatprep.subr.mxu0 0.0
  %190 = vmatpush1.msra.mxu0 0.0
  %191 = vmatprep.subr.mxu0 0.0
  %192 = vmatpush1.msra.mxu0 0.0
  %193 = vmatprep.subr.mxu0 0.0
  %194 = vmatpush1.msra.mxu0 0.0
  %195 = vmatprep.subr.mxu0 0.0
  %196 = vmatpush1.msra.mxu0 0.0
  %197 = vmatprep.subr.mxu0 0.0
  %198 = vmatpush1.msra.mxu0 0.0
  %199 = vmatprep.subr.mxu0 0.0
  %200 = vmatpush1.msra.mxu0 0.0
  %201 = vmatprep.subr.mxu0 0.0
  %202 = vmatpush1.msra.mxu0 0.0
  %203 = vmatprep.subr.mxu0 0.0
  %204 = vmatpush1.msra.mxu0 0.0
  %205 = vmatprep.subr.mxu0 0.0
  %206 = vmatpush1.msra.mxu0 0.0
  %207 = vmatprep.subr.mxu0 0.0
  %208 = vmatpush1.msra.mxu0 0.0
  %209 = vmatprep.subr.mxu0 0.0
  %210 = vmatpush1.msra.mxu0 0.0
  %211 = vmatprep.subr.mxu0 0.0
  %212 = vmatpush1.msra.mxu0 0.0
  %213 = vmatprep.subr.mxu0 0.0
  %214 = vmatpush1.msra.mxu0 0.0
  %215 = vmatprep.subr.mxu0 0.0
  %216 = vmatpush1.msra.mxu0 0.0
  %217 = vmatprep.subr.mxu0 0.0
  %218 = vmatpush1.msra.mxu0 0.0
  %219 = vmatprep.subr.mxu0 0.0
  %220 = vmatpush1.msra.mxu0 0.0
  %221 = vmatprep.subr.mxu0 0.0
  %222 = vmatpush1.msra.mxu0 0.0
  %223 = vmatprep.subr.mxu0 0.0
  %224 = vmatpush1.msra.mxu0 0.0
  %225 = vmatprep.subr.mxu0 0.0
  %226 = vmatpush1.msra.mxu0 0.0
  %227 = vmatprep.subr.mxu0 0.0
  %228 = vmatpush1.msra.mxu0 0.0
  %229 = vmatprep.subr.mxu0 0.0
  %230 = vmatpush1.msra.mxu0 0.0
  %231 = vmatprep.subr.mxu0 0.0
  %232 = vmatpush1.msra.mxu0 0.0
  %233 = vmatprep.mubr.f32.mxu0 0.0
  %234 = vmatmul.mubr.f32.gmra.mrb[0].mxu0 %v83
  %v235 = vpop.f32.mrb[0].mxu0
  %v236 = vadd.f32 0.0, %v235
  %v237 = vpop.f32.mrb[0].mxu0
  %v238 = vadd.f32 0.0, %v237
  %239 = vdwg.mxu0
  %v241 = vsel %vm81, %v32, 0
  %v243 = vsel %vm85, %v29, 0
  %v245 = vsel %vm85, %v35, 0
  %v247 = vsel %vm85, %v30, 0
  %v249 = vsel %vm85, %v36, 0
  %251 = vmatprep.subr.mxu0 %v245
  %252 = vmatpush1.msra.mxu0 %v243
  %253 = vmatprep.subr.mxu0 0.0
  %254 = vmatpush1.msra.mxu0 0.0
  %255 = vmatprep.subr.mxu0 0.0
  %256 = vmatpush1.msra.mxu0 0.0
  %257 = vmatprep.subr.mxu0 0.0
  %258 = vmatpush1.msra.mxu0 0.0
  %259 = vmatprep.subr.mxu0 0.0
  %260 = vmatpush1.msra.mxu0 0.0
  %261 = vmatprep.subr.mxu0 0.0
  %262 = vmatpush1.msra.mxu0 0.0
  %263 = vmatprep.subr.mxu0 0.0
  %264 = vmatpush1.msra.mxu0 0.0
  %265 = vmatprep.subr.mxu0 0.0
  %266 = vmatpush1.msra.mxu0 0.0
  %267 = vmatprep.subr.mxu0 0.0
  %268 = vmatpush1.msra.mxu0 0.0
  %269 = vmatprep.subr.mxu0 0.0
  %270 = vmatpush1.msra.mxu0 0.0
  %271 = vmatprep.subr.mxu0 0.0
  %272 = vmatpush1.msra.mxu0 0.0
  %273 = vmatprep.subr.mxu0 0.0
  %274 = vmatpush1.msra.mxu0 0.0
  %275 = vmatprep.subr.mxu0 0.0
  %276 = vmatpush1.msra.mxu0 0.0
  %277 = vmatprep.subr.mxu0 0.0
  %278 = vmatpush1.msra.mxu0 0.0
  %279 = vmatprep.subr.mxu0 0.0
  %280 = vmatpush1.msra.mxu0 0.0
  %281 = vmatprep.subr.mxu0 0.0
  %282 = vmatpush1.msra.mxu0 0.0
  %283 = vmatprep.subr.mxu0 0.0
  %284 = vmatpush1.msra.mxu0 0.0
  %285 = vmatprep.subr.mxu0 0.0
  %286 = vmatpush1.msra.mxu0 0.0
  %287 = vmatprep.subr.mxu0 0.0
  %288 = vmatpush1.msra.mxu0 0.0
  %289 = vmatprep.subr.mxu0 0.0
  %290 = vmatpush1.msra.mxu0 0.0
  %291 = vmatprep.subr.mxu0 0.0
  %292 = vmatpush1.msra.mxu0 0.0
  %293 = vmatprep.subr.mxu0 0.0
  %294 = vmatpush1.msra.mxu0 0.0
  %295 = vmatprep.subr.mxu0 0.0
  %296 = vmatpush1.msra.mxu0 0.0
  %297 = vmatprep.subr.mxu0 0.0
  %298 = vmatpush1.msra.mxu0 0.0
  %299 = vmatprep.subr.mxu0 0.0
  %300 = vmatpush1.msra.mxu0 0.0
  %301 = vmatprep.subr.mxu0 0.0
  %302 = vmatpush1.msra.mxu0 0.0
  %303 = vmatprep.subr.mxu0 0.0
  %304 = vmatpush1.msra.mxu0 0.0
  %305 = vmatprep.subr.mxu0 0.0
  %306 = vmatpush1.msra.mxu0 0.0
  %307 = vmatprep.subr.mxu0 0.0
  %308 = vmatpush1.msra.mxu0 0.0
  %309 = vmatprep.subr.mxu0 0.0
  %310 = vmatpush1.msra.mxu0 0.0
  %311 = vmatprep.subr.mxu0 0.0
  %312 = vmatpush1.msra.mxu0 0.0
  %313 = vmatprep.subr.mxu0 0.0
  %314 = vmatpush1.msra.mxu0 0.0
  %315 = vmatprep.mubr.f32.mxu0 0.0
  %316 = vmatmul.mubr.f32.gmra.mrb[0].mxu0 %v241
  %v317 = vpop.f32.mrb[0].mxu0
  %v318 = vadd.f32 %v165, %v317
  %v319 = vpop.f32.mrb[0].mxu0
  %v320 = vadd.f32 %v167, %v319
  %321 = vdwg.mxu0
  %322 = vmatprep.subr.mxu0 %v249
  %323 = vmatpush1.msra.mxu0 %v247
  %324 = vmatprep.subr.mxu0 0.0
  %325 = vmatpush1.msra.mxu0 0.0
  %326 = vmatprep.subr.mxu0 0.0
  %327 = vmatpush1.msra.mxu0 0.0
  %328 = vmatprep.subr.mxu0 0.0
  %329 = vmatpush1.msra.mxu0 0.0
  %330 = vmatprep.subr.mxu0 0.0
  %331 = vmatpush1.msra.mxu0 0.0
  %332 = vmatprep.subr.mxu0 0.0
  %333 = vmatpush1.msra.mxu0 0.0
  %334 = vmatprep.subr.mxu0 0.0
  %335 = vmatpush1.msra.mxu0 0.0
  %336 = vmatprep.subr.mxu0 0.0
  %337 = vmatpush1.msra.mxu0 0.0
  %338 = vmatprep.subr.mxu0 0.0
  %339 = vmatpush1.msra.mxu0 0.0
  %340 = vmatprep.subr.mxu0 0.0
  %341 = vmatpush1.msra.mxu0 0.0
  %342 = vmatprep.subr.mxu0 0.0
  %343 = vmatpush1.msra.mxu0 0.0
  %344 = vmatprep.subr.mxu0 0.0
  %345 = vmatpush1.msra.mxu0 0.0
  %346 = vmatprep.subr.mxu0 0.0
  %347 = vmatpush1.msra.mxu0 0.0
  %348 = vmatprep.subr.mxu0 0.0
  %349 = vmatpush1.msra.mxu0 0.0
  %350 = vmatprep.subr.mxu0 0.0
  %351 = vmatpush1.msra.mxu0 0.0
  %352 = vmatprep.subr.mxu0 0.0
  %353 = vmatpush1.msra.mxu0 0.0
  %354 = vmatprep.subr.mxu0 0.0
  %355 = vmatpush1.msra.mxu0 0.0
  %356 = vmatprep.subr.mxu0 0.0
  %357 = vmatpush1.msra.mxu0 0.0
  %358 = vmatprep.subr.mxu0 0.0
  %359 = vmatpush1.msra.mxu0 0.0
  %360 = vmatprep.subr.mxu0 0.0
  %361 = vmatpush1.msra.mxu0 0.0
  %362 = vmatprep.subr.mxu0 0.0
  %363 = vmatpush1.msra.mxu0 0.0
  %364 = vmatprep.subr.mxu0 0.0
  %365 = vmatpush1.msra.mxu0 0.0
  %366 = vmatprep.subr.mxu0 0.0
  %367 = vmatpush1.msra.mxu0 0.0
  %368 = vmatprep.subr.mxu0 0.0
  %369 = vmatpush1.msra.mxu0 0.0
  %370 = vmatprep.subr.mxu0 0.0
  %371 = vmatpush1.msra.mxu0 0.0
  %372 = vmatprep.subr.mxu0 0.0
  %373 = vmatpush1.msra.mxu0 0.0
  %374 = vmatprep.subr.mxu0 0.0
  %375 = vmatpush1.msra.mxu0 0.0
  %376 = vmatprep.subr.mxu0 0.0
  %377 = vmatpush1.msra.mxu0 0.0
  %378 = vmatprep.subr.mxu0 0.0
  %379 = vmatpush1.msra.mxu0 0.0
  %380 = vmatprep.subr.mxu0 0.0
  %381 = vmatpush1.msra.mxu0 0.0
  %382 = vmatprep.subr.mxu0 0.0
  %383 = vmatpush1.msra.mxu0 0.0
  %384 = vmatprep.subr.mxu0 0.0
  %385 = vmatpush1.msra.mxu0 0.0
  %386 = vmatprep.mubr.f32.mxu0 0.0
  %387 = vmatmul.mubr.f32.gmra.mrb[0].mxu0 %v241
  %v388 = vpop.f32.mrb[0].mxu0
  %v389 = vadd.f32 %v236, %v388
  %v390 = vpop.f32.mrb[0].mxu0
  %v391 = vadd.f32 %v238, %v390
  %392 = vdwg.mxu0
  %393 = vrot.lane.b32.xlu0 %v29, 16
  %v394 = vpop.permute.xlu0 %393
  %395 = vrot.lane.b32.xlu0 %v35, 16
  %v396 = vpop.permute.xlu0 %395
  %397 = vrot.lane.b32.xlu0 %v30, 16
  %v398 = vpop.permute.xlu0 %397
  %399 = vrot.lane.b32.xlu0 %v36, 16
  %v400 = vpop.permute.xlu0 %399
  %vm401 = vcmp.lt.s32.totalorder %v48, 16
  %v402 = vsel %vm401, %v398, %v400
  %v403 = vsel %vm401, %v396, %v398
  %v404 = vsel %vm401, %v394, %v396
  %v405 = vsel %vm401, %v400, %v394
  %s406 = scalar_lea.vmem %s7, 4
  %v407 = vld [vmem:[%s406] sm:$0xf]
  %v409 = vlaneseq
  %v410 = vshrl.u32 %v409, 7
  %v411 = vsub.s32 0, %v410
  %v412 = vrot.slane %v407, %v411
  %v413 = vlaneseq
  %v414 = vshrl.u32 %v413, 7
  %v415 = vsub.s32 1, %v414
  %v416 = vrot.slane %v407, %v415
  %v417 = vlaneseq
  %v418 = vshrl.u32 %v417, 7
  %v419 = vsub.s32 2, %v418
  %v420 = vrot.slane %v407, %v419
  %v421 = vlaneseq
  %v422 = vshrl.u32 %v421, 7
  %v423 = vsub.s32 3, %v422
  %v424 = vrot.slane %v407, %v423
  %v429 = vmul.f32 %v405, %v412
  %v430 = vmul.f32 %v404, %v416
  %v431 = vmul.f32 %v403, %v420
  %v432 = vmul.f32 %v402, %v424
  %s433 = scalar_lea.vmem %s1, 8
  %v434 = vld [vmem:[%s433] sm:$0xff]
  %v436 = vsel %vm81, %v434, 0
  %v439 = vsel %vm85, %v429, 0
  %v442 = vsel %vm85, %v430, 0
  %v445 = vsel %vm85, %v431, 0
  %v448 = vsel %vm85, %v432, 0
  %450 = vmatprep.subr.mxu0 %v442
  %451 = vmatpush1.msra.mxu0 %v439
  %452 = vmatprep.subr.mxu0 0.0
  %453 = vmatpush1.msra.mxu0 0.0
  %454 = vmatprep.subr.mxu0 0.0
  %455 = vmatpush1.msra.mxu0 0.0
  %456 = vmatprep.subr.mxu0 0.0
  %457 = vmatpush1.msra.mxu0 0.0
  %458 = vmatprep.subr.mxu0 0.0
  %459 = vmatpush1.msra.mxu0 0.0
  %460 = vmatprep.subr.mxu0 0.0
  %461 = vmatpush1.msra.mxu0 0.0
  %462 = vmatprep.subr.mxu0 0.0
  %463 = vmatpush1.msra.mxu0 0.0
  %464 = vmatprep.subr.mxu0 0.0
  %465 = vmatpush1.msra.mxu0 0.0
  %466 = vmatprep.subr.mxu0 0.0
  %467 = vmatpush1.msra.mxu0 0.0
  %468 = vmatprep.subr.mxu0 0.0
  %469 = vmatpush1.msra.mxu0 0.0
  %470 = vmatprep.subr.mxu0 0.0
  %471 = vmatpush1.msra.mxu0 0.0
  %472 = vmatprep.subr.mxu0 0.0
  %473 = vmatpush1.msra.mxu0 0.0
  %474 = vmatprep.subr.mxu0 0.0
  %475 = vmatpush1.msra.mxu0 0.0
  %476 = vmatprep.subr.mxu0 0.0
  %477 = vmatpush1.msra.mxu0 0.0
  %478 = vmatprep.subr.mxu0 0.0
  %479 = vmatpush1.msra.mxu0 0.0
  %480 = vmatprep.subr.mxu0 0.0
  %481 = vmatpush1.msra.mxu0 0.0
  %482 = vmatprep.subr.mxu0 0.0
  %483 = vmatpush1.msra.mxu0 0.0
  %484 = vmatprep.subr.mxu0 0.0
  %485 = vmatpush1.msra.mxu0 0.0
  %486 = vmatprep.subr.mxu0 0.0
  %487 = vmatpush1.msra.mxu0 0.0
  %488 = vmatprep.subr.mxu0 0.0
  %489 = vmatpush1.msra.mxu0 0.0
  %490 = vmatprep.subr.mxu0 0.0
  %491 = vmatpush1.msra.mxu0 0.0
  %492 = vmatprep.subr.mxu0 0.0
  %493 = vmatpush1.msra.mxu0 0.0
  %494 = vmatprep.subr.mxu0 0.0
  %495 = vmatpush1.msra.mxu0 0.0
  %496 = vmatprep.subr.mxu0 0.0
  %497 = vmatpush1.msra.mxu0 0.0
  %498 = vmatprep.subr.mxu0 0.0
  %499 = vmatpush1.msra.mxu0 0.0
  %500 = vmatprep.subr.mxu0 0.0
  %501 = vmatpush1.msra.mxu0 0.0
  %502 = vmatprep.subr.mxu0 0.0
  %503 = vmatpush1.msra.mxu0 0.0
  %504 = vmatprep.subr.mxu0 0.0
  %505 = vmatpush1.msra.mxu0 0.0
  %506 = vmatprep.subr.mxu0 0.0
  %507 = vmatpush1.msra.mxu0 0.0
  %508 = vmatprep.subr.mxu0 0.0
  %509 = vmatpush1.msra.mxu0 0.0
  %510 = vmatprep.subr.mxu0 0.0
  %511 = vmatpush1.msra.mxu0 0.0
  %512 = vmatprep.subr.mxu0 0.0
  %513 = vmatpush1.msra.mxu0 0.0
  %514 = vmatprep.mubr.f32.mxu0 0.0
  %515 = vmatmul.mubr.f32.gmra.mrb[0].mxu0 %v436
  %v516 = vpop.f32.mrb[0].mxu0
  %v517 = vadd.f32 0.0, %v516
  %v518 = vpop.f32.mrb[0].mxu0
  %v519 = vadd.f32 0.0, %v518
  %520 = vdwg.mxu0
  %521 = vmatprep.subr.mxu0 %v448
  %522 = vmatpush1.msra.mxu0 %v445
  %523 = vmatprep.subr.mxu0 0.0
  %524 = vmatpush1.msra.mxu0 0.0
  %525 = vmatprep.subr.mxu0 0.0
  %526 = vmatpush1.msra.mxu0 0.0
  %527 = vmatprep.subr.mxu0 0.0
  %528 = vmatpush1.msra.mxu0 0.0
  %529 = vmatprep.subr.mxu0 0.0
  %530 = vmatpush1.msra.mxu0 0.0
  %531 = vmatprep.subr.mxu0 0.0
  %532 = vmatpush1.msra.mxu0 0.0
  %533 = vmatprep.subr.mxu0 0.0
  %534 = vmatpush1.msra.mxu0 0.0
  %535 = vmatprep.subr.mxu0 0.0
  %536 = vmatpush1.msra.mxu0 0.0
  %537 = vmatprep.subr.mxu0 0.0
  %538 = vmatpush1.msra.mxu0 0.0
  %539 = vmatprep.subr.mxu0 0.0
  %540 = vmatpush1.msra.mxu0 0.0
  %541 = vmatprep.subr.mxu0 0.0
  %542 = vmatpush1.msra.mxu0 0.0
  %543 = vmatprep.subr.mxu0 0.0
  %544 = vmatpush1.msra.mxu0 0.0
  %545 = vmatprep.subr.mxu0 0.0
  %546 = vmatpush1.msra.mxu0 0.0
  %547 = vmatprep.subr.mxu0 0.0
  %548 = vmatpush1.msra.mxu0 0.0
  %549 = vmatprep.subr.mxu0 0.0
  %550 = vmatpush1.msra.mxu0 0.0
  %551 = vmatprep.subr.mxu0 0.0
  %552 = vmatpush1.msra.mxu0 0.0
  %553 = vmatprep.subr.mxu0 0.0
  %554 = vmatpush1.msra.mxu0 0.0
  %555 = vmatprep.subr.mxu0 0.0
  %556 = vmatpush1.msra.mxu0 0.0
  %557 = vmatprep.subr.mxu0 0.0
  %558 = vmatpush1.msra.mxu0 0.0
  %559 = vmatprep.subr.mxu0 0.0
  %560 = vmatpush1.msra.mxu0 0.0
  %561 = vmatprep.subr.mxu0 0.0
  %562 = vmatpush1.msra.mxu0 0.0
  %563 = vmatprep.subr.mxu0 0.0
  %564 = vmatpush1.msra.mxu0 0.0
  %565 = vmatprep.subr.mxu0 0.0
  %566 = vmatpush1.msra.mxu0 0.0
  %567 = vmatprep.subr.mxu0 0.0
  %568 = vmatpush1.msra.mxu0 0.0
  %569 = vmatprep.subr.mxu0 0.0
  %570 = vmatpush1.msra.mxu0 0.0
  %571 = vmatprep.subr.mxu0 0.0
  %572 = vmatpush1.msra.mxu0 0.0
  %573 = vmatprep.subr.mxu0 0.0
  %574 = vmatpush1.msra.mxu0 0.0
  %575 = vmatprep.subr.mxu0 0.0
  %576 = vmatpush1.msra.mxu0 0.0
  %577 = vmatprep.subr.mxu0 0.0
  %578 = vmatpush1.msra.mxu0 0.0
  %579 = vmatprep.subr.mxu0 0.0
  %580 = vmatpush1.msra.mxu0 0.0
  %581 = vmatprep.subr.mxu0 0.0
  %582 = vmatpush1.msra.mxu0 0.0
  %583 = vmatprep.subr.mxu0 0.0
  %584 = vmatpush1.msra.mxu0 0.0
  %585 = vmatprep.mubr.f32.mxu0 0.0
  %586 = vmatmul.mubr.f32.gmra.mrb[0].mxu0 %v436
  %v587 = vpop.f32.mrb[0].mxu0
  %v588 = vadd.f32 0.0, %v587
  %v589 = vpop.f32.mrb[0].mxu0
  %v590 = vadd.f32 0.0, %v589
  %591 = vdwg.mxu0
  %v592 = vadd.f32 %v318, %v517
  %v593 = vadd.f32 %v320, %v519
  %v594 = vadd.f32 %v389, %v588
  %v595 = vadd.f32 %v391, %v590
  %596 = vrot.lane.b32.xlu0 %v29, 15
  %v597 = vpop.permute.xlu0 %596
  %598 = vrot.lane.b32.xlu0 %v35, 15
  %v599 = vpop.permute.xlu0 %598
  %600 = vrot.lane.b32.xlu0 %v30, 15
  %v601 = vpop.permute.xlu0 %600
  %602 = vrot.lane.b32.xlu0 %v36, 15
  %v603 = vpop.permute.xlu0 %602
  %vm604 = vcmp.lt.s32.totalorder %v48, 15
  %v605 = vsel %vm604, %v601, %v603
  %v606 = vsel %vm604, %v599, %v601
  %v607 = vsel %vm604, %v597, %v599
  %v608 = vsel %vm604, %v603, %v597
  %s609 = scalar_lea.vmem %s7, 8
  %v610 = vld [vmem:[%s609] sm:$0xf]
  %v612 = vlaneseq
  %v613 = vshrl.u32 %v612, 7
  %v614 = vsub.s32 0, %v613
  %v615 = vrot.slane %v610, %v614
  %v616 = vlaneseq
  %v617 = vshrl.u32 %v616, 7
  %v618 = vsub.s32 1, %v617
  %v619 = vrot.slane %v610, %v618
  %v620 = vlaneseq
  %v621 = vshrl.u32 %v620, 7
  %v622 = vsub.s32 2, %v621
  %v623 = vrot.slane %v610, %v622
  %v624 = vlaneseq
  %v625 = vshrl.u32 %v624, 7
  %v626 = vsub.s32 3, %v625
  %v627 = vrot.slane %v610, %v626
  %v632 = vmul.f32 %v608, %v615
  %v633 = vmul.f32 %v607, %v619
  %v634 = vmul.f32 %v606, %v623
  %v635 = vmul.f32 %v605, %v627
  %s636 = scalar_lea.vmem %s1, 16
  %v637 = vld [vmem:[%s636] sm:$0xff]
  %v639 = vsel %vm81, %v637, 0
  %v642 = vsel %vm85, %v632, 0
  %v645 = vsel %vm85, %v633, 0
  %v648 = vsel %vm85, %v634, 0
  %v651 = vsel %vm85, %v635, 0
  %653 = vmatprep.subr.mxu0 %v645
  %654 = vmatpush1.msra.mxu0 %v642
  %655 = vmatprep.subr.mxu0 0.0
  %656 = vmatpush1.msra.mxu0 0.0
  %657 = vmatprep.subr.mxu0 0.0
  %658 = vmatpush1.msra.mxu0 0.0
  %659 = vmatprep.subr.mxu0 0.0
  %660 = vmatpush1.msra.mxu0 0.0
  %661 = vmatprep.subr.mxu0 0.0
  %662 = vmatpush1.msra.mxu0 0.0
  %663 = vmatprep.subr.mxu0 0.0
  %664 = vmatpush1.msra.mxu0 0.0
  %665 = vmatprep.subr.mxu0 0.0
  %666 = vmatpush1.msra.mxu0 0.0
  %667 = vmatprep.subr.mxu0 0.0
  %668 = vmatpush1.msra.mxu0 0.0
  %669 = vmatprep.subr.mxu0 0.0
  %670 = vmatpush1.msra.mxu0 0.0
  %671 = vmatprep.subr.mxu0 0.0
  %672 = vmatpush1.msra.mxu0 0.0
  %673 = vmatprep.subr.mxu0 0.0
  %674 = vmatpush1.msra.mxu0 0.0
  %675 = vmatprep.subr.mxu0 0.0
  %676 = vmatpush1.msra.mxu0 0.0
  %677 = vmatprep.subr.mxu0 0.0
  %678 = vmatpush1.msra.mxu0 0.0
  %679 = vmatprep.subr.mxu0 0.0
  %680 = vmatpush1.msra.mxu0 0.0
  %681 = vmatprep.subr.mxu0 0.0
  %682 = vmatpush1.msra.mxu0 0.0
  %683 = vmatprep.subr.mxu0 0.0
  %684 = vmatpush1.msra.mxu0 0.0
  %685 = vmatprep.subr.mxu0 0.0
  %686 = vmatpush1.msra.mxu0 0.0
  %687 = vmatprep.subr.mxu0 0.0
  %688 = vmatpush1.msra.mxu0 0.0
  %689 = vmatprep.subr.mxu0 0.0
  %690 = vmatpush1.msra.mxu0 0.0
  %691 = vmatprep.subr.mxu0 0.0
  %692 = vmatpush1.msra.mxu0 0.0
  %693 = vmatprep.subr.mxu0 0.0
  %694 = vmatpush1.msra.mxu0 0.0
  %695 = vmatprep.subr.mxu0 0.0
  %696 = vmatpush1.msra.mxu0 0.0
  %697 = vmatprep.subr.mxu0 0.0
  %698 = vmatpush1.msra.mxu0 0.0
  %699 = vmatprep.subr.mxu0 0.0
  %700 = vmatpush1.msra.mxu0 0.0
  %701 = vmatprep.subr.mxu0 0.0
  %702 = vmatpush1.msra.mxu0 0.0
  %703 = vmatprep.subr.mxu0 0.0
  %704 = vmatpush1.msra.mxu0 0.0
  %705 = vmatprep.subr.mxu0 0.0
  %706 = vmatpush1.msra.mxu0 0.0
  %707 = vmatprep.subr.mxu0 0.0
  %708 = vmatpush1.msra.mxu0 0.0
  %709 = vmatprep.subr.mxu0 0.0
  %710 = vmatpush1.msra.mxu0 0.0
  %711 = vmatprep.subr.mxu0 0.0
  %712 = vmatpush1.msra.mxu0 0.0
  %713 = vmatprep.subr.mxu0 0.0
  %714 = vmatpush1.msra.mxu0 0.0
  %715 = vmatprep.subr.mxu0 0.0
  %716 = vmatpush1.msra.mxu0 0.0
  %717 = vmatprep.mubr.f32.mxu0 0.0
  %718 = vmatmul.mubr.f32.gmra.mrb[0].mxu0 %v639
  %v719 = vpop.f32.mrb[0].mxu0
  %v720 = vadd.f32 0.0, %v719
  %v721 = vpop.f32.mrb[0].mxu0
  %v722 = vadd.f32 0.0, %v721
  %723 = vdwg.mxu0
  %724 = vmatprep.subr.mxu0 %v651
  %725 = vmatpush1.msra.mxu0 %v648
  %726 = vmatprep.subr.mxu0 0.0
  %727 = vmatpush1.msra.mxu0 0.0
  %728 = vmatprep.subr.mxu0 0.0
  %729 = vmatpush1.msra.mxu0 0.0
  %730 = vmatprep.subr.mxu0 0.0
  %731 = vmatpush1.msra.mxu0 0.0
  %732 = vmatprep.subr.mxu0 0.0
  %733 = vmatpush1.msra.mxu0 0.0
  %734 = vmatprep.subr.mxu0 0.0
  %735 = vmatpush1.msra.mxu0 0.0
  %736 = vmatprep.subr.mxu0 0.0
  %737 = vmatpush1.msra.mxu0 0.0
  %738 = vmatprep.subr.mxu0 0.0
  %739 = vmatpush1.msra.mxu0 0.0
  %740 = vmatprep.subr.mxu0 0.0
  %741 = vmatpush1.msra.mxu0 0.0
  %742 = vmatprep.subr.mxu0 0.0
  %743 = vmatpush1.msra.mxu0 0.0
  %744 = vmatprep.subr.mxu0 0.0
  %745 = vmatpush1.msra.mxu0 0.0
  %746 = vmatprep.subr.mxu0 0.0
  %747 = vmatpush1.msra.mxu0 0.0
  %748 = vmatprep.subr.mxu0 0.0
  %749 = vmatpush1.msra.mxu0 0.0
  %750 = vmatprep.subr.mxu0 0.0
  %751 = vmatpush1.msra.mxu0 0.0
  %752 = vmatprep.subr.mxu0 0.0
  %753 = vmatpush1.msra.mxu0 0.0
  %754 = vmatprep.subr.mxu0 0.0
  %755 = vmatpush1.msra.mxu0 0.0
  %756 = vmatprep.subr.mxu0 0.0
  %757 = vmatpush1.msra.mxu0 0.0
  %758 = vmatprep.subr.mxu0 0.0
  %759 = vmatpush1.msra.mxu0 0.0
  %760 = vmatprep.subr.mxu0 0.0
  %761 = vmatpush1.msra.mxu0 0.0
  %762 = vmatprep.subr.mxu0 0.0
  %763 = vmatpush1.msra.mxu0 0.0
  %764 = vmatprep.subr.mxu0 0.0
  %765 = vmatpush1.msra.mxu0 0.0
  %766 = vmatprep.subr.mxu0 0.0
  %767 = vmatpush1.msra.mxu0 0.0
  %768 = vmatprep.subr.mxu0 0.0
  %769 = vmatpush1.msra.mxu0 0.0
  %770 = vmatprep.subr.mxu0 0.0
  %771 = vmatpush1.msra.mxu0 0.0
  %772 = vmatprep.subr.mxu0 0.0
  %773 = vmatpush1.msra.mxu0 0.0
  %774 = vmatprep.subr.mxu0 0.0
  %775 = vmatpush1.msra.mxu0 0.0
  %776 = vmatprep.subr.mxu0 0.0
  %777 = vmatpush1.msra.mxu0 0.0
  %778 = vmatprep.subr.mxu0 0.0
  %779 = vmatpush1.msra.mxu0 0.0
  %780 = vmatprep.subr.mxu0 0.0
  %781 = vmatpush1.msra.mxu0 0.0
  %782 = vmatprep.subr.mxu0 0.0
  %783 = vmatpush1.msra.mxu0 0.0
  %784 = vmatprep.subr.mxu0 0.0
  %785 = vmatpush1.msra.mxu0 0.0
  %786 = vmatprep.subr.mxu0 0.0
  %787 = vmatpush1.msra.mxu0 0.0
  %788 = vmatprep.mubr.f32.mxu0 0.0
  %789 = vmatmul.mubr.f32.gmra.mrb[0].mxu0 %v639
  %v790 = vpop.f32.mrb[0].mxu0
  %v791 = vadd.f32 0.0, %v790
  %v792 = vpop.f32.mrb[0].mxu0
  %v793 = vadd.f32 0.0, %v792
  %794 = vdwg.mxu0
  %v795 = vadd.f32 %v592, %v720
  %v796 = vadd.f32 %v593, %v722
  %v797 = vadd.f32 %v594, %v791
  %v798 = vadd.f32 %v595, %v793
  %799 = vrot.lane.b32.xlu0 %v29, 1
  %v800 = vpop.permute.xlu0 %799
  %801 = vrot.lane.b32.xlu0 %v35, 1
  %v802 = vpop.permute.xlu0 %801
  %803 = vrot.lane.b32.xlu0 %v30, 1
  %v804 = vpop.permute.xlu0 %803
  %805 = vrot.lane.b32.xlu0 %v36, 1
  %v806 = vpop.permute.xlu0 %805
  %vm807 = vcmp.lt.s32.totalorder %v48, 1
  %v808 = vsel %vm807, %v804, %v806
  %v809 = vsel %vm807, %v802, %v804
  %v810 = vsel %vm807, %v800, %v802
  %v811 = vsel %vm807, %v806, %v800
  %s812 = scalar_lea.vmem %s7, 12
  %v813 = vld [vmem:[%s812] sm:$0xf]
  %v815 = vlaneseq
  %v816 = vshrl.u32 %v815, 7
  %v817 = vsub.s32 0, %v816
  %v818 = vrot.slane %v813, %v817
  %v819 = vlaneseq
  %v820 = vshrl.u32 %v819, 7
  %v821 = vsub.s32 1, %v820
  %v822 = vrot.slane %v813, %v821
  %v823 = vlaneseq
  %v824 = vshrl.u32 %v823, 7
  %v825 = vsub.s32 2, %v824
  %v826 = vrot.slane %v813, %v825
  %v827 = vlaneseq
  %v828 = vshrl.u32 %v827, 7
  %v829 = vsub.s32 3, %v828
  %v830 = vrot.slane %v813, %v829
  %v835 = vmul.f32 %v811, %v818
  %v836 = vmul.f32 %v810, %v822
  %v837 = vmul.f32 %v809, %v826
  %v838 = vmul.f32 %v808, %v830
  %s839 = scalar_lea.vmem %s1, 24
  %v840 = vld [vmem:[%s839] sm:$0xff]
  %v842 = vsel %vm81, %v840, 0
  %v845 = vsel %vm85, %v835, 0
  %v848 = vsel %vm85, %v836, 0
  %v851 = vsel %vm85, %v837, 0
  %v854 = vsel %vm85, %v838, 0
  %856 = vmatprep.subr.mxu0 %v848
  %857 = vmatpush1.msra.mxu0 %v845
  %858 = vmatprep.subr.mxu0 0.0
  %859 = vmatpush1.msra.mxu0 0.0
  %860 = vmatprep.subr.mxu0 0.0
  %861 = vmatpush1.msra.mxu0 0.0
  %862 = vmatprep.subr.mxu0 0.0
  %863 = vmatpush1.msra.mxu0 0.0
  %864 = vmatprep.subr.mxu0 0.0
  %865 = vmatpush1.msra.mxu0 0.0
  %866 = vmatprep.subr.mxu0 0.0
  %867 = vmatpush1.msra.mxu0 0.0
  %868 = vmatprep.subr.mxu0 0.0
  %869 = vmatpush1.msra.mxu0 0.0
  %870 = vmatprep.subr.mxu0 0.0
  %871 = vmatpush1.msra.mxu0 0.0
  %872 = vmatprep.subr.mxu0 0.0
  %873 = vmatpush1.msra.mxu0 0.0
  %874 = vmatprep.subr.mxu0 0.0
  %875 = vmatpush1.msra.mxu0 0.0
  %876 = vmatprep.subr.mxu0 0.0
  %877 = vmatpush1.msra.mxu0 0.0
  %878 = vmatprep.subr.mxu0 0.0
  %879 = vmatpush1.msra.mxu0 0.0
  %880 = vmatprep.subr.mxu0 0.0
  %881 = vmatpush1.msra.mxu0 0.0
  %882 = vmatprep.subr.mxu0 0.0
  %883 = vmatpush1.msra.mxu0 0.0
  %884 = vmatprep.subr.mxu0 0.0
  %885 = vmatpush1.msra.mxu0 0.0
  %886 = vmatprep.subr.mxu0 0.0
  %887 = vmatpush1.msra.mxu0 0.0
  %888 = vmatprep.subr.mxu0 0.0
  %889 = vmatpush1.msra.mxu0 0.0
  %890 = vmatprep.subr.mxu0 0.0
  %891 = vmatpush1.msra.mxu0 0.0
  %892 = vmatprep.subr.mxu0 0.0
  %893 = vmatpush1.msra.mxu0 0.0
  %894 = vmatprep.subr.mxu0 0.0
  %895 = vmatpush1.msra.mxu0 0.0
  %896 = vmatprep.subr.mxu0 0.0
  %897 = vmatpush1.msra.mxu0 0.0
  %898 = vmatprep.subr.mxu0 0.0
  %899 = vmatpush1.msra.mxu0 0.0
  %900 = vmatprep.subr.mxu0 0.0
  %901 = vmatpush1.msra.mxu0 0.0
  %902 = vmatprep.subr.mxu0 0.0
  %903 = vmatpush1.msra.mxu0 0.0
  %904 = vmatprep.subr.mxu0 0.0
  %905 = vmatpush1.msra.mxu0 0.0
  %906 = vmatprep.subr.mxu0 0.0
  %907 = vmatpush1.msra.mxu0 0.0
  %908 = vmatprep.subr.mxu0 0.0
  %909 = vmatpush1.msra.mxu0 0.0
  %910 = vmatprep.subr.mxu0 0.0
  %911 = vmatpush1.msra.mxu0 0.0
  %912 = vmatprep.subr.mxu0 0.0
  %913 = vmatpush1.msra.mxu0 0.0
  %914 = vmatprep.subr.mxu0 0.0
  %915 = vmatpush1.msra.mxu0 0.0
  %916 = vmatprep.subr.mxu0 0.0
  %917 = vmatpush1.msra.mxu0 0.0
  %918 = vmatprep.subr.mxu0 0.0
  %919 = vmatpush1.msra.mxu0 0.0
  %920 = vmatprep.mubr.f32.mxu0 0.0
  %921 = vmatmul.mubr.f32.gmra.mrb[0].mxu0 %v842
  %v922 = vpop.f32.mrb[0].mxu0
  %v923 = vadd.f32 0.0, %v922
  %v924 = vpop.f32.mrb[0].mxu0
  %v925 = vadd.f32 0.0, %v924
  %926 = vdwg.mxu0
  %927 = vmatprep.subr.mxu0 %v854
  %928 = vmatpush1.msra.mxu0 %v851
  %929 = vmatprep.subr.mxu0 0.0
  %930 = vmatpush1.msra.mxu0 0.0
  %931 = vmatprep.subr.mxu0 0.0
  %932 = vmatpush1.msra.mxu0 0.0
  %933 = vmatprep.subr.mxu0 0.0
  %934 = vmatpush1.msra.mxu0 0.0
  %935 = vmatprep.subr.mxu0 0.0
  %936 = vmatpush1.msra.mxu0 0.0
  %937 = vmatprep.subr.mxu0 0.0
  %938 = vmatpush1.msra.mxu0 0.0
  %939 = vmatprep.subr.mxu0 0.0
  %940 = vmatpush1.msra.mxu0 0.0
  %941 = vmatprep.subr.mxu0 0.0
  %942 = vmatpush1.msra.mxu0 0.0
  %943 = vmatprep.subr.mxu0 0.0
  %944 = vmatpush1.msra.mxu0 0.0
  %945 = vmatprep.subr.mxu0 0.0
  %946 = vmatpush1.msra.mxu0 0.0
  %947 = vmatprep.subr.mxu0 0.0
  %948 = vmatpush1.msra.mxu0 0.0
  %949 = vmatprep.subr.mxu0 0.0
  %950 = vmatpush1.msra.mxu0 0.0
  %951 = vmatprep.subr.mxu0 0.0
  %952 = vmatpush1.msra.mxu0 0.0
  %953 = vmatprep.subr.mxu0 0.0
  %954 = vmatpush1.msra.mxu0 0.0
  %955 = vmatprep.subr.mxu0 0.0
  %956 = vmatpush1.msra.mxu0 0.0
  %957 = vmatprep.subr.mxu0 0.0
  %958 = vmatpush1.msra.mxu0 0.0
  %959 = vmatprep.subr.mxu0 0.0
  %960 = vmatpush1.msra.mxu0 0.0
  %961 = vmatprep.subr.mxu0 0.0
  %962 = vmatpush1.msra.mxu0 0.0
  %963 = vmatprep.subr.mxu0 0.0
  %964 = vmatpush1.msra.mxu0 0.0
  %965 = vmatprep.subr.mxu0 0.0
  %966 = vmatpush1.msra.mxu0 0.0
  %967 = vmatprep.subr.mxu0 0.0
  %968 = vmatpush1.msra.mxu0 0.0
  %969 = vmatprep.subr.mxu0 0.0
  %970 = vmatpush1.msra.mxu0 0.0
  %971 = vmatprep.subr.mxu0 0.0
  %972 = vmatpush1.msra.mxu0 0.0
  %973 = vmatprep.subr.mxu0 0.0
  %974 = vmatpush1.msra.mxu0 0.0
  %975 = vmatprep.subr.mxu0 0.0
  %976 = vmatpush1.msra.mxu0 0.0
  %977 = vmatprep.subr.mxu0 0.0
  %978 = vmatpush1.msra.mxu0 0.0
  %979 = vmatprep.subr.mxu0 0.0
  %980 = vmatpush1.msra.mxu0 0.0
  %981 = vmatprep.subr.mxu0 0.0
  %982 = vmatpush1.msra.mxu0 0.0
  %983 = vmatprep.subr.mxu0 0.0
  %984 = vmatpush1.msra.mxu0 0.0
  %985 = vmatprep.subr.mxu0 0.0
  %986 = vmatpush1.msra.mxu0 0.0
  %987 = vmatprep.subr.mxu0 0.0
  %988 = vmatpush1.msra.mxu0 0.0
  %989 = vmatprep.subr.mxu0 0.0
  %990 = vmatpush1.msra.mxu0 0.0
  %991 = vmatprep.mubr.f32.mxu0 0.0
  %992 = vmatmul.mubr.f32.gmra.mrb[0].mxu0 %v842
  %v993 = vpop.f32.mrb[0].mxu0
  %v994 = vadd.f32 0.0, %v993
  %v995 = vpop.f32.mrb[0].mxu0
  %v996 = vadd.f32 0.0, %v995
  %997 = vdwg.mxu0
  %v998 = vadd.f32 %v795, %v923
  %v999 = vadd.f32 %v796, %v925
  %v1000 = vadd.f32 %v797, %v994
  %v1001 = vadd.f32 %v798, %v996
  %1002 = vrot.lane.b32.xlu0 %v29, 127
  %v1003 = vpop.permute.xlu0 %1002
  %1004 = vrot.lane.b32.xlu0 %v35, 127
  %v1005 = vpop.permute.xlu0 %1004
  %1006 = vrot.lane.b32.xlu0 %v30, 127
  %v1007 = vpop.permute.xlu0 %1006
  %1008 = vrot.lane.b32.xlu0 %v36, 127
  %v1009 = vpop.permute.xlu0 %1008
  %vm1010 = vcmp.lt.s32.totalorder %v48, 127
  %v1011 = vsel %vm1010, %v1007, %v1009
  %v1012 = vsel %vm1010, %v1005, %v1007
  %v1013 = vsel %vm1010, %v1003, %v1005
  %v1014 = vsel %vm1010, %v1009, %v1003
  %s1015 = scalar_lea.vmem %s7, 20
  %v1016 = vld [vmem:[%s1015] sm:$0xf]
  %v1018 = vlaneseq
  %v1019 = vshrl.u32 %v1018, 7
  %v1020 = vsub.s32 0, %v1019
  %v1021 = vrot.slane %v1016, %v1020
  %v1022 = vlaneseq
  %v1023 = vshrl.u32 %v1022, 7
  %v1024 = vsub.s32 1, %v1023
  %v1025 = vrot.slane %v1016, %v1024
  %v1026 = vlaneseq
  %v1027 = vshrl.u32 %v1026, 7
  %v1028 = vsub.s32 2, %v1027
  %v1029 = vrot.slane %v1016, %v1028
  %v1030 = vlaneseq
  %v1031 = vshrl.u32 %v1030, 7
  %v1032 = vsub.s32 3, %v1031
  %v1033 = vrot.slane %v1016, %v1032
  %v1038 = vmul.f32 %v1013, %v1021
  %v1039 = vmul.f32 %v1012, %v1025
  %v1040 = vmul.f32 %v1011, %v1029
  %v1041 = vmul.f32 %v1014, %v1033
  %s1042 = scalar_lea.vmem %s1, 40
  %v1043 = vld [vmem:[%s1042] sm:$0xff]
  %v1045 = vsel %vm81, %v1043, 0
  %v1048 = vsel %vm85, %v1038, 0
  %v1051 = vsel %vm85, %v1039, 0
  %v1054 = vsel %vm85, %v1040, 0
  %v1057 = vsel %vm85, %v1041, 0
  %1059 = vmatprep.subr.mxu0 %v1051
  %1060 = vmatpush1.msra.mxu0 %v1048
  %1061 = vmatprep.subr.mxu0 0.0
  %1062 = vmatpush1.msra.mxu0 0.0
  %1063 = vmatprep.subr.mxu0 0.0
  %1064 = vmatpush1.msra.mxu0 0.0
  %1065 = vmatprep.subr.mxu0 0.0
  %1066 = vmatpush1.msra.mxu0 0.0
  %1067 = vmatprep.subr.mxu0 0.0
  %1068 = vmatpush1.msra.mxu0 0.0
  %1069 = vmatprep.subr.mxu0 0.0
  %1070 = vmatpush1.msra.mxu0 0.0
  %1071 = vmatprep.subr.mxu0 0.0
  %1072 = vmatpush1.msra.mxu0 0.0
  %1073 = vmatprep.subr.mxu0 0.0
  %1074 = vmatpush1.msra.mxu0 0.0
  %1075 = vmatprep.subr.mxu0 0.0
  %1076 = vmatpush1.msra.mxu0 0.0
  %1077 = vmatprep.subr.mxu0 0.0
  %1078 = vmatpush1.msra.mxu0 0.0
  %1079 = vmatprep.subr.mxu0 0.0
  %1080 = vmatpush1.msra.mxu0 0.0
  %1081 = vmatprep.subr.mxu0 0.0
  %1082 = vmatpush1.msra.mxu0 0.0
  %1083 = vmatprep.subr.mxu0 0.0
  %1084 = vmatpush1.msra.mxu0 0.0
  %1085 = vmatprep.subr.mxu0 0.0
  %1086 = vmatpush1.msra.mxu0 0.0
  %1087 = vmatprep.subr.mxu0 0.0
  %1088 = vmatpush1.msra.mxu0 0.0
  %1089 = vmatprep.subr.mxu0 0.0
  %1090 = vmatpush1.msra.mxu0 0.0
  %1091 = vmatprep.subr.mxu0 0.0
  %1092 = vmatpush1.msra.mxu0 0.0
  %1093 = vmatprep.subr.mxu0 0.0
  %1094 = vmatpush1.msra.mxu0 0.0
  %1095 = vmatprep.subr.mxu0 0.0
  %1096 = vmatpush1.msra.mxu0 0.0
  %1097 = vmatprep.subr.mxu0 0.0
  %1098 = vmatpush1.msra.mxu0 0.0
  %1099 = vmatprep.subr.mxu0 0.0
  %1100 = vmatpush1.msra.mxu0 0.0
  %1101 = vmatprep.subr.mxu0 0.0
  %1102 = vmatpush1.msra.mxu0 0.0
  %1103 = vmatprep.subr.mxu0 0.0
  %1104 = vmatpush1.msra.mxu0 0.0
  %1105 = vmatprep.subr.mxu0 0.0
  %1106 = vmatpush1.msra.mxu0 0.0
  %1107 = vmatprep.subr.mxu0 0.0
  %1108 = vmatpush1.msra.mxu0 0.0
  %1109 = vmatprep.subr.mxu0 0.0
  %1110 = vmatpush1.msra.mxu0 0.0
  %1111 = vmatprep.subr.mxu0 0.0
  %1112 = vmatpush1.msra.mxu0 0.0
  %1113 = vmatprep.subr.mxu0 0.0
  %1114 = vmatpush1.msra.mxu0 0.0
  %1115 = vmatprep.subr.mxu0 0.0
  %1116 = vmatpush1.msra.mxu0 0.0
  %1117 = vmatprep.subr.mxu0 0.0
  %1118 = vmatpush1.msra.mxu0 0.0
  %1119 = vmatprep.subr.mxu0 0.0
  %1120 = vmatpush1.msra.mxu0 0.0
  %1121 = vmatprep.subr.mxu0 0.0
  %1122 = vmatpush1.msra.mxu0 0.0
  %1123 = vmatprep.mubr.f32.mxu0 0.0
  %1124 = vmatmul.mubr.f32.gmra.mrb[0].mxu0 %v1045
  %v1125 = vpop.f32.mrb[0].mxu0
  %v1126 = vadd.f32 0.0, %v1125
  %v1127 = vpop.f32.mrb[0].mxu0
  %v1128 = vadd.f32 0.0, %v1127
  %1129 = vdwg.mxu0
  %1130 = vmatprep.subr.mxu0 %v1057
  %1131 = vmatpush1.msra.mxu0 %v1054
  %1132 = vmatprep.subr.mxu0 0.0
  %1133 = vmatpush1.msra.mxu0 0.0
  %1134 = vmatprep.subr.mxu0 0.0
  %1135 = vmatpush1.msra.mxu0 0.0
  %1136 = vmatprep.subr.mxu0 0.0
  %1137 = vmatpush1.msra.mxu0 0.0
  %1138 = vmatprep.subr.mxu0 0.0
  %1139 = vmatpush1.msra.mxu0 0.0
  %1140 = vmatprep.subr.mxu0 0.0
  %1141 = vmatpush1.msra.mxu0 0.0
  %1142 = vmatprep.subr.mxu0 0.0
  %1143 = vmatpush1.msra.mxu0 0.0
  %1144 = vmatprep.subr.mxu0 0.0
  %1145 = vmatpush1.msra.mxu0 0.0
  %1146 = vmatprep.subr.mxu0 0.0
  %1147 = vmatpush1.msra.mxu0 0.0
  %1148 = vmatprep.subr.mxu0 0.0
  %1149 = vmatpush1.msra.mxu0 0.0
  %1150 = vmatprep.subr.mxu0 0.0
  %1151 = vmatpush1.msra.mxu0 0.0
  %1152 = vmatprep.subr.mxu0 0.0
  %1153 = vmatpush1.msra.mxu0 0.0
  %1154 = vmatprep.subr.mxu0 0.0
  %1155 = vmatpush1.msra.mxu0 0.0
  %1156 = vmatprep.subr.mxu0 0.0
  %1157 = vmatpush1.msra.mxu0 0.0
  %1158 = vmatprep.subr.mxu0 0.0
  %1159 = vmatpush1.msra.mxu0 0.0
  %1160 = vmatprep.subr.mxu0 0.0
  %1161 = vmatpush1.msra.mxu0 0.0
  %1162 = vmatprep.subr.mxu0 0.0
  %1163 = vmatpush1.msra.mxu0 0.0
  %1164 = vmatprep.subr.mxu0 0.0
  %1165 = vmatpush1.msra.mxu0 0.0
  %1166 = vmatprep.subr.mxu0 0.0
  %1167 = vmatpush1.msra.mxu0 0.0
  %1168 = vmatprep.subr.mxu0 0.0
  %1169 = vmatpush1.msra.mxu0 0.0
  %1170 = vmatprep.subr.mxu0 0.0
  %1171 = vmatpush1.msra.mxu0 0.0
  %1172 = vmatprep.subr.mxu0 0.0
  %1173 = vmatpush1.msra.mxu0 0.0
  %1174 = vmatprep.subr.mxu0 0.0
  %1175 = vmatpush1.msra.mxu0 0.0
  %1176 = vmatprep.subr.mxu0 0.0
  %1177 = vmatpush1.msra.mxu0 0.0
  %1178 = vmatprep.subr.mxu0 0.0
  %1179 = vmatpush1.msra.mxu0 0.0
  %1180 = vmatprep.subr.mxu0 0.0
  %1181 = vmatpush1.msra.mxu0 0.0
  %1182 = vmatprep.subr.mxu0 0.0
  %1183 = vmatpush1.msra.mxu0 0.0
  %1184 = vmatprep.subr.mxu0 0.0
  %1185 = vmatpush1.msra.mxu0 0.0
  %1186 = vmatprep.subr.mxu0 0.0
  %1187 = vmatpush1.msra.mxu0 0.0
  %1188 = vmatprep.subr.mxu0 0.0
  %1189 = vmatpush1.msra.mxu0 0.0
  %1190 = vmatprep.subr.mxu0 0.0
  %1191 = vmatpush1.msra.mxu0 0.0
  %1192 = vmatprep.subr.mxu0 0.0
  %1193 = vmatpush1.msra.mxu0 0.0
  %1194 = vmatprep.mubr.f32.mxu0 0.0
  %1195 = vmatmul.mubr.f32.gmra.mrb[0].mxu0 %v1045
  %v1196 = vpop.f32.mrb[0].mxu0
  %v1197 = vadd.f32 0.0, %v1196
  %v1198 = vpop.f32.mrb[0].mxu0
  %v1199 = vadd.f32 0.0, %v1198
  %1200 = vdwg.mxu0
  %v1201 = vadd.f32 %v998, %v1126
  %v1202 = vadd.f32 %v999, %v1128
  %v1203 = vadd.f32 %v1000, %v1197
  %v1204 = vadd.f32 %v1001, %v1199
  %1205 = vrot.lane.b32.xlu0 %v29, 113
  %v1206 = vpop.permute.xlu0 %1205
  %1207 = vrot.lane.b32.xlu0 %v35, 113
  %v1208 = vpop.permute.xlu0 %1207
  %1209 = vrot.lane.b32.xlu0 %v30, 113
  %v1210 = vpop.permute.xlu0 %1209
  %1211 = vrot.lane.b32.xlu0 %v36, 113
  %v1212 = vpop.permute.xlu0 %1211
  %vm1213 = vcmp.lt.s32.totalorder %v48, 113
  %v1214 = vsel %vm1213, %v1210, %v1212
  %v1215 = vsel %vm1213, %v1208, %v1210
  %v1216 = vsel %vm1213, %v1206, %v1208
  %v1217 = vsel %vm1213, %v1212, %v1206
  %s1218 = scalar_lea.vmem %s7, 24
  %v1219 = vld [vmem:[%s1218] sm:$0xf]
  %v1221 = vlaneseq
  %v1222 = vshrl.u32 %v1221, 7
  %v1223 = vsub.s32 0, %v1222
  %v1224 = vrot.slane %v1219, %v1223
  %v1225 = vlaneseq
  %v1226 = vshrl.u32 %v1225, 7
  %v1227 = vsub.s32 1, %v1226
  %v1228 = vrot.slane %v1219, %v1227
  %v1229 = vlaneseq
  %v1230 = vshrl.u32 %v1229, 7
  %v1231 = vsub.s32 2, %v1230
  %v1232 = vrot.slane %v1219, %v1231
  %v1233 = vlaneseq
  %v1234 = vshrl.u32 %v1233, 7
  %v1235 = vsub.s32 3, %v1234
  %v1236 = vrot.slane %v1219, %v1235
  %v1241 = vmul.f32 %v1216, %v1224
  %v1242 = vmul.f32 %v1215, %v1228
  %v1243 = vmul.f32 %v1214, %v1232
  %v1244 = vmul.f32 %v1217, %v1236
  %s1245 = scalar_lea.vmem %s1, 48
  %v1246 = vld [vmem:[%s1245] sm:$0xff]
  %v1248 = vsel %vm81, %v1246, 0
  %v1251 = vsel %vm85, %v1241, 0
  %v1254 = vsel %vm85, %v1242, 0
  %v1257 = vsel %vm85, %v1243, 0
  %v1260 = vsel %vm85, %v1244, 0
  %1262 = vmatprep.subr.mxu0 %v1254
  %1263 = vmatpush1.msra.mxu0 %v1251
  %1264 = vmatprep.subr.mxu0 0.0
  %1265 = vmatpush1.msra.mxu0 0.0
  %1266 = vmatprep.subr.mxu0 0.0
  %1267 = vmatpush1.msra.mxu0 0.0
  %1268 = vmatprep.subr.mxu0 0.0
  %1269 = vmatpush1.msra.mxu0 0.0
  %1270 = vmatprep.subr.mxu0 0.0
  %1271 = vmatpush1.msra.mxu0 0.0
  %1272 = vmatprep.subr.mxu0 0.0
  %1273 = vmatpush1.msra.mxu0 0.0
  %1274 = vmatprep.subr.mxu0 0.0
  %1275 = vmatpush1.msra.mxu0 0.0
  %1276 = vmatprep.subr.mxu0 0.0
  %1277 = vmatpush1.msra.mxu0 0.0
  %1278 = vmatprep.subr.mxu0 0.0
  %1279 = vmatpush1.msra.mxu0 0.0
  %1280 = vmatprep.subr.mxu0 0.0
  %1281 = vmatpush1.msra.mxu0 0.0
  %1282 = vmatprep.subr.mxu0 0.0
  %1283 = vmatpush1.msra.mxu0 0.0
  %1284 = vmatprep.subr.mxu0 0.0
  %1285 = vmatpush1.msra.mxu0 0.0
  %1286 = vmatprep.subr.mxu0 0.0
  %1287 = vmatpush1.msra.mxu0 0.0
  %1288 = vmatprep.subr.mxu0 0.0
  %1289 = vmatpush1.msra.mxu0 0.0
  %1290 = vmatprep.subr.mxu0 0.0
  %1291 = vmatpush1.msra.mxu0 0.0
  %1292 = vmatprep.subr.mxu0 0.0
  %1293 = vmatpush1.msra.mxu0 0.0
  %1294 = vmatprep.subr.mxu0 0.0
  %1295 = vmatpush1.msra.mxu0 0.0
  %1296 = vmatprep.subr.mxu0 0.0
  %1297 = vmatpush1.msra.mxu0 0.0
  %1298 = vmatprep.subr.mxu0 0.0
  %1299 = vmatpush1.msra.mxu0 0.0
  %1300 = vmatprep.subr.mxu0 0.0
  %1301 = vmatpush1.msra.mxu0 0.0
  %1302 = vmatprep.subr.mxu0 0.0
  %1303 = vmatpush1.msra.mxu0 0.0
  %1304 = vmatprep.subr.mxu0 0.0
  %1305 = vmatpush1.msra.mxu0 0.0
  %1306 = vmatprep.subr.mxu0 0.0
  %1307 = vmatpush1.msra.mxu0 0.0
  %1308 = vmatprep.subr.mxu0 0.0
  %1309 = vmatpush1.msra.mxu0 0.0
  %1310 = vmatprep.subr.mxu0 0.0
  %1311 = vmatpush1.msra.mxu0 0.0
  %1312 = vmatprep.subr.mxu0 0.0
  %1313 = vmatpush1.msra.mxu0 0.0
  %1314 = vmatprep.subr.mxu0 0.0
  %1315 = vmatpush1.msra.mxu0 0.0
  %1316 = vmatprep.subr.mxu0 0.0
  %1317 = vmatpush1.msra.mxu0 0.0
  %1318 = vmatprep.subr.mxu0 0.0
  %1319 = vmatpush1.msra.mxu0 0.0
  %1320 = vmatprep.subr.mxu0 0.0
  %1321 = vmatpush1.msra.mxu0 0.0
  %1322 = vmatprep.subr.mxu0 0.0
  %1323 = vmatpush1.msra.mxu0 0.0
  %1324 = vmatprep.subr.mxu0 0.0
  %1325 = vmatpush1.msra.mxu0 0.0
  %1326 = vmatprep.mubr.f32.mxu0 0.0
  %1327 = vmatmul.mubr.f32.gmra.mrb[0].mxu0 %v1248
  %v1328 = vpop.f32.mrb[0].mxu0
  %v1329 = vadd.f32 0.0, %v1328
  %v1330 = vpop.f32.mrb[0].mxu0
  %v1331 = vadd.f32 0.0, %v1330
  %1332 = vdwg.mxu0
  %1333 = vmatprep.subr.mxu0 %v1260
  %1334 = vmatpush1.msra.mxu0 %v1257
  %1335 = vmatprep.subr.mxu0 0.0
  %1336 = vmatpush1.msra.mxu0 0.0
  %1337 = vmatprep.subr.mxu0 0.0
  %1338 = vmatpush1.msra.mxu0 0.0
  %1339 = vmatprep.subr.mxu0 0.0
  %1340 = vmatpush1.msra.mxu0 0.0
  %1341 = vmatprep.subr.mxu0 0.0
  %1342 = vmatpush1.msra.mxu0 0.0
  %1343 = vmatprep.subr.mxu0 0.0
  %1344 = vmatpush1.msra.mxu0 0.0
  %1345 = vmatprep.subr.mxu0 0.0
  %1346 = vmatpush1.msra.mxu0 0.0
  %1347 = vmatprep.subr.mxu0 0.0
  %1348 = vmatpush1.msra.mxu0 0.0
  %1349 = vmatprep.subr.mxu0 0.0
  %1350 = vmatpush1.msra.mxu0 0.0
  %1351 = vmatprep.subr.mxu0 0.0
  %1352 = vmatpush1.msra.mxu0 0.0
  %1353 = vmatprep.subr.mxu0 0.0
  %1354 = vmatpush1.msra.mxu0 0.0
  %1355 = vmatprep.subr.mxu0 0.0
  %1356 = vmatpush1.msra.mxu0 0.0
  %1357 = vmatprep.subr.mxu0 0.0
  %1358 = vmatpush1.msra.mxu0 0.0
  %1359 = vmatprep.subr.mxu0 0.0
  %1360 = vmatpush1.msra.mxu0 0.0
  %1361 = vmatprep.subr.mxu0 0.0
  %1362 = vmatpush1.msra.mxu0 0.0
  %1363 = vmatprep.subr.mxu0 0.0
  %1364 = vmatpush1.msra.mxu0 0.0
  %1365 = vmatprep.subr.mxu0 0.0
  %1366 = vmatpush1.msra.mxu0 0.0
  %1367 = vmatprep.subr.mxu0 0.0
  %1368 = vmatpush1.msra.mxu0 0.0
  %1369 = vmatprep.subr.mxu0 0.0
  %1370 = vmatpush1.msra.mxu0 0.0
  %1371 = vmatprep.subr.mxu0 0.0
  %1372 = vmatpush1.msra.mxu0 0.0
  %1373 = vmatprep.subr.mxu0 0.0
  %1374 = vmatpush1.msra.mxu0 0.0
  %1375 = vmatprep.subr.mxu0 0.0
  %1376 = vmatpush1.msra.mxu0 0.0
  %1377 = vmatprep.subr.mxu0 0.0
  %1378 = vmatpush1.msra.mxu0 0.0
  %1379 = vmatprep.subr.mxu0 0.0
  %1380 = vmatpush1.msra.mxu0 0.0
  %1381 = vmatprep.subr.mxu0 0.0
  %1382 = vmatpush1.msra.mxu0 0.0
  %1383 = vmatprep.subr.mxu0 0.0
  %1384 = vmatpush1.msra.mxu0 0.0
  %1385 = vmatprep.subr.mxu0 0.0
  %1386 = vmatpush1.msra.mxu0 0.0
  %1387 = vmatprep.subr.mxu0 0.0
  %1388 = vmatpush1.msra.mxu0 0.0
  %1389 = vmatprep.subr.mxu0 0.0
  %1390 = vmatpush1.msra.mxu0 0.0
  %1391 = vmatprep.subr.mxu0 0.0
  %1392 = vmatpush1.msra.mxu0 0.0
  %1393 = vmatprep.subr.mxu0 0.0
  %1394 = vmatpush1.msra.mxu0 0.0
  %1395 = vmatprep.subr.mxu0 0.0
  %1396 = vmatpush1.msra.mxu0 0.0
  %1397 = vmatprep.mubr.f32.mxu0 0.0
  %1398 = vmatmul.mubr.f32.gmra.mrb[0].mxu0 %v1248
  %v1399 = vpop.f32.mrb[0].mxu0
  %v1400 = vadd.f32 0.0, %v1399
  %v1401 = vpop.f32.mrb[0].mxu0
  %v1402 = vadd.f32 0.0, %v1401
  %1403 = vdwg.mxu0
  %v1404 = vadd.f32 %v1201, %v1329
  %v1405 = vadd.f32 %v1202, %v1331
  %v1406 = vadd.f32 %v1203, %v1400
  %v1407 = vadd.f32 %v1204, %v1402
  %1408 = vrot.lane.b32.xlu0 %v29, 112
  %v1409 = vpop.permute.xlu0 %1408
  %1410 = vrot.lane.b32.xlu0 %v35, 112
  %v1411 = vpop.permute.xlu0 %1410
  %1412 = vrot.lane.b32.xlu0 %v30, 112
  %v1413 = vpop.permute.xlu0 %1412
  %1414 = vrot.lane.b32.xlu0 %v36, 112
  %v1415 = vpop.permute.xlu0 %1414
  %vm1416 = vcmp.lt.s32.totalorder %v48, 112
  %v1417 = vsel %vm1416, %v1413, %v1415
  %v1418 = vsel %vm1416, %v1411, %v1413
  %v1419 = vsel %vm1416, %v1409, %v1411
  %v1420 = vsel %vm1416, %v1415, %v1409
  %s1421 = scalar_lea.vmem %s7, 28
  %v1422 = vld [vmem:[%s1421] sm:$0xf]
  %v1424 = vlaneseq
  %v1425 = vshrl.u32 %v1424, 7
  %v1426 = vsub.s32 0, %v1425
  %v1427 = vrot.slane %v1422, %v1426
  %v1428 = vlaneseq
  %v1429 = vshrl.u32 %v1428, 7
  %v1430 = vsub.s32 1, %v1429
  %v1431 = vrot.slane %v1422, %v1430
  %v1432 = vlaneseq
  %v1433 = vshrl.u32 %v1432, 7
  %v1434 = vsub.s32 2, %v1433
  %v1435 = vrot.slane %v1422, %v1434
  %v1436 = vlaneseq
  %v1437 = vshrl.u32 %v1436, 7
  %v1438 = vsub.s32 3, %v1437
  %v1439 = vrot.slane %v1422, %v1438
  %v1444 = vmul.f32 %v1419, %v1427
  %v1445 = vmul.f32 %v1418, %v1431
  %v1446 = vmul.f32 %v1417, %v1435
  %v1447 = vmul.f32 %v1420, %v1439
  %s1448 = scalar_lea.vmem %s1, 56
  %v1449 = vld [vmem:[%s1448] sm:$0xff]
  %v1451 = vsel %vm81, %v1449, 0
  %v1454 = vsel %vm85, %v1444, 0
  %v1457 = vsel %vm85, %v1445, 0
  %v1460 = vsel %vm85, %v1446, 0
  %v1463 = vsel %vm85, %v1447, 0
  %1465 = vmatprep.subr.mxu0 %v1457
  %1466 = vmatpush1.msra.mxu0 %v1454
  %1467 = vmatprep.subr.mxu0 0.0
  %1468 = vmatpush1.msra.mxu0 0.0
  %1469 = vmatprep.subr.mxu0 0.0
  %1470 = vmatpush1.msra.mxu0 0.0
  %1471 = vmatprep.subr.mxu0 0.0
  %1472 = vmatpush1.msra.mxu0 0.0
  %1473 = vmatprep.subr.mxu0 0.0
  %1474 = vmatpush1.msra.mxu0 0.0
  %1475 = vmatprep.subr.mxu0 0.0
  %1476 = vmatpush1.msra.mxu0 0.0
  %1477 = vmatprep.subr.mxu0 0.0
  %1478 = vmatpush1.msra.mxu0 0.0
  %1479 = vmatprep.subr.mxu0 0.0
  %1480 = vmatpush1.msra.mxu0 0.0
  %1481 = vmatprep.subr.mxu0 0.0
  %1482 = vmatpush1.msra.mxu0 0.0
  %1483 = vmatprep.subr.mxu0 0.0
  %1484 = vmatpush1.msra.mxu0 0.0
  %1485 = vmatprep.subr.mxu0 0.0
  %1486 = vmatpush1.msra.mxu0 0.0
  %1487 = vmatprep.subr.mxu0 0.0
  %1488 = vmatpush1.msra.mxu0 0.0
  %1489 = vmatprep.subr.mxu0 0.0
  %1490 = vmatpush1.msra.mxu0 0.0
  %1491 = vmatprep.subr.mxu0 0.0
  %1492 = vmatpush1.msra.mxu0 0.0
  %1493 = vmatprep.subr.mxu0 0.0
  %1494 = vmatpush1.msra.mxu0 0.0
  %1495 = vmatprep.subr.mxu0 0.0
  %1496 = vmatpush1.msra.mxu0 0.0
  %1497 = vmatprep.subr.mxu0 0.0
  %1498 = vmatpush1.msra.mxu0 0.0
  %1499 = vmatprep.subr.mxu0 0.0
  %1500 = vmatpush1.msra.mxu0 0.0
  %1501 = vmatprep.subr.mxu0 0.0
  %1502 = vmatpush1.msra.mxu0 0.0
  %1503 = vmatprep.subr.mxu0 0.0
  %1504 = vmatpush1.msra.mxu0 0.0
  %1505 = vmatprep.subr.mxu0 0.0
  %1506 = vmatpush1.msra.mxu0 0.0
  %1507 = vmatprep.subr.mxu0 0.0
  %1508 = vmatpush1.msra.mxu0 0.0
  %1509 = vmatprep.subr.mxu0 0.0
  %1510 = vmatpush1.msra.mxu0 0.0
  %1511 = vmatprep.subr.mxu0 0.0
  %1512 = vmatpush1.msra.mxu0 0.0
  %1513 = vmatprep.subr.mxu0 0.0
  %1514 = vmatpush1.msra.mxu0 0.0
  %1515 = vmatprep.subr.mxu0 0.0
  %1516 = vmatpush1.msra.mxu0 0.0
  %1517 = vmatprep.subr.mxu0 0.0
  %1518 = vmatpush1.msra.mxu0 0.0
  %1519 = vmatprep.subr.mxu0 0.0
  %1520 = vmatpush1.msra.mxu0 0.0
  %1521 = vmatprep.subr.mxu0 0.0
  %1522 = vmatpush1.msra.mxu0 0.0
  %1523 = vmatprep.subr.mxu0 0.0
  %1524 = vmatpush1.msra.mxu0 0.0
  %1525 = vmatprep.subr.mxu0 0.0
  %1526 = vmatpush1.msra.mxu0 0.0
  %1527 = vmatprep.subr.mxu0 0.0
  %1528 = vmatpush1.msra.mxu0 0.0
  %1529 = vmatprep.mubr.f32.mxu0 0.0
  %1530 = vmatmul.mubr.f32.gmra.mrb[0].mxu0 %v1451
  %v1531 = vpop.f32.mrb[0].mxu0
  %v1532 = vadd.f32 0.0, %v1531
  %v1533 = vpop.f32.mrb[0].mxu0
  %v1534 = vadd.f32 0.0, %v1533
  %1535 = vdwg.mxu0
  %1536 = vmatprep.subr.mxu0 %v1463
  %1537 = vmatpush1.msra.mxu0 %v1460
  %1538 = vmatprep.subr.mxu0 0.0
  %1539 = vmatpush1.msra.mxu0 0.0
  %1540 = vmatprep.subr.mxu0 0.0
  %1541 = vmatpush1.msra.mxu0 0.0
  %1542 = vmatprep.subr.mxu0 0.0
  %1543 = vmatpush1.msra.mxu0 0.0
  %1544 = vmatprep.subr.mxu0 0.0
  %1545 = vmatpush1.msra.mxu0 0.0
  %1546 = vmatprep.subr.mxu0 0.0
  %1547 = vmatpush1.msra.mxu0 0.0
  %1548 = vmatprep.subr.mxu0 0.0
  %1549 = vmatpush1.msra.mxu0 0.0
  %1550 = vmatprep.subr.mxu0 0.0
  %1551 = vmatpush1.msra.mxu0 0.0
  %1552 = vmatprep.subr.mxu0 0.0
  %1553 = vmatpush1.msra.mxu0 0.0
  %1554 = vmatprep.subr.mxu0 0.0
  %1555 = vmatpush1.msra.mxu0 0.0
  %1556 = vmatprep.subr.mxu0 0.0
  %1557 = vmatpush1.msra.mxu0 0.0
  %1558 = vmatprep.subr.mxu0 0.0
  %1559 = vmatpush1.msra.mxu0 0.0
  %1560 = vmatprep.subr.mxu0 0.0
  %1561 = vmatpush1.msra.mxu0 0.0
  %1562 = vmatprep.subr.mxu0 0.0
  %1563 = vmatpush1.msra.mxu0 0.0
  %1564 = vmatprep.subr.mxu0 0.0
  %1565 = vmatpush1.msra.mxu0 0.0
  %1566 = vmatprep.subr.mxu0 0.0
  %1567 = vmatpush1.msra.mxu0 0.0
  %1568 = vmatprep.subr.mxu0 0.0
  %1569 = vmatpush1.msra.mxu0 0.0
  %1570 = vmatprep.subr.mxu0 0.0
  %1571 = vmatpush1.msra.mxu0 0.0
  %1572 = vmatprep.subr.mxu0 0.0
  %1573 = vmatpush1.msra.mxu0 0.0
  %1574 = vmatprep.subr.mxu0 0.0
  %1575 = vmatpush1.msra.mxu0 0.0
  %1576 = vmatprep.subr.mxu0 0.0
  %1577 = vmatpush1.msra.mxu0 0.0
  %1578 = vmatprep.subr.mxu0 0.0
  %1579 = vmatpush1.msra.mxu0 0.0
  %1580 = vmatprep.subr.mxu0 0.0
  %1581 = vmatpush1.msra.mxu0 0.0
  %1582 = vmatprep.subr.mxu0 0.0
  %1583 = vmatpush1.msra.mxu0 0.0
  %1584 = vmatprep.subr.mxu0 0.0
  %1585 = vmatpush1.msra.mxu0 0.0
  %1586 = vmatprep.subr.mxu0 0.0
  %1587 = vmatpush1.msra.mxu0 0.0
  %1588 = vmatprep.subr.mxu0 0.0
  %1589 = vmatpush1.msra.mxu0 0.0
  %1590 = vmatprep.subr.mxu0 0.0
  %1591 = vmatpush1.msra.mxu0 0.0
  %1592 = vmatprep.subr.mxu0 0.0
  %1593 = vmatpush1.msra.mxu0 0.0
  %1594 = vmatprep.subr.mxu0 0.0
  %1595 = vmatpush1.msra.mxu0 0.0
  %1596 = vmatprep.subr.mxu0 0.0
  %1597 = vmatpush1.msra.mxu0 0.0
  %1598 = vmatprep.subr.mxu0 0.0
  %1599 = vmatpush1.msra.mxu0 0.0
  %1600 = vmatprep.mubr.f32.mxu0 0.0
  %1601 = vmatmul.mubr.f32.gmra.mrb[0].mxu0 %v1451
  %v1602 = vpop.f32.mrb[0].mxu0
  %v1603 = vadd.f32 0.0, %v1602
  %v1604 = vpop.f32.mrb[0].mxu0
  %v1605 = vadd.f32 0.0, %v1604
  %1606 = vdwg.mxu0
  %v1607 = vadd.f32 %v1404, %v1532
  %v1608 = vadd.f32 %v1405, %v1534
  %v1609 = vadd.f32 %v1406, %v1603
  %v1610 = vadd.f32 %v1407, %v1605
  %1611 = vrot.lane.b32.xlu0 %v29, 111
  %v1612 = vpop.permute.xlu0 %1611
  %1613 = vrot.lane.b32.xlu0 %v35, 111
  %v1614 = vpop.permute.xlu0 %1613
  %1615 = vrot.lane.b32.xlu0 %v30, 111
  %v1616 = vpop.permute.xlu0 %1615
  %1617 = vrot.lane.b32.xlu0 %v36, 111
  %v1618 = vpop.permute.xlu0 %1617
  %vm1619 = vcmp.lt.s32.totalorder %v48, 111
  %v1620 = vsel %vm1619, %v1616, %v1618
  %v1621 = vsel %vm1619, %v1614, %v1616
  %v1622 = vsel %vm1619, %v1612, %v1614
  %v1623 = vsel %vm1619, %v1618, %v1612
  %s1624 = scalar_lea.vmem %s7, 32
  %v1625 = vld [vmem:[%s1624] sm:$0xf]
  %v1627 = vlaneseq
  %v1628 = vshrl.u32 %v1627, 7
  %v1629 = vsub.s32 0, %v1628
  %v1630 = vrot.slane %v1625, %v1629
  %v1631 = vlaneseq
  %v1632 = vshrl.u32 %v1631, 7
  %v1633 = vsub.s32 1, %v1632
  %v1634 = vrot.slane %v1625, %v1633
  %v1635 = vlaneseq
  %v1636 = vshrl.u32 %v1635, 7
  %v1637 = vsub.s32 2, %v1636
  %v1638 = vrot.slane %v1625, %v1637
  %v1639 = vlaneseq
  %v1640 = vshrl.u32 %v1639, 7
  %v1641 = vsub.s32 3, %v1640
  %v1642 = vrot.slane %v1625, %v1641
  %v1647 = vmul.f32 %v1622, %v1630
  %v1648 = vmul.f32 %v1621, %v1634
  %v1649 = vmul.f32 %v1620, %v1638
  %v1650 = vmul.f32 %v1623, %v1642
  %s1651 = scalar_lea.vmem %s1, 64
  %v1652 = vld [vmem:[%s1651] sm:$0xff]
  %v1654 = vsel %vm81, %v1652, 0
  %v1657 = vsel %vm85, %v1647, 0
  %v1660 = vsel %vm85, %v1648, 0
  %v1663 = vsel %vm85, %v1649, 0
  %v1666 = vsel %vm85, %v1650, 0
  %1668 = vmatprep.subr.mxu0 %v1660
  %1669 = vmatpush1.msra.mxu0 %v1657
  %1670 = vmatprep.subr.mxu0 0.0
  %1671 = vmatpush1.msra.mxu0 0.0
  %1672 = vmatprep.subr.mxu0 0.0
  %1673 = vmatpush1.msra.mxu0 0.0
  %1674 = vmatprep.subr.mxu0 0.0
  %1675 = vmatpush1.msra.mxu0 0.0
  %1676 = vmatprep.subr.mxu0 0.0
  %1677 = vmatpush1.msra.mxu0 0.0
  %1678 = vmatprep.subr.mxu0 0.0
  %1679 = vmatpush1.msra.mxu0 0.0
  %1680 = vmatprep.subr.mxu0 0.0
  %1681 = vmatpush1.msra.mxu0 0.0
  %1682 = vmatprep.subr.mxu0 0.0
  %1683 = vmatpush1.msra.mxu0 0.0
  %1684 = vmatprep.subr.mxu0 0.0
  %1685 = vmatpush1.msra.mxu0 0.0
  %1686 = vmatprep.subr.mxu0 0.0
  %1687 = vmatpush1.msra.mxu0 0.0
  %1688 = vmatprep.subr.mxu0 0.0
  %1689 = vmatpush1.msra.mxu0 0.0
  %1690 = vmatprep.subr.mxu0 0.0
  %1691 = vmatpush1.msra.mxu0 0.0
  %1692 = vmatprep.subr.mxu0 0.0
  %1693 = vmatpush1.msra.mxu0 0.0
  %1694 = vmatprep.subr.mxu0 0.0
  %1695 = vmatpush1.msra.mxu0 0.0
  %1696 = vmatprep.subr.mxu0 0.0
  %1697 = vmatpush1.msra.mxu0 0.0
  %1698 = vmatprep.subr.mxu0 0.0
  %1699 = vmatpush1.msra.mxu0 0.0
  %1700 = vmatprep.subr.mxu0 0.0
  %1701 = vmatpush1.msra.mxu0 0.0
  %1702 = vmatprep.subr.mxu0 0.0
  %1703 = vmatpush1.msra.mxu0 0.0
  %1704 = vmatprep.subr.mxu0 0.0
  %1705 = vmatpush1.msra.mxu0 0.0
  %1706 = vmatprep.subr.mxu0 0.0
  %1707 = vmatpush1.msra.mxu0 0.0
  %1708 = vmatprep.subr.mxu0 0.0
  %1709 = vmatpush1.msra.mxu0 0.0
  %1710 = vmatprep.subr.mxu0 0.0
  %1711 = vmatpush1.msra.mxu0 0.0
  %1712 = vmatprep.subr.mxu0 0.0
  %1713 = vmatpush1.msra.mxu0 0.0
  %1714 = vmatprep.subr.mxu0 0.0
  %1715 = vmatpush1.msra.mxu0 0.0
  %1716 = vmatprep.subr.mxu0 0.0
  %1717 = vmatpush1.msra.mxu0 0.0
  %1718 = vmatprep.subr.mxu0 0.0
  %1719 = vmatpush1.msra.mxu0 0.0
  %1720 = vmatprep.subr.mxu0 0.0
  %1721 = vmatpush1.msra.mxu0 0.0
  %1722 = vmatprep.subr.mxu0 0.0
  %1723 = vmatpush1.msra.mxu0 0.0
  %1724 = vmatprep.subr.mxu0 0.0
  %1725 = vmatpush1.msra.mxu0 0.0
  %1726 = vmatprep.subr.mxu0 0.0
  %1727 = vmatpush1.msra.mxu0 0.0
  %1728 = vmatprep.subr.mxu0 0.0
  %1729 = vmatpush1.msra.mxu0 0.0
  %1730 = vmatprep.subr.mxu0 0.0
  %1731 = vmatpush1.msra.mxu0 0.0
  %1732 = vmatprep.mubr.f32.mxu0 0.0
  %1733 = vmatmul.mubr.f32.gmra.mrb[0].mxu0 %v1654
  %v1734 = vpop.f32.mrb[0].mxu0
  %v1735 = vadd.f32 0.0, %v1734
  %v1736 = vpop.f32.mrb[0].mxu0
  %v1737 = vadd.f32 0.0, %v1736
  %1738 = vdwg.mxu0
  %1739 = vmatprep.subr.mxu0 %v1666
  %1740 = vmatpush1.msra.mxu0 %v1663
  %1741 = vmatprep.subr.mxu0 0.0
  %1742 = vmatpush1.msra.mxu0 0.0
  %1743 = vmatprep.subr.mxu0 0.0
  %1744 = vmatpush1.msra.mxu0 0.0
  %1745 = vmatprep.subr.mxu0 0.0
  %1746 = vmatpush1.msra.mxu0 0.0
  %1747 = vmatprep.subr.mxu0 0.0
  %1748 = vmatpush1.msra.mxu0 0.0
  %1749 = vmatprep.subr.mxu0 0.0
  %1750 = vmatpush1.msra.mxu0 0.0
  %1751 = vmatprep.subr.mxu0 0.0
  %1752 = vmatpush1.msra.mxu0 0.0
  %1753 = vmatprep.subr.mxu0 0.0
  %1754 = vmatpush1.msra.mxu0 0.0
  %1755 = vmatprep.subr.mxu0 0.0
  %1756 = vmatpush1.msra.mxu0 0.0
  %1757 = vmatprep.subr.mxu0 0.0
  %1758 = vmatpush1.msra.mxu0 0.0
  %1759 = vmatprep.subr.mxu0 0.0
  %1760 = vmatpush1.msra.mxu0 0.0
  %1761 = vmatprep.subr.mxu0 0.0
  %1762 = vmatpush1.msra.mxu0 0.0
  %1763 = vmatprep.subr.mxu0 0.0
  %1764 = vmatpush1.msra.mxu0 0.0
  %1765 = vmatprep.subr.mxu0 0.0
  %1766 = vmatpush1.msra.mxu0 0.0
  %1767 = vmatprep.subr.mxu0 0.0
  %1768 = vmatpush1.msra.mxu0 0.0
  %1769 = vmatprep.subr.mxu0 0.0
  %1770 = vmatpush1.msra.mxu0 0.0
  %1771 = vmatprep.subr.mxu0 0.0
  %1772 = vmatpush1.msra.mxu0 0.0
  %1773 = vmatprep.subr.mxu0 0.0
  %1774 = vmatpush1.msra.mxu0 0.0
  %1775 = vmatprep.subr.mxu0 0.0
  %1776 = vmatpush1.msra.mxu0 0.0
  %1777 = vmatprep.subr.mxu0 0.0
  %1778 = vmatpush1.msra.mxu0 0.0
  %1779 = vmatprep.subr.mxu0 0.0
  %1780 = vmatpush1.msra.mxu0 0.0
  %1781 = vmatprep.subr.mxu0 0.0
  %1782 = vmatpush1.msra.mxu0 0.0
  %1783 = vmatprep.subr.mxu0 0.0
  %1784 = vmatpush1.msra.mxu0 0.0
  %1785 = vmatprep.subr.mxu0 0.0
  %1786 = vmatpush1.msra.mxu0 0.0
  %1787 = vmatprep.subr.mxu0 0.0
  %1788 = vmatpush1.msra.mxu0 0.0
  %1789 = vmatprep.subr.mxu0 0.0
  %1790 = vmatpush1.msra.mxu0 0.0
  %1791 = vmatprep.subr.mxu0 0.0
  %1792 = vmatpush1.msra.mxu0 0.0
  %1793 = vmatprep.subr.mxu0 0.0
  %1794 = vmatpush1.msra.mxu0 0.0
  %1795 = vmatprep.subr.mxu0 0.0
  %1796 = vmatpush1.msra.mxu0 0.0
  %1797 = vmatprep.subr.mxu0 0.0
  %1798 = vmatpush1.msra.mxu0 0.0
  %1799 = vmatprep.subr.mxu0 0.0
  %1800 = vmatpush1.msra.mxu0 0.0
  %1801 = vmatprep.subr.mxu0 0.0
  %1802 = vmatpush1.msra.mxu0 0.0
  %1803 = vmatprep.mubr.f32.mxu0 0.0
  %1804 = vmatmul.mubr.f32.gmra.mrb[0].mxu0 %v1654
  %v1805 = vpop.f32.mrb[0].mxu0
  %v1806 = vadd.f32 0.0, %v1805
  %v1807 = vpop.f32.mrb[0].mxu0
  %v1808 = vadd.f32 0.0, %v1807
  %1809 = vdwg.mxu0
  %v1810 = vadd.f32 %v1607, %v1735
  %v1811 = vadd.f32 %v1608, %v1737
  %v1812 = vadd.f32 %v1609, %v1806
  %v1813 = vadd.f32 %v1610, %v1808
  %v1814 = vadd.f32 %v1810, %v1811
  %v1815 = vadd.f32 %v1814, %v1812
  %v1816 = vadd.f32 %v1815, %v1813
  %1817 = vadd.xlane.f32.xlu0 %v1816
  %v1818 = vpop.xlane.xlu0 %1817
  %v1819 = vmul.f32 %v1818, 0.001953125
  %v1820 = vmul.f32 %v1810, %v1810
  %v1821 = vmul.f32 %v1811, %v1811
  %v1822 = vmul.f32 %v1812, %v1812
  %v1823 = vmul.f32 %v1813, %v1813
  %v1824 = vadd.f32 %v1820, %v1821
  %v1825 = vadd.f32 %v1824, %v1822
  %v1826 = vadd.f32 %v1825, %v1823
  %1827 = vadd.xlane.f32.xlu0 %v1826
  %v1828 = vpop.xlane.xlu0 %1827
  %v1829 = vmul.f32 %v1828, 0.001953125
  %v1830 = vmul.f32 %v1819, %v1819
  %v1831 = vsub.f32 %v1829, %v1830
  %v1832 = vadd.f32 %v1831, 1e-05
  %v1833 = vrsqrt.pop %v1832
  %v1834 = vld [vmem:[%s3] sm:$0xff]
  %v1835 = vmul.f32 %v1833, %v1834
  %v1836 = vld [vmem:[%s4] sm:$0xff]
  %v1837 = vmul.f32 %v1819, %v1835
  %v1838 = vsub.f32 %v1836, %v1837
  %1840 = vset.pattern.permute.xlu0 0
  %1841 = vperm.xlu0 %1840, %v1835
  %v1842 = vpop.permute.xlu0 %1841
  %v1844 = vmul.f32 %v1810, %v1842
  %v1845 = vmul.f32 %v1811, %v1842
  %v1846 = vmul.f32 %v1812, %v1842
  %v1847 = vmul.f32 %v1813, %v1842
  %1849 = vset.pattern.permute.xlu0 0
  %1850 = vperm.xlu0 %1849, %v1838
  %v1851 = vpop.permute.xlu0 %1850
  %v1853 = vadd.f32 %v1844, %v1851
  %v1854 = vadd.f32 %v1845, %v1851
  %v1855 = vadd.f32 %v1846, %v1851
  %v1856 = vadd.f32 %v1847, %v1851
  %v1857 = vmax.f32 %v1853, 0.0
  %v1858 = vmax.f32 %v1854, 0.0
  %v1859 = vmax.f32 %v1855, 0.0
  %v1860 = vmax.f32 %v1856, 0.0
  %s1861 = scalar_lea.vmem %s2, 32
  %v1862 = vld [vmem:[%s1861] sm:$0xff]
  %1863 = vrot.lane.b32.xlu0 %v1857, 17
  %v1864 = vpop.permute.xlu0 %1863
  %1865 = vrot.lane.b32.xlu0 %v1858, 17
  %v1866 = vpop.permute.xlu0 %1865
  %1867 = vrot.lane.b32.xlu0 %v1859, 17
  %v1868 = vpop.permute.xlu0 %1867
  %1869 = vrot.lane.b32.xlu0 %v1860, 17
  %v1870 = vpop.permute.xlu0 %1869
  %v1871 = vsel %vm49, %v1868, %v1870
  %v1872 = vsel %vm49, %v1866, %v1868
  %v1873 = vsel %vm49, %v1864, %v1866
  %v1874 = vsel %vm49, %v1870, %v1864
  %v1875 = vmul.f32 %v1874, %v59
  %v1876 = vmul.f32 %v1873, %v63
  %v1877 = vmul.f32 %v1872, %v67
  %v1878 = vmul.f32 %v1871, %v71
  %v1879 = vld [vmem:[%s2] sm:$0xff]
  %vm1880 = vcmask 64512
  %v1882 = vsel %vm1880, %v1879, 0
  %1884 = vmatprep.subr.mxu0 %v1876
  %1885 = vmatpush1.msra.mxu0 %v1875
  %1886 = vmatprep.subr.mxu0 0.0
  %1887 = vmatpush1.msra.mxu0 0.0
  %1888 = vmatprep.subr.mxu0 0.0
  %1889 = vmatpush1.msra.mxu0 0.0
  %1890 = vmatprep.subr.mxu0 0.0
  %1891 = vmatpush1.msra.mxu0 0.0
  %1892 = vmatprep.subr.mxu0 0.0
  %1893 = vmatpush1.msra.mxu0 0.0
  %1894 = vmatprep.subr.mxu0 0.0
  %1895 = vmatpush1.msra.mxu0 0.0
  %1896 = vmatprep.subr.mxu0 0.0
  %1897 = vmatpush1.msra.mxu0 0.0
  %1898 = vmatprep.subr.mxu0 0.0
  %1899 = vmatpush1.msra.mxu0 0.0
  %1900 = vmatprep.subr.mxu0 0.0
  %1901 = vmatpush1.msra.mxu0 0.0
  %1902 = vmatprep.subr.mxu0 0.0
  %1903 = vmatpush1.msra.mxu0 0.0
  %1904 = vmatprep.subr.mxu0 0.0
  %1905 = vmatpush1.msra.mxu0 0.0
  %1906 = vmatprep.subr.mxu0 0.0
  %1907 = vmatpush1.msra.mxu0 0.0
  %1908 = vmatprep.subr.mxu0 0.0
  %1909 = vmatpush1.msra.mxu0 0.0
  %1910 = vmatprep.subr.mxu0 0.0
  %1911 = vmatpush1.msra.mxu0 0.0
  %1912 = vmatprep.subr.mxu0 0.0
  %1913 = vmatpush1.msra.mxu0 0.0
  %1914 = vmatprep.subr.mxu0 0.0
  %1915 = vmatpush1.msra.mxu0 0.0
  %1916 = vmatprep.subr.mxu0 0.0
  %1917 = vmatpush1.msra.mxu0 0.0
  %1918 = vmatprep.subr.mxu0 0.0
  %1919 = vmatpush1.msra.mxu0 0.0
  %1920 = vmatprep.subr.mxu0 0.0
  %1921 = vmatpush1.msra.mxu0 0.0
  %1922 = vmatprep.subr.mxu0 0.0
  %1923 = vmatpush1.msra.mxu0 0.0
  %1924 = vmatprep.subr.mxu0 0.0
  %1925 = vmatpush1.msra.mxu0 0.0
  %1926 = vmatprep.subr.mxu0 0.0
  %1927 = vmatpush1.msra.mxu0 0.0
  %1928 = vmatprep.subr.mxu0 0.0
  %1929 = vmatpush1.msra.mxu0 0.0
  %1930 = vmatprep.subr.mxu0 0.0
  %1931 = vmatpush1.msra.mxu0 0.0
  %1932 = vmatprep.subr.mxu0 0.0
  %1933 = vmatpush1.msra.mxu0 0.0
  %1934 = vmatprep.subr.mxu0 0.0
  %1935 = vmatpush1.msra.mxu0 0.0
  %1936 = vmatprep.subr.mxu0 0.0
  %1937 = vmatpush1.msra.mxu0 0.0
  %1938 = vmatprep.subr.mxu0 0.0
  %1939 = vmatpush1.msra.mxu0 0.0
  %1940 = vmatprep.subr.mxu0 0.0
  %1941 = vmatpush1.msra.mxu0 0.0
  %1942 = vmatprep.subr.mxu0 0.0
  %1943 = vmatpush1.msra.mxu0 0.0
  %1944 = vmatprep.subr.mxu0 0.0
  %1945 = vmatpush1.msra.mxu0 0.0
  %1946 = vmatprep.subr.mxu0 0.0
  %1947 = vmatpush1.msra.mxu0 0.0
  %1948 = vmatprep.mubr.f32.mxu0 0.0
  %1949 = vmatmul.mubr.f32.gmra.mrb[0].mxu0 %v1882
  %v1950 = vpop.f32.mrb[0].mxu0
  %v1951 = vadd.f32 0.0, %v1950
  %v1952 = vpop.f32.mrb[0].mxu0
  %v1953 = vadd.f32 0.0, %v1952
  %1954 = vdwg.mxu0
  %1955 = vmatprep.subr.mxu0 %v1878
  %1956 = vmatpush1.msra.mxu0 %v1877
  %1957 = vmatprep.subr.mxu0 0.0
  %1958 = vmatpush1.msra.mxu0 0.0
  %1959 = vmatprep.subr.mxu0 0.0
  %1960 = vmatpush1.msra.mxu0 0.0
  %1961 = vmatprep.subr.mxu0 0.0
  %1962 = vmatpush1.msra.mxu0 0.0
  %1963 = vmatprep.subr.mxu0 0.0
  %1964 = vmatpush1.msra.mxu0 0.0
  %1965 = vmatprep.subr.mxu0 0.0
  %1966 = vmatpush1.msra.mxu0 0.0
  %1967 = vmatprep.subr.mxu0 0.0
  %1968 = vmatpush1.msra.mxu0 0.0
  %1969 = vmatprep.subr.mxu0 0.0
  %1970 = vmatpush1.msra.mxu0 0.0
  %1971 = vmatprep.subr.mxu0 0.0
  %1972 = vmatpush1.msra.mxu0 0.0
  %1973 = vmatprep.subr.mxu0 0.0
  %1974 = vmatpush1.msra.mxu0 0.0
  %1975 = vmatprep.subr.mxu0 0.0
  %1976 = vmatpush1.msra.mxu0 0.0
  %1977 = vmatprep.subr.mxu0 0.0
  %1978 = vmatpush1.msra.mxu0 0.0
  %1979 = vmatprep.subr.mxu0 0.0
  %1980 = vmatpush1.msra.mxu0 0.0
  %1981 = vmatprep.subr.mxu0 0.0
  %1982 = vmatpush1.msra.mxu0 0.0
  %1983 = vmatprep.subr.mxu0 0.0
  %1984 = vmatpush1.msra.mxu0 0.0
  %1985 = vmatprep.subr.mxu0 0.0
  %1986 = vmatpush1.msra.mxu0 0.0
  %1987 = vmatprep.subr.mxu0 0.0
  %1988 = vmatpush1.msra.mxu0 0.0
  %1989 = vmatprep.subr.mxu0 0.0
  %1990 = vmatpush1.msra.mxu0 0.0
  %1991 = vmatprep.subr.mxu0 0.0
  %1992 = vmatpush1.msra.mxu0 0.0
  %1993 = vmatprep.subr.mxu0 0.0
  %1994 = vmatpush1.msra.mxu0 0.0
  %1995 = vmatprep.subr.mxu0 0.0
  %1996 = vmatpush1.msra.mxu0 0.0
  %1997 = vmatprep.subr.mxu0 0.0
  %1998 = vmatpush1.msra.mxu0 0.0
  %1999 = vmatprep.subr.mxu0 0.0
  %2000 = vmatpush1.msra.mxu0 0.0
  %2001 = vmatprep.subr.mxu0 0.0
  %2002 = vmatpush1.msra.mxu0 0.0
  %2003 = vmatprep.subr.mxu0 0.0
  %2004 = vmatpush1.msra.mxu0 0.0
  %2005 = vmatprep.subr.mxu0 0.0
  %2006 = vmatpush1.msra.mxu0 0.0
  %2007 = vmatprep.subr.mxu0 0.0
  %2008 = vmatpush1.msra.mxu0 0.0
  %2009 = vmatprep.subr.mxu0 0.0
  %2010 = vmatpush1.msra.mxu0 0.0
  %2011 = vmatprep.subr.mxu0 0.0
  %2012 = vmatpush1.msra.mxu0 0.0
  %2013 = vmatprep.subr.mxu0 0.0
  %2014 = vmatpush1.msra.mxu0 0.0
  %2015 = vmatprep.subr.mxu0 0.0
  %2016 = vmatpush1.msra.mxu0 0.0
  %2017 = vmatprep.subr.mxu0 0.0
  %2018 = vmatpush1.msra.mxu0 0.0
  %2019 = vmatprep.mubr.f32.mxu0 0.0
  %2020 = vmatmul.mubr.f32.gmra.mrb[0].mxu0 %v1882
  %v2021 = vpop.f32.mrb[0].mxu0
  %v2022 = vadd.f32 0.0, %v2021
  %v2023 = vpop.f32.mrb[0].mxu0
  %v2024 = vadd.f32 0.0, %v2023
  %2025 = vdwg.mxu0
  %v2027 = vsel %vm1880, %v1862, 0
  %2029 = vmatprep.subr.mxu0 %v1858
  %2030 = vmatpush1.msra.mxu0 %v1857
  %2031 = vmatprep.subr.mxu0 0.0
  %2032 = vmatpush1.msra.mxu0 0.0
  %2033 = vmatprep.subr.mxu0 0.0
  %2034 = vmatpush1.msra.mxu0 0.0
  %2035 = vmatprep.subr.mxu0 0.0
  %2036 = vmatpush1.msra.mxu0 0.0
  %2037 = vmatprep.subr.mxu0 0.0
  %2038 = vmatpush1.msra.mxu0 0.0
  %2039 = vmatprep.subr.mxu0 0.0
  %2040 = vmatpush1.msra.mxu0 0.0
  %2041 = vmatprep.subr.mxu0 0.0
  %2042 = vmatpush1.msra.mxu0 0.0
  %2043 = vmatprep.subr.mxu0 0.0
  %2044 = vmatpush1.msra.mxu0 0.0
  %2045 = vmatprep.subr.mxu0 0.0
  %2046 = vmatpush1.msra.mxu0 0.0
  %2047 = vmatprep.subr.mxu0 0.0
  %2048 = vmatpush1.msra.mxu0 0.0
  %2049 = vmatprep.subr.mxu0 0.0
  %2050 = vmatpush1.msra.mxu0 0.0
  %2051 = vmatprep.subr.mxu0 0.0
  %2052 = vmatpush1.msra.mxu0 0.0
  %2053 = vmatprep.subr.mxu0 0.0
  %2054 = vmatpush1.msra.mxu0 0.0
  %2055 = vmatprep.subr.mxu0 0.0
  %2056 = vmatpush1.msra.mxu0 0.0
  %2057 = vmatprep.subr.mxu0 0.0
  %2058 = vmatpush1.msra.mxu0 0.0
  %2059 = vmatprep.subr.mxu0 0.0
  %2060 = vmatpush1.msra.mxu0 0.0
  %2061 = vmatprep.subr.mxu0 0.0
  %2062 = vmatpush1.msra.mxu0 0.0
  %2063 = vmatprep.subr.mxu0 0.0
  %2064 = vmatpush1.msra.mxu0 0.0
  %2065 = vmatprep.subr.mxu0 0.0
  %2066 = vmatpush1.msra.mxu0 0.0
  %2067 = vmatprep.subr.mxu0 0.0
  %2068 = vmatpush1.msra.mxu0 0.0
  %2069 = vmatprep.subr.mxu0 0.0
  %2070 = vmatpush1.msra.mxu0 0.0
  %2071 = vmatprep.subr.mxu0 0.0
  %2072 = vmatpush1.msra.mxu0 0.0
  %2073 = vmatprep.subr.mxu0 0.0
  %2074 = vmatpush1.msra.mxu0 0.0
  %2075 = vmatprep.subr.mxu0 0.0
  %2076 = vmatpush1.msra.mxu0 0.0
  %2077 = vmatprep.subr.mxu0 0.0
  %2078 = vmatpush1.msra.mxu0 0.0
  %2079 = vmatprep.subr.mxu0 0.0
  %2080 = vmatpush1.msra.mxu0 0.0
  %2081 = vmatprep.subr.mxu0 0.0
  %2082 = vmatpush1.msra.mxu0 0.0
  %2083 = vmatprep.subr.mxu0 0.0
  %2084 = vmatpush1.msra.mxu0 0.0
  %2085 = vmatprep.subr.mxu0 0.0
  %2086 = vmatpush1.msra.mxu0 0.0
  %2087 = vmatprep.subr.mxu0 0.0
  %2088 = vmatpush1.msra.mxu0 0.0
  %2089 = vmatprep.subr.mxu0 0.0
  %2090 = vmatpush1.msra.mxu0 0.0
  %2091 = vmatprep.subr.mxu0 0.0
  %2092 = vmatpush1.msra.mxu0 0.0
  %2093 = vmatprep.mubr.f32.mxu0 0.0
  %2094 = vmatmul.mubr.f32.gmra.mrb[0].mxu0 %v2027
  %v2095 = vpop.f32.mrb[0].mxu0
  %v2096 = vadd.f32 %v1951, %v2095
  %v2097 = vpop.f32.mrb[0].mxu0
  %v2098 = vadd.f32 %v1953, %v2097
  %2099 = vdwg.mxu0
  %2100 = vmatprep.subr.mxu0 %v1860
  %2101 = vmatpush1.msra.mxu0 %v1859
  %2102 = vmatprep.subr.mxu0 0.0
  %2103 = vmatpush1.msra.mxu0 0.0
  %2104 = vmatprep.subr.mxu0 0.0
  %2105 = vmatpush1.msra.mxu0 0.0
  %2106 = vmatprep.subr.mxu0 0.0
  %2107 = vmatpush1.msra.mxu0 0.0
  %2108 = vmatprep.subr.mxu0 0.0
  %2109 = vmatpush1.msra.mxu0 0.0
  %2110 = vmatprep.subr.mxu0 0.0
  %2111 = vmatpush1.msra.mxu0 0.0
  %2112 = vmatprep.subr.mxu0 0.0
  %2113 = vmatpush1.msra.mxu0 0.0
  %2114 = vmatprep.subr.mxu0 0.0
  %2115 = vmatpush1.msra.mxu0 0.0
  %2116 = vmatprep.subr.mxu0 0.0
  %2117 = vmatpush1.msra.mxu0 0.0
  %2118 = vmatprep.subr.mxu0 0.0
  %2119 = vmatpush1.msra.mxu0 0.0
  %2120 = vmatprep.subr.mxu0 0.0
  %2121 = vmatpush1.msra.mxu0 0.0
  %2122 = vmatprep.subr.mxu0 0.0
  %2123 = vmatpush1.msra.mxu0 0.0
  %2124 = vmatprep.subr.mxu0 0.0
  %2125 = vmatpush1.msra.mxu0 0.0
  %2126 = vmatprep.subr.mxu0 0.0
  %2127 = vmatpush1.msra.mxu0 0.0
  %2128 = vmatprep.subr.mxu0 0.0
  %2129 = vmatpush1.msra.mxu0 0.0
  %2130 = vmatprep.subr.mxu0 0.0
  %2131 = vmatpush1.msra.mxu0 0.0
  %2132 = vmatprep.subr.mxu0 0.0
  %2133 = vmatpush1.msra.mxu0 0.0
  %2134 = vmatprep.subr.mxu0 0.0
  %2135 = vmatpush1.msra.mxu0 0.0
  %2136 = vmatprep.subr.mxu0 0.0
  %2137 = vmatpush1.msra.mxu0 0.0
  %2138 = vmatprep.subr.mxu0 0.0
  %2139 = vmatpush1.msra.mxu0 0.0
  %2140 = vmatprep.subr.mxu0 0.0
  %2141 = vmatpush1.msra.mxu0 0.0
  %2142 = vmatprep.subr.mxu0 0.0
  %2143 = vmatpush1.msra.mxu0 0.0
  %2144 = vmatprep.subr.mxu0 0.0
  %2145 = vmatpush1.msra.mxu0 0.0
  %2146 = vmatprep.subr.mxu0 0.0
  %2147 = vmatpush1.msra.mxu0 0.0
  %2148 = vmatprep.subr.mxu0 0.0
  %2149 = vmatpush1.msra.mxu0 0.0
  %2150 = vmatprep.subr.mxu0 0.0
  %2151 = vmatpush1.msra.mxu0 0.0
  %2152 = vmatprep.subr.mxu0 0.0
  %2153 = vmatpush1.msra.mxu0 0.0
  %2154 = vmatprep.subr.mxu0 0.0
  %2155 = vmatpush1.msra.mxu0 0.0
  %2156 = vmatprep.subr.mxu0 0.0
  %2157 = vmatpush1.msra.mxu0 0.0
  %2158 = vmatprep.subr.mxu0 0.0
  %2159 = vmatpush1.msra.mxu0 0.0
  %2160 = vmatprep.subr.mxu0 0.0
  %2161 = vmatpush1.msra.mxu0 0.0
  %2162 = vmatprep.subr.mxu0 0.0
  %2163 = vmatpush1.msra.mxu0 0.0
  %2164 = vmatprep.mubr.f32.mxu0 0.0
  %2165 = vmatmul.mubr.f32.gmra.mrb[0].mxu0 %v2027
  %v2166 = vpop.f32.mrb[0].mxu0
  %v2167 = vadd.f32 %v2022, %v2166
  %v2168 = vpop.f32.mrb[0].mxu0
  %v2169 = vadd.f32 %v2024, %v2168
  %2170 = vdwg.mxu0
  %2171 = vrot.lane.b32.xlu0 %v1857, 16
  %v2172 = vpop.permute.xlu0 %2171
  %2173 = vrot.lane.b32.xlu0 %v1858, 16
  %v2174 = vpop.permute.xlu0 %2173
  %2175 = vrot.lane.b32.xlu0 %v1859, 16
  %v2176 = vpop.permute.xlu0 %2175
  %2177 = vrot.lane.b32.xlu0 %v1860, 16
  %v2178 = vpop.permute.xlu0 %2177
  %v2179 = vsel %vm401, %v2176, %v2178
  %v2180 = vsel %vm401, %v2174, %v2176
  %v2181 = vsel %vm401, %v2172, %v2174
  %v2182 = vsel %vm401, %v2178, %v2172
  %v2183 = vmul.f32 %v2182, %v412
  %v2184 = vmul.f32 %v2181, %v416
  %v2185 = vmul.f32 %v2180, %v420
  %v2186 = vmul.f32 %v2179, %v424
  %s2187 = scalar_lea.vmem %s2, 8
  %v2188 = vld [vmem:[%s2187] sm:$0xff]
  %v2190 = vsel %vm1880, %v2188, 0
  %2192 = vmatprep.subr.mxu0 %v2184
  %2193 = vmatpush1.msra.mxu0 %v2183
  %2194 = vmatprep.subr.mxu0 0.0
  %2195 = vmatpush1.msra.mxu0 0.0
  %2196 = vmatprep.subr.mxu0 0.0
  %2197 = vmatpush1.msra.mxu0 0.0
  %2198 = vmatprep.subr.mxu0 0.0
  %2199 = vmatpush1.msra.mxu0 0.0
  %2200 = vmatprep.subr.mxu0 0.0
  %2201 = vmatpush1.msra.mxu0 0.0
  %2202 = vmatprep.subr.mxu0 0.0
  %2203 = vmatpush1.msra.mxu0 0.0
  %2204 = vmatprep.subr.mxu0 0.0
  %2205 = vmatpush1.msra.mxu0 0.0
  %2206 = vmatprep.subr.mxu0 0.0
  %2207 = vmatpush1.msra.mxu0 0.0
  %2208 = vmatprep.subr.mxu0 0.0
  %2209 = vmatpush1.msra.mxu0 0.0
  %2210 = vmatprep.subr.mxu0 0.0
  %2211 = vmatpush1.msra.mxu0 0.0
  %2212 = vmatprep.subr.mxu0 0.0
  %2213 = vmatpush1.msra.mxu0 0.0
  %2214 = vmatprep.subr.mxu0 0.0
  %2215 = vmatpush1.msra.mxu0 0.0
  %2216 = vmatprep.subr.mxu0 0.0
  %2217 = vmatpush1.msra.mxu0 0.0
  %2218 = vmatprep.subr.mxu0 0.0
  %2219 = vmatpush1.msra.mxu0 0.0
  %2220 = vmatprep.subr.mxu0 0.0
  %2221 = vmatpush1.msra.mxu0 0.0
  %2222 = vmatprep.subr.mxu0 0.0
  %2223 = vmatpush1.msra.mxu0 0.0
  %2224 = vmatprep.subr.mxu0 0.0
  %2225 = vmatpush1.msra.mxu0 0.0
  %2226 = vmatprep.subr.mxu0 0.0
  %2227 = vmatpush1.msra.mxu0 0.0
  %2228 = vmatprep.subr.mxu0 0.0
  %2229 = vmatpush1.msra.mxu0 0.0
  %2230 = vmatprep.subr.mxu0 0.0
  %2231 = vmatpush1.msra.mxu0 0.0
  %2232 = vmatprep.subr.mxu0 0.0
  %2233 = vmatpush1.msra.mxu0 0.0
  %2234 = vmatprep.subr.mxu0 0.0
  %2235 = vmatpush1.msra.mxu0 0.0
  %2236 = vmatprep.subr.mxu0 0.0
  %2237 = vmatpush1.msra.mxu0 0.0
  %2238 = vmatprep.subr.mxu0 0.0
  %2239 = vmatpush1.msra.mxu0 0.0
  %2240 = vmatprep.subr.mxu0 0.0
  %2241 = vmatpush1.msra.mxu0 0.0
  %2242 = vmatprep.subr.mxu0 0.0
  %2243 = vmatpush1.msra.mxu0 0.0
  %2244 = vmatprep.subr.mxu0 0.0
  %2245 = vmatpush1.msra.mxu0 0.0
  %2246 = vmatprep.subr.mxu0 0.0
  %2247 = vmatpush1.msra.mxu0 0.0
  %2248 = vmatprep.subr.mxu0 0.0
  %2249 = vmatpush1.msra.mxu0 0.0
  %2250 = vmatprep.subr.mxu0 0.0
  %2251 = vmatpush1.msra.mxu0 0.0
  %2252 = vmatprep.subr.mxu0 0.0
  %2253 = vmatpush1.msra.mxu0 0.0
  %2254 = vmatprep.subr.mxu0 0.0
  %2255 = vmatpush1.msra.mxu0 0.0
  %2256 = vmatprep.mubr.f32.mxu0 0.0
  %2257 = vmatmul.mubr.f32.gmra.mrb[0].mxu0 %v2190
  %v2258 = vpop.f32.mrb[0].mxu0
  %v2259 = vadd.f32 0.0, %v2258
  %v2260 = vpop.f32.mrb[0].mxu0
  %v2261 = vadd.f32 0.0, %v2260
  %2262 = vdwg.mxu0
  %2263 = vmatprep.subr.mxu0 %v2186
  %2264 = vmatpush1.msra.mxu0 %v2185
  %2265 = vmatprep.subr.mxu0 0.0
  %2266 = vmatpush1.msra.mxu0 0.0
  %2267 = vmatprep.subr.mxu0 0.0
  %2268 = vmatpush1.msra.mxu0 0.0
  %2269 = vmatprep.subr.mxu0 0.0
  %2270 = vmatpush1.msra.mxu0 0.0
  %2271 = vmatprep.subr.mxu0 0.0
  %2272 = vmatpush1.msra.mxu0 0.0
  %2273 = vmatprep.subr.mxu0 0.0
  %2274 = vmatpush1.msra.mxu0 0.0
  %2275 = vmatprep.subr.mxu0 0.0
  %2276 = vmatpush1.msra.mxu0 0.0
  %2277 = vmatprep.subr.mxu0 0.0
  %2278 = vmatpush1.msra.mxu0 0.0
  %2279 = vmatprep.subr.mxu0 0.0
  %2280 = vmatpush1.msra.mxu0 0.0
  %2281 = vmatprep.subr.mxu0 0.0
  %2282 = vmatpush1.msra.mxu0 0.0
  %2283 = vmatprep.subr.mxu0 0.0
  %2284 = vmatpush1.msra.mxu0 0.0
  %2285 = vmatprep.subr.mxu0 0.0
  %2286 = vmatpush1.msra.mxu0 0.0
  %2287 = vmatprep.subr.mxu0 0.0
  %2288 = vmatpush1.msra.mxu0 0.0
  %2289 = vmatprep.subr.mxu0 0.0
  %2290 = vmatpush1.msra.mxu0 0.0
  %2291 = vmatprep.subr.mxu0 0.0
  %2292 = vmatpush1.msra.mxu0 0.0
  %2293 = vmatprep.subr.mxu0 0.0
  %2294 = vmatpush1.msra.mxu0 0.0
  %2295 = vmatprep.subr.mxu0 0.0
  %2296 = vmatpush1.msra.mxu0 0.0
  %2297 = vmatprep.subr.mxu0 0.0
  %2298 = vmatpush1.msra.mxu0 0.0
  %2299 = vmatprep.subr.mxu0 0.0
  %2300 = vmatpush1.msra.mxu0 0.0
  %2301 = vmatprep.subr.mxu0 0.0
  %2302 = vmatpush1.msra.mxu0 0.0
  %2303 = vmatprep.subr.mxu0 0.0
  %2304 = vmatpush1.msra.mxu0 0.0
  %2305 = vmatprep.subr.mxu0 0.0
  %2306 = vmatpush1.msra.mxu0 0.0
  %2307 = vmatprep.subr.mxu0 0.0
  %2308 = vmatpush1.msra.mxu0 0.0
  %2309 = vmatprep.subr.mxu0 0.0
  %2310 = vmatpush1.msra.mxu0 0.0
  %2311 = vmatprep.subr.mxu0 0.0
  %2312 = vmatpush1.msra.mxu0 0.0
  %2313 = vmatprep.subr.mxu0 0.0
  %2314 = vmatpush1.msra.mxu0 0.0
  %2315 = vmatprep.subr.mxu0 0.0
  %2316 = vmatpush1.msra.mxu0 0.0
  %2317 = vmatprep.subr.mxu0 0.0
  %2318 = vmatpush1.msra.mxu0 0.0
  %2319 = vmatprep.subr.mxu0 0.0
  %2320 = vmatpush1.msra.mxu0 0.0
  %2321 = vmatprep.subr.mxu0 0.0
  %2322 = vmatpush1.msra.mxu0 0.0
  %2323 = vmatprep.subr.mxu0 0.0
  %2324 = vmatpush1.msra.mxu0 0.0
  %2325 = vmatprep.subr.mxu0 0.0
  %2326 = vmatpush1.msra.mxu0 0.0
  %2327 = vmatprep.mubr.f32.mxu0 0.0
  %2328 = vmatmul.mubr.f32.gmra.mrb[0].mxu0 %v2190
  %v2329 = vpop.f32.mrb[0].mxu0
  %v2330 = vadd.f32 0.0, %v2329
  %v2331 = vpop.f32.mrb[0].mxu0
  %v2332 = vadd.f32 0.0, %v2331
  %2333 = vdwg.mxu0
  %v2334 = vadd.f32 %v2096, %v2259
  %v2335 = vadd.f32 %v2098, %v2261
  %v2336 = vadd.f32 %v2167, %v2330
  %v2337 = vadd.f32 %v2169, %v2332
  %2338 = vrot.lane.b32.xlu0 %v1857, 15
  %v2339 = vpop.permute.xlu0 %2338
  %2340 = vrot.lane.b32.xlu0 %v1858, 15
  %v2341 = vpop.permute.xlu0 %2340
  %2342 = vrot.lane.b32.xlu0 %v1859, 15
  %v2343 = vpop.permute.xlu0 %2342
  %2344 = vrot.lane.b32.xlu0 %v1860, 15
  %v2345 = vpop.permute.xlu0 %2344
  %v2346 = vsel %vm604, %v2343, %v2345
  %v2347 = vsel %vm604, %v2341, %v2343
  %v2348 = vsel %vm604, %v2339, %v2341
  %v2349 = vsel %vm604, %v2345, %v2339
  %v2350 = vmul.f32 %v2349, %v615
  %v2351 = vmul.f32 %v2348, %v619
  %v2352 = vmul.f32 %v2347, %v623
  %v2353 = vmul.f32 %v2346, %v627
  %s2354 = scalar_lea.vmem %s2, 16
  %v2355 = vld [vmem:[%s2354] sm:$0xff]
  %v2357 = vsel %vm1880, %v2355, 0
  %2359 = vmatprep.subr.mxu0 %v2351
  %2360 = vmatpush1.msra.mxu0 %v2350
  %2361 = vmatprep.subr.mxu0 0.0
  %2362 = vmatpush1.msra.mxu0 0.0
  %2363 = vmatprep.subr.mxu0 0.0
  %2364 = vmatpush1.msra.mxu0 0.0
  %2365 = vmatprep.subr.mxu0 0.0
  %2366 = vmatpush1.msra.mxu0 0.0
  %2367 = vmatprep.subr.mxu0 0.0
  %2368 = vmatpush1.msra.mxu0 0.0
  %2369 = vmatprep.subr.mxu0 0.0
  %2370 = vmatpush1.msra.mxu0 0.0
  %2371 = vmatprep.subr.mxu0 0.0
  %2372 = vmatpush1.msra.mxu0 0.0
  %2373 = vmatprep.subr.mxu0 0.0
  %2374 = vmatpush1.msra.mxu0 0.0
  %2375 = vmatprep.subr.mxu0 0.0
  %2376 = vmatpush1.msra.mxu0 0.0
  %2377 = vmatprep.subr.mxu0 0.0
  %2378 = vmatpush1.msra.mxu0 0.0
  %2379 = vmatprep.subr.mxu0 0.0
  %2380 = vmatpush1.msra.mxu0 0.0
  %2381 = vmatprep.subr.mxu0 0.0
  %2382 = vmatpush1.msra.mxu0 0.0
  %2383 = vmatprep.subr.mxu0 0.0
  %2384 = vmatpush1.msra.mxu0 0.0
  %2385 = vmatprep.subr.mxu0 0.0
  %2386 = vmatpush1.msra.mxu0 0.0
  %2387 = vmatprep.subr.mxu0 0.0
  %2388 = vmatpush1.msra.mxu0 0.0
  %2389 = vmatprep.subr.mxu0 0.0
  %2390 = vmatpush1.msra.mxu0 0.0
  %2391 = vmatprep.subr.mxu0 0.0
  %2392 = vmatpush1.msra.mxu0 0.0
  %2393 = vmatprep.subr.mxu0 0.0
  %2394 = vmatpush1.msra.mxu0 0.0
  %2395 = vmatprep.subr.mxu0 0.0
  %2396 = vmatpush1.msra.mxu0 0.0
  %2397 = vmatprep.subr.mxu0 0.0
  %2398 = vmatpush1.msra.mxu0 0.0
  %2399 = vmatprep.subr.mxu0 0.0
  %2400 = vmatpush1.msra.mxu0 0.0
  %2401 = vmatprep.subr.mxu0 0.0
  %2402 = vmatpush1.msra.mxu0 0.0
  %2403 = vmatprep.subr.mxu0 0.0
  %2404 = vmatpush1.msra.mxu0 0.0
  %2405 = vmatprep.subr.mxu0 0.0
  %2406 = vmatpush1.msra.mxu0 0.0
  %2407 = vmatprep.subr.mxu0 0.0
  %2408 = vmatpush1.msra.mxu0 0.0
  %2409 = vmatprep.subr.mxu0 0.0
  %2410 = vmatpush1.msra.mxu0 0.0
  %2411 = vmatprep.subr.mxu0 0.0
  %2412 = vmatpush1.msra.mxu0 0.0
  %2413 = vmatprep.subr.mxu0 0.0
  %2414 = vmatpush1.msra.mxu0 0.0
  %2415 = vmatprep.subr.mxu0 0.0
  %2416 = vmatpush1.msra.mxu0 0.0
  %2417 = vmatprep.subr.mxu0 0.0
  %2418 = vmatpush1.msra.mxu0 0.0
  %2419 = vmatprep.subr.mxu0 0.0
  %2420 = vmatpush1.msra.mxu0 0.0
  %2421 = vmatprep.subr.mxu0 0.0
  %2422 = vmatpush1.msra.mxu0 0.0
  %2423 = vmatprep.mubr.f32.mxu0 0.0
  %2424 = vmatmul.mubr.f32.gmra.mrb[0].mxu0 %v2357
  %v2425 = vpop.f32.mrb[0].mxu0
  %v2426 = vadd.f32 0.0, %v2425
  %v2427 = vpop.f32.mrb[0].mxu0
  %v2428 = vadd.f32 0.0, %v2427
  %2429 = vdwg.mxu0
  %2430 = vmatprep.subr.mxu0 %v2353
  %2431 = vmatpush1.msra.mxu0 %v2352
  %2432 = vmatprep.subr.mxu0 0.0
  %2433 = vmatpush1.msra.mxu0 0.0
  %2434 = vmatprep.subr.mxu0 0.0
  %2435 = vmatpush1.msra.mxu0 0.0
  %2436 = vmatprep.subr.mxu0 0.0
  %2437 = vmatpush1.msra.mxu0 0.0
  %2438 = vmatprep.subr.mxu0 0.0
  %2439 = vmatpush1.msra.mxu0 0.0
  %2440 = vmatprep.subr.mxu0 0.0
  %2441 = vmatpush1.msra.mxu0 0.0
  %2442 = vmatprep.subr.mxu0 0.0
  %2443 = vmatpush1.msra.mxu0 0.0
  %2444 = vmatprep.subr.mxu0 0.0
  %2445 = vmatpush1.msra.mxu0 0.0
  %2446 = vmatprep.subr.mxu0 0.0
  %2447 = vmatpush1.msra.mxu0 0.0
  %2448 = vmatprep.subr.mxu0 0.0
  %2449 = vmatpush1.msra.mxu0 0.0
  %2450 = vmatprep.subr.mxu0 0.0
  %2451 = vmatpush1.msra.mxu0 0.0
  %2452 = vmatprep.subr.mxu0 0.0
  %2453 = vmatpush1.msra.mxu0 0.0
  %2454 = vmatprep.subr.mxu0 0.0
  %2455 = vmatpush1.msra.mxu0 0.0
  %2456 = vmatprep.subr.mxu0 0.0
  %2457 = vmatpush1.msra.mxu0 0.0
  %2458 = vmatprep.subr.mxu0 0.0
  %2459 = vmatpush1.msra.mxu0 0.0
  %2460 = vmatprep.subr.mxu0 0.0
  %2461 = vmatpush1.msra.mxu0 0.0
  %2462 = vmatprep.subr.mxu0 0.0
  %2463 = vmatpush1.msra.mxu0 0.0
  %2464 = vmatprep.subr.mxu0 0.0
  %2465 = vmatpush1.msra.mxu0 0.0
  %2466 = vmatprep.subr.mxu0 0.0
  %2467 = vmatpush1.msra.mxu0 0.0
  %2468 = vmatprep.subr.mxu0 0.0
  %2469 = vmatpush1.msra.mxu0 0.0
  %2470 = vmatprep.subr.mxu0 0.0
  %2471 = vmatpush1.msra.mxu0 0.0
  %2472 = vmatprep.subr.mxu0 0.0
  %2473 = vmatpush1.msra.mxu0 0.0
  %2474 = vmatprep.subr.mxu0 0.0
  %2475 = vmatpush1.msra.mxu0 0.0
  %2476 = vmatprep.subr.mxu0 0.0
  %2477 = vmatpush1.msra.mxu0 0.0
  %2478 = vmatprep.subr.mxu0 0.0
  %2479 = vmatpush1.msra.mxu0 0.0
  %2480 = vmatprep.subr.mxu0 0.0
  %2481 = vmatpush1.msra.mxu0 0.0
  %2482 = vmatprep.subr.mxu0 0.0
  %2483 = vmatpush1.msra.mxu0 0.0
  %2484 = vmatprep.subr.mxu0 0.0
  %2485 = vmatpush1.msra.mxu0 0.0
  %2486 = vmatprep.subr.mxu0 0.0
  %2487 = vmatpush1.msra.mxu0 0.0
  %2488 = vmatprep.subr.mxu0 0.0
  %2489 = vmatpush1.msra.mxu0 0.0
  %2490 = vmatprep.subr.mxu0 0.0
  %2491 = vmatpush1.msra.mxu0 0.0
  %2492 = vmatprep.subr.mxu0 0.0
  %2493 = vmatpush1.msra.mxu0 0.0
  %2494 = vmatprep.mubr.f32.mxu0 0.0
  %2495 = vmatmul.mubr.f32.gmra.mrb[0].mxu0 %v2357
  %v2496 = vpop.f32.mrb[0].mxu0
  %v2497 = vadd.f32 0.0, %v2496
  %v2498 = vpop.f32.mrb[0].mxu0
  %v2499 = vadd.f32 0.0, %v2498
  %2500 = vdwg.mxu0
  %v2501 = vadd.f32 %v2334, %v2426
  %v2502 = vadd.f32 %v2335, %v2428
  %v2503 = vadd.f32 %v2336, %v2497
  %v2504 = vadd.f32 %v2337, %v2499
  %2505 = vrot.lane.b32.xlu0 %v1857, 1
  %v2506 = vpop.permute.xlu0 %2505
  %2507 = vrot.lane.b32.xlu0 %v1858, 1
  %v2508 = vpop.permute.xlu0 %2507
  %2509 = vrot.lane.b32.xlu0 %v1859, 1
  %v2510 = vpop.permute.xlu0 %2509
  %2511 = vrot.lane.b32.xlu0 %v1860, 1
  %v2512 = vpop.permute.xlu0 %2511
  %v2513 = vsel %vm807, %v2510, %v2512
  %v2514 = vsel %vm807, %v2508, %v2510
  %v2515 = vsel %vm807, %v2506, %v2508
  %v2516 = vsel %vm807, %v2512, %v2506
  %v2517 = vmul.f32 %v2516, %v818
  %v2518 = vmul.f32 %v2515, %v822
  %v2519 = vmul.f32 %v2514, %v826
  %v2520 = vmul.f32 %v2513, %v830
  %s2521 = scalar_lea.vmem %s2, 24
  %v2522 = vld [vmem:[%s2521] sm:$0xff]
  %v2524 = vsel %vm1880, %v2522, 0
  %2526 = vmatprep.subr.mxu0 %v2518
  %2527 = vmatpush1.msra.mxu0 %v2517
  %2528 = vmatprep.subr.mxu0 0.0
  %2529 = vmatpush1.msra.mxu0 0.0
  %2530 = vmatprep.subr.mxu0 0.0
  %2531 = vmatpush1.msra.mxu0 0.0
  %2532 = vmatprep.subr.mxu0 0.0
  %2533 = vmatpush1.msra.mxu0 0.0
  %2534 = vmatprep.subr.mxu0 0.0
  %2535 = vmatpush1.msra.mxu0 0.0
  %2536 = vmatprep.subr.mxu0 0.0
  %2537 = vmatpush1.msra.mxu0 0.0
  %2538 = vmatprep.subr.mxu0 0.0
  %2539 = vmatpush1.msra.mxu0 0.0
  %2540 = vmatprep.subr.mxu0 0.0
  %2541 = vmatpush1.msra.mxu0 0.0
  %2542 = vmatprep.subr.mxu0 0.0
  %2543 = vmatpush1.msra.mxu0 0.0
  %2544 = vmatprep.subr.mxu0 0.0
  %2545 = vmatpush1.msra.mxu0 0.0
  %2546 = vmatprep.subr.mxu0 0.0
  %2547 = vmatpush1.msra.mxu0 0.0
  %2548 = vmatprep.subr.mxu0 0.0
  %2549 = vmatpush1.msra.mxu0 0.0
  %2550 = vmatprep.subr.mxu0 0.0
  %2551 = vmatpush1.msra.mxu0 0.0
  %2552 = vmatprep.subr.mxu0 0.0
  %2553 = vmatpush1.msra.mxu0 0.0
  %2554 = vmatprep.subr.mxu0 0.0
  %2555 = vmatpush1.msra.mxu0 0.0
  %2556 = vmatprep.subr.mxu0 0.0
  %2557 = vmatpush1.msra.mxu0 0.0
  %2558 = vmatprep.subr.mxu0 0.0
  %2559 = vmatpush1.msra.mxu0 0.0
  %2560 = vmatprep.subr.mxu0 0.0
  %2561 = vmatpush1.msra.mxu0 0.0
  %2562 = vmatprep.subr.mxu0 0.0
  %2563 = vmatpush1.msra.mxu0 0.0
  %2564 = vmatprep.subr.mxu0 0.0
  %2565 = vmatpush1.msra.mxu0 0.0
  %2566 = vmatprep.subr.mxu0 0.0
  %2567 = vmatpush1.msra.mxu0 0.0
  %2568 = vmatprep.subr.mxu0 0.0
  %2569 = vmatpush1.msra.mxu0 0.0
  %2570 = vmatprep.subr.mxu0 0.0
  %2571 = vmatpush1.msra.mxu0 0.0
  %2572 = vmatprep.subr.mxu0 0.0
  %2573 = vmatpush1.msra.mxu0 0.0
  %2574 = vmatprep.subr.mxu0 0.0
  %2575 = vmatpush1.msra.mxu0 0.0
  %2576 = vmatprep.subr.mxu0 0.0
  %2577 = vmatpush1.msra.mxu0 0.0
  %2578 = vmatprep.subr.mxu0 0.0
  %2579 = vmatpush1.msra.mxu0 0.0
  %2580 = vmatprep.subr.mxu0 0.0
  %2581 = vmatpush1.msra.mxu0 0.0
  %2582 = vmatprep.subr.mxu0 0.0
  %2583 = vmatpush1.msra.mxu0 0.0
  %2584 = vmatprep.subr.mxu0 0.0
  %2585 = vmatpush1.msra.mxu0 0.0
  %2586 = vmatprep.subr.mxu0 0.0
  %2587 = vmatpush1.msra.mxu0 0.0
  %2588 = vmatprep.subr.mxu0 0.0
  %2589 = vmatpush1.msra.mxu0 0.0
  %2590 = vmatprep.mubr.f32.mxu0 0.0
  %2591 = vmatmul.mubr.f32.gmra.mrb[0].mxu0 %v2524
  %v2592 = vpop.f32.mrb[0].mxu0
  %v2593 = vadd.f32 0.0, %v2592
  %v2594 = vpop.f32.mrb[0].mxu0
  %v2595 = vadd.f32 0.0, %v2594
  %2596 = vdwg.mxu0
  %2597 = vmatprep.subr.mxu0 %v2520
  %2598 = vmatpush1.msra.mxu0 %v2519
  %2599 = vmatprep.subr.mxu0 0.0
  %2600 = vmatpush1.msra.mxu0 0.0
  %2601 = vmatprep.subr.mxu0 0.0
  %2602 = vmatpush1.msra.mxu0 0.0
  %2603 = vmatprep.subr.mxu0 0.0
  %2604 = vmatpush1.msra.mxu0 0.0
  %2605 = vmatprep.subr.mxu0 0.0
  %2606 = vmatpush1.msra.mxu0 0.0
  %2607 = vmatprep.subr.mxu0 0.0
  %2608 = vmatpush1.msra.mxu0 0.0
  %2609 = vmatprep.subr.mxu0 0.0
  %2610 = vmatpush1.msra.mxu0 0.0
  %2611 = vmatprep.subr.mxu0 0.0
  %2612 = vmatpush1.msra.mxu0 0.0
  %2613 = vmatprep.subr.mxu0 0.0
  %2614 = vmatpush1.msra.mxu0 0.0
  %2615 = vmatprep.subr.mxu0 0.0
  %2616 = vmatpush1.msra.mxu0 0.0
  %2617 = vmatprep.subr.mxu0 0.0
  %2618 = vmatpush1.msra.mxu0 0.0
  %2619 = vmatprep.subr.mxu0 0.0
  %2620 = vmatpush1.msra.mxu0 0.0
  %2621 = vmatprep.subr.mxu0 0.0
  %2622 = vmatpush1.msra.mxu0 0.0
  %2623 = vmatprep.subr.mxu0 0.0
  %2624 = vmatpush1.msra.mxu0 0.0
  %2625 = vmatprep.subr.mxu0 0.0
  %2626 = vmatpush1.msra.mxu0 0.0
  %2627 = vmatprep.subr.mxu0 0.0
  %2628 = vmatpush1.msra.mxu0 0.0
  %2629 = vmatprep.subr.mxu0 0.0
  %2630 = vmatpush1.msra.mxu0 0.0
  %2631 = vmatprep.subr.mxu0 0.0
  %2632 = vmatpush1.msra.mxu0 0.0
  %2633 = vmatprep.subr.mxu0 0.0
  %2634 = vmatpush1.msra.mxu0 0.0
  %2635 = vmatprep.subr.mxu0 0.0
  %2636 = vmatpush1.msra.mxu0 0.0
  %2637 = vmatprep.subr.mxu0 0.0
  %2638 = vmatpush1.msra.mxu0 0.0
  %2639 = vmatprep.subr.mxu0 0.0
  %2640 = vmatpush1.msra.mxu0 0.0
  %2641 = vmatprep.subr.mxu0 0.0
  %2642 = vmatpush1.msra.mxu0 0.0
  %2643 = vmatprep.subr.mxu0 0.0
  %2644 = vmatpush1.msra.mxu0 0.0
  %2645 = vmatprep.subr.mxu0 0.0
  %2646 = vmatpush1.msra.mxu0 0.0
  %2647 = vmatprep.subr.mxu0 0.0
  %2648 = vmatpush1.msra.mxu0 0.0
  %2649 = vmatprep.subr.mxu0 0.0
  %2650 = vmatpush1.msra.mxu0 0.0
  %2651 = vmatprep.subr.mxu0 0.0
  %2652 = vmatpush1.msra.mxu0 0.0
  %2653 = vmatprep.subr.mxu0 0.0
  %2654 = vmatpush1.msra.mxu0 0.0
  %2655 = vmatprep.subr.mxu0 0.0
  %2656 = vmatpush1.msra.mxu0 0.0
  %2657 = vmatprep.subr.mxu0 0.0
  %2658 = vmatpush1.msra.mxu0 0.0
  %2659 = vmatprep.subr.mxu0 0.0
  %2660 = vmatpush1.msra.mxu0 0.0
  %2661 = vmatprep.mubr.f32.mxu0 0.0
  %2662 = vmatmul.mubr.f32.gmra.mrb[0].mxu0 %v2524
  %v2663 = vpop.f32.mrb[0].mxu0
  %v2664 = vadd.f32 0.0, %v2663
  %v2665 = vpop.f32.mrb[0].mxu0
  %v2666 = vadd.f32 0.0, %v2665
  %2667 = vdwg.mxu0
  %v2668 = vadd.f32 %v2501, %v2593
  %v2669 = vadd.f32 %v2502, %v2595
  %v2670 = vadd.f32 %v2503, %v2664
  %v2671 = vadd.f32 %v2504, %v2666
  %2672 = vrot.lane.b32.xlu0 %v1857, 127
  %v2673 = vpop.permute.xlu0 %2672
  %2674 = vrot.lane.b32.xlu0 %v1858, 127
  %v2675 = vpop.permute.xlu0 %2674
  %2676 = vrot.lane.b32.xlu0 %v1859, 127
  %v2677 = vpop.permute.xlu0 %2676
  %2678 = vrot.lane.b32.xlu0 %v1860, 127
  %v2679 = vpop.permute.xlu0 %2678
  %v2680 = vsel %vm1010, %v2677, %v2679
  %v2681 = vsel %vm1010, %v2675, %v2677
  %v2682 = vsel %vm1010, %v2673, %v2675
  %v2683 = vsel %vm1010, %v2679, %v2673
  %v2684 = vmul.f32 %v2682, %v1021
  %v2685 = vmul.f32 %v2681, %v1025
  %v2686 = vmul.f32 %v2680, %v1029
  %v2687 = vmul.f32 %v2683, %v1033
  %s2688 = scalar_lea.vmem %s2, 40
  %v2689 = vld [vmem:[%s2688] sm:$0xff]
  %v2691 = vsel %vm1880, %v2689, 0
  %2693 = vmatprep.subr.mxu0 %v2685
  %2694 = vmatpush1.msra.mxu0 %v2684
  %2695 = vmatprep.subr.mxu0 0.0
  %2696 = vmatpush1.msra.mxu0 0.0
  %2697 = vmatprep.subr.mxu0 0.0
  %2698 = vmatpush1.msra.mxu0 0.0
  %2699 = vmatprep.subr.mxu0 0.0
  %2700 = vmatpush1.msra.mxu0 0.0
  %2701 = vmatprep.subr.mxu0 0.0
  %2702 = vmatpush1.msra.mxu0 0.0
  %2703 = vmatprep.subr.mxu0 0.0
  %2704 = vmatpush1.msra.mxu0 0.0
  %2705 = vmatprep.subr.mxu0 0.0
  %2706 = vmatpush1.msra.mxu0 0.0
  %2707 = vmatprep.subr.mxu0 0.0
  %2708 = vmatpush1.msra.mxu0 0.0
  %2709 = vmatprep.subr.mxu0 0.0
  %2710 = vmatpush1.msra.mxu0 0.0
  %2711 = vmatprep.subr.mxu0 0.0
  %2712 = vmatpush1.msra.mxu0 0.0
  %2713 = vmatprep.subr.mxu0 0.0
  %2714 = vmatpush1.msra.mxu0 0.0
  %2715 = vmatprep.subr.mxu0 0.0
  %2716 = vmatpush1.msra.mxu0 0.0
  %2717 = vmatprep.subr.mxu0 0.0
  %2718 = vmatpush1.msra.mxu0 0.0
  %2719 = vmatprep.subr.mxu0 0.0
  %2720 = vmatpush1.msra.mxu0 0.0
  %2721 = vmatprep.subr.mxu0 0.0
  %2722 = vmatpush1.msra.mxu0 0.0
  %2723 = vmatprep.subr.mxu0 0.0
  %2724 = vmatpush1.msra.mxu0 0.0
  %2725 = vmatprep.subr.mxu0 0.0
  %2726 = vmatpush1.msra.mxu0 0.0
  %2727 = vmatprep.subr.mxu0 0.0
  %2728 = vmatpush1.msra.mxu0 0.0
  %2729 = vmatprep.subr.mxu0 0.0
  %2730 = vmatpush1.msra.mxu0 0.0
  %2731 = vmatprep.subr.mxu0 0.0
  %2732 = vmatpush1.msra.mxu0 0.0
  %2733 = vmatprep.subr.mxu0 0.0
  %2734 = vmatpush1.msra.mxu0 0.0
  %2735 = vmatprep.subr.mxu0 0.0
  %2736 = vmatpush1.msra.mxu0 0.0
  %2737 = vmatprep.subr.mxu0 0.0
  %2738 = vmatpush1.msra.mxu0 0.0
  %2739 = vmatprep.subr.mxu0 0.0
  %2740 = vmatpush1.msra.mxu0 0.0
  %2741 = vmatprep.subr.mxu0 0.0
  %2742 = vmatpush1.msra.mxu0 0.0
  %2743 = vmatprep.subr.mxu0 0.0
  %2744 = vmatpush1.msra.mxu0 0.0
  %2745 = vmatprep.subr.mxu0 0.0
  %2746 = vmatpush1.msra.mxu0 0.0
  %2747 = vmatprep.subr.mxu0 0.0
  %2748 = vmatpush1.msra.mxu0 0.0
  %2749 = vmatprep.subr.mxu0 0.0
  %2750 = vmatpush1.msra.mxu0 0.0
  %2751 = vmatprep.subr.mxu0 0.0
  %2752 = vmatpush1.msra.mxu0 0.0
  %2753 = vmatprep.subr.mxu0 0.0
  %2754 = vmatpush1.msra.mxu0 0.0
  %2755 = vmatprep.subr.mxu0 0.0
  %2756 = vmatpush1.msra.mxu0 0.0
  %2757 = vmatprep.mubr.f32.mxu0 0.0
  %2758 = vmatmul.mubr.f32.gmra.mrb[0].mxu0 %v2691
  %v2759 = vpop.f32.mrb[0].mxu0
  %v2760 = vadd.f32 0.0, %v2759
  %v2761 = vpop.f32.mrb[0].mxu0
  %v2762 = vadd.f32 0.0, %v2761
  %2763 = vdwg.mxu0
  %2764 = vmatprep.subr.mxu0 %v2687
  %2765 = vmatpush1.msra.mxu0 %v2686
  %2766 = vmatprep.subr.mxu0 0.0
  %2767 = vmatpush1.msra.mxu0 0.0
  %2768 = vmatprep.subr.mxu0 0.0
  %2769 = vmatpush1.msra.mxu0 0.0
  %2770 = vmatprep.subr.mxu0 0.0
  %2771 = vmatpush1.msra.mxu0 0.0
  %2772 = vmatprep.subr.mxu0 0.0
  %2773 = vmatpush1.msra.mxu0 0.0
  %2774 = vmatprep.subr.mxu0 0.0
  %2775 = vmatpush1.msra.mxu0 0.0
  %2776 = vmatprep.subr.mxu0 0.0
  %2777 = vmatpush1.msra.mxu0 0.0
  %2778 = vmatprep.subr.mxu0 0.0
  %2779 = vmatpush1.msra.mxu0 0.0
  %2780 = vmatprep.subr.mxu0 0.0
  %2781 = vmatpush1.msra.mxu0 0.0
  %2782 = vmatprep.subr.mxu0 0.0
  %2783 = vmatpush1.msra.mxu0 0.0
  %2784 = vmatprep.subr.mxu0 0.0
  %2785 = vmatpush1.msra.mxu0 0.0
  %2786 = vmatprep.subr.mxu0 0.0
  %2787 = vmatpush1.msra.mxu0 0.0
  %2788 = vmatprep.subr.mxu0 0.0
  %2789 = vmatpush1.msra.mxu0 0.0
  %2790 = vmatprep.subr.mxu0 0.0
  %2791 = vmatpush1.msra.mxu0 0.0
  %2792 = vmatprep.subr.mxu0 0.0
  %2793 = vmatpush1.msra.mxu0 0.0
  %2794 = vmatprep.subr.mxu0 0.0
  %2795 = vmatpush1.msra.mxu0 0.0
  %2796 = vmatprep.subr.mxu0 0.0
  %2797 = vmatpush1.msra.mxu0 0.0
  %2798 = vmatprep.subr.mxu0 0.0
  %2799 = vmatpush1.msra.mxu0 0.0
  %2800 = vmatprep.subr.mxu0 0.0
  %2801 = vmatpush1.msra.mxu0 0.0
  %2802 = vmatprep.subr.mxu0 0.0
  %2803 = vmatpush1.msra.mxu0 0.0
  %2804 = vmatprep.subr.mxu0 0.0
  %2805 = vmatpush1.msra.mxu0 0.0
  %2806 = vmatprep.subr.mxu0 0.0
  %2807 = vmatpush1.msra.mxu0 0.0
  %2808 = vmatprep.subr.mxu0 0.0
  %2809 = vmatpush1.msra.mxu0 0.0
  %2810 = vmatprep.subr.mxu0 0.0
  %2811 = vmatpush1.msra.mxu0 0.0
  %2812 = vmatprep.subr.mxu0 0.0
  %2813 = vmatpush1.msra.mxu0 0.0
  %2814 = vmatprep.subr.mxu0 0.0
  %2815 = vmatpush1.msra.mxu0 0.0
  %2816 = vmatprep.subr.mxu0 0.0
  %2817 = vmatpush1.msra.mxu0 0.0
  %2818 = vmatprep.subr.mxu0 0.0
  %2819 = vmatpush1.msra.mxu0 0.0
  %2820 = vmatprep.subr.mxu0 0.0
  %2821 = vmatpush1.msra.mxu0 0.0
  %2822 = vmatprep.subr.mxu0 0.0
  %2823 = vmatpush1.msra.mxu0 0.0
  %2824 = vmatprep.subr.mxu0 0.0
  %2825 = vmatpush1.msra.mxu0 0.0
  %2826 = vmatprep.subr.mxu0 0.0
  %2827 = vmatpush1.msra.mxu0 0.0
  %2828 = vmatprep.mubr.f32.mxu0 0.0
  %2829 = vmatmul.mubr.f32.gmra.mrb[0].mxu0 %v2691
  %v2830 = vpop.f32.mrb[0].mxu0
  %v2831 = vadd.f32 0.0, %v2830
  %v2832 = vpop.f32.mrb[0].mxu0
  %v2833 = vadd.f32 0.0, %v2832
  %2834 = vdwg.mxu0
  %v2835 = vadd.f32 %v2668, %v2760
  %v2836 = vadd.f32 %v2669, %v2762
  %v2837 = vadd.f32 %v2670, %v2831
  %v2838 = vadd.f32 %v2671, %v2833
  %2839 = vrot.lane.b32.xlu0 %v1857, 113
  %v2840 = vpop.permute.xlu0 %2839
  %2841 = vrot.lane.b32.xlu0 %v1858, 113
  %v2842 = vpop.permute.xlu0 %2841
  %2843 = vrot.lane.b32.xlu0 %v1859, 113
  %v2844 = vpop.permute.xlu0 %2843
  %2845 = vrot.lane.b32.xlu0 %v1860, 113
  %v2846 = vpop.permute.xlu0 %2845
  %v2847 = vsel %vm1213, %v2844, %v2846
  %v2848 = vsel %vm1213, %v2842, %v2844
  %v2849 = vsel %vm1213, %v2840, %v2842
  %v2850 = vsel %vm1213, %v2846, %v2840
  %v2851 = vmul.f32 %v2849, %v1224
  %v2852 = vmul.f32 %v2848, %v1228
  %v2853 = vmul.f32 %v2847, %v1232
  %v2854 = vmul.f32 %v2850, %v1236
  %s2855 = scalar_lea.vmem %s2, 48
  %v2856 = vld [vmem:[%s2855] sm:$0xff]
  %v2858 = vsel %vm1880, %v2856, 0
  %2860 = vmatprep.subr.mxu0 %v2852
  %2861 = vmatpush1.msra.mxu0 %v2851
  %2862 = vmatprep.subr.mxu0 0.0
  %2863 = vmatpush1.msra.mxu0 0.0
  %2864 = vmatprep.subr.mxu0 0.0
  %2865 = vmatpush1.msra.mxu0 0.0
  %2866 = vmatprep.subr.mxu0 0.0
  %2867 = vmatpush1.msra.mxu0 0.0
  %2868 = vmatprep.subr.mxu0 0.0
  %2869 = vmatpush1.msra.mxu0 0.0
  %2870 = vmatprep.subr.mxu0 0.0
  %2871 = vmatpush1.msra.mxu0 0.0
  %2872 = vmatprep.subr.mxu0 0.0
  %2873 = vmatpush1.msra.mxu0 0.0
  %2874 = vmatprep.subr.mxu0 0.0
  %2875 = vmatpush1.msra.mxu0 0.0
  %2876 = vmatprep.subr.mxu0 0.0
  %2877 = vmatpush1.msra.mxu0 0.0
  %2878 = vmatprep.subr.mxu0 0.0
  %2879 = vmatpush1.msra.mxu0 0.0
  %2880 = vmatprep.subr.mxu0 0.0
  %2881 = vmatpush1.msra.mxu0 0.0
  %2882 = vmatprep.subr.mxu0 0.0
  %2883 = vmatpush1.msra.mxu0 0.0
  %2884 = vmatprep.subr.mxu0 0.0
  %2885 = vmatpush1.msra.mxu0 0.0
  %2886 = vmatprep.subr.mxu0 0.0
  %2887 = vmatpush1.msra.mxu0 0.0
  %2888 = vmatprep.subr.mxu0 0.0
  %2889 = vmatpush1.msra.mxu0 0.0
  %2890 = vmatprep.subr.mxu0 0.0
  %2891 = vmatpush1.msra.mxu0 0.0
  %2892 = vmatprep.subr.mxu0 0.0
  %2893 = vmatpush1.msra.mxu0 0.0
  %2894 = vmatprep.subr.mxu0 0.0
  %2895 = vmatpush1.msra.mxu0 0.0
  %2896 = vmatprep.subr.mxu0 0.0
  %2897 = vmatpush1.msra.mxu0 0.0
  %2898 = vmatprep.subr.mxu0 0.0
  %2899 = vmatpush1.msra.mxu0 0.0
  %2900 = vmatprep.subr.mxu0 0.0
  %2901 = vmatpush1.msra.mxu0 0.0
  %2902 = vmatprep.subr.mxu0 0.0
  %2903 = vmatpush1.msra.mxu0 0.0
  %2904 = vmatprep.subr.mxu0 0.0
  %2905 = vmatpush1.msra.mxu0 0.0
  %2906 = vmatprep.subr.mxu0 0.0
  %2907 = vmatpush1.msra.mxu0 0.0
  %2908 = vmatprep.subr.mxu0 0.0
  %2909 = vmatpush1.msra.mxu0 0.0
  %2910 = vmatprep.subr.mxu0 0.0
  %2911 = vmatpush1.msra.mxu0 0.0
  %2912 = vmatprep.subr.mxu0 0.0
  %2913 = vmatpush1.msra.mxu0 0.0
  %2914 = vmatprep.subr.mxu0 0.0
  %2915 = vmatpush1.msra.mxu0 0.0
  %2916 = vmatprep.subr.mxu0 0.0
  %2917 = vmatpush1.msra.mxu0 0.0
  %2918 = vmatprep.subr.mxu0 0.0
  %2919 = vmatpush1.msra.mxu0 0.0
  %2920 = vmatprep.subr.mxu0 0.0
  %2921 = vmatpush1.msra.mxu0 0.0
  %2922 = vmatprep.subr.mxu0 0.0
  %2923 = vmatpush1.msra.mxu0 0.0
  %2924 = vmatprep.mubr.f32.mxu0 0.0
  %2925 = vmatmul.mubr.f32.gmra.mrb[0].mxu0 %v2858
  %v2926 = vpop.f32.mrb[0].mxu0
  %v2927 = vadd.f32 0.0, %v2926
  %v2928 = vpop.f32.mrb[0].mxu0
  %v2929 = vadd.f32 0.0, %v2928
  %2930 = vdwg.mxu0
  %2931 = vmatprep.subr.mxu0 %v2854
  %2932 = vmatpush1.msra.mxu0 %v2853
  %2933 = vmatprep.subr.mxu0 0.0
  %2934 = vmatpush1.msra.mxu0 0.0
  %2935 = vmatprep.subr.mxu0 0.0
  %2936 = vmatpush1.msra.mxu0 0.0
  %2937 = vmatprep.subr.mxu0 0.0
  %2938 = vmatpush1.msra.mxu0 0.0
  %2939 = vmatprep.subr.mxu0 0.0
  %2940 = vmatpush1.msra.mxu0 0.0
  %2941 = vmatprep.subr.mxu0 0.0
  %2942 = vmatpush1.msra.mxu0 0.0
  %2943 = vmatprep.subr.mxu0 0.0
  %2944 = vmatpush1.msra.mxu0 0.0
  %2945 = vmatprep.subr.mxu0 0.0
  %2946 = vmatpush1.msra.mxu0 0.0
  %2947 = vmatprep.subr.mxu0 0.0
  %2948 = vmatpush1.msra.mxu0 0.0
  %2949 = vmatprep.subr.mxu0 0.0
  %2950 = vmatpush1.msra.mxu0 0.0
  %2951 = vmatprep.subr.mxu0 0.0
  %2952 = vmatpush1.msra.mxu0 0.0
  %2953 = vmatprep.subr.mxu0 0.0
  %2954 = vmatpush1.msra.mxu0 0.0
  %2955 = vmatprep.subr.mxu0 0.0
  %2956 = vmatpush1.msra.mxu0 0.0
  %2957 = vmatprep.subr.mxu0 0.0
  %2958 = vmatpush1.msra.mxu0 0.0
  %2959 = vmatprep.subr.mxu0 0.0
  %2960 = vmatpush1.msra.mxu0 0.0
  %2961 = vmatprep.subr.mxu0 0.0
  %2962 = vmatpush1.msra.mxu0 0.0
  %2963 = vmatprep.subr.mxu0 0.0
  %2964 = vmatpush1.msra.mxu0 0.0
  %2965 = vmatprep.subr.mxu0 0.0
  %2966 = vmatpush1.msra.mxu0 0.0
  %2967 = vmatprep.subr.mxu0 0.0
  %2968 = vmatpush1.msra.mxu0 0.0
  %2969 = vmatprep.subr.mxu0 0.0
  %2970 = vmatpush1.msra.mxu0 0.0
  %2971 = vmatprep.subr.mxu0 0.0
  %2972 = vmatpush1.msra.mxu0 0.0
  %2973 = vmatprep.subr.mxu0 0.0
  %2974 = vmatpush1.msra.mxu0 0.0
  %2975 = vmatprep.subr.mxu0 0.0
  %2976 = vmatpush1.msra.mxu0 0.0
  %2977 = vmatprep.subr.mxu0 0.0
  %2978 = vmatpush1.msra.mxu0 0.0
  %2979 = vmatprep.subr.mxu0 0.0
  %2980 = vmatpush1.msra.mxu0 0.0
  %2981 = vmatprep.subr.mxu0 0.0
  %2982 = vmatpush1.msra.mxu0 0.0
  %2983 = vmatprep.subr.mxu0 0.0
  %2984 = vmatpush1.msra.mxu0 0.0
  %2985 = vmatprep.subr.mxu0 0.0
  %2986 = vmatpush1.msra.mxu0 0.0
  %2987 = vmatprep.subr.mxu0 0.0
  %2988 = vmatpush1.msra.mxu0 0.0
  %2989 = vmatprep.subr.mxu0 0.0
  %2990 = vmatpush1.msra.mxu0 0.0
  %2991 = vmatprep.subr.mxu0 0.0
  %2992 = vmatpush1.msra.mxu0 0.0
  %2993 = vmatprep.subr.mxu0 0.0
  %2994 = vmatpush1.msra.mxu0 0.0
  %2995 = vmatprep.mubr.f32.mxu0 0.0
  %2996 = vmatmul.mubr.f32.gmra.mrb[0].mxu0 %v2858
  %v2997 = vpop.f32.mrb[0].mxu0
  %v2998 = vadd.f32 0.0, %v2997
  %v2999 = vpop.f32.mrb[0].mxu0
  %v3000 = vadd.f32 0.0, %v2999
  %3001 = vdwg.mxu0
  %v3002 = vadd.f32 %v2835, %v2927
  %v3003 = vadd.f32 %v2836, %v2929
  %v3004 = vadd.f32 %v2837, %v2998
  %v3005 = vadd.f32 %v2838, %v3000
  %3006 = vrot.lane.b32.xlu0 %v1857, 112
  %v3007 = vpop.permute.xlu0 %3006
  %3008 = vrot.lane.b32.xlu0 %v1858, 112
  %v3009 = vpop.permute.xlu0 %3008
  %3010 = vrot.lane.b32.xlu0 %v1859, 112
  %v3011 = vpop.permute.xlu0 %3010
  %3012 = vrot.lane.b32.xlu0 %v1860, 112
  %v3013 = vpop.permute.xlu0 %3012
  %v3014 = vsel %vm1416, %v3011, %v3013
  %v3015 = vsel %vm1416, %v3009, %v3011
  %v3016 = vsel %vm1416, %v3007, %v3009
  %v3017 = vsel %vm1416, %v3013, %v3007
  %v3018 = vmul.f32 %v3016, %v1427
  %v3019 = vmul.f32 %v3015, %v1431
  %v3020 = vmul.f32 %v3014, %v1435
  %v3021 = vmul.f32 %v3017, %v1439
  %s3022 = scalar_lea.vmem %s2, 56
  %v3023 = vld [vmem:[%s3022] sm:$0xff]
  %v3025 = vsel %vm1880, %v3023, 0
  %3027 = vmatprep.subr.mxu0 %v3019
  %3028 = vmatpush1.msra.mxu0 %v3018
  %3029 = vmatprep.subr.mxu0 0.0
  %3030 = vmatpush1.msra.mxu0 0.0
  %3031 = vmatprep.subr.mxu0 0.0
  %3032 = vmatpush1.msra.mxu0 0.0
  %3033 = vmatprep.subr.mxu0 0.0
  %3034 = vmatpush1.msra.mxu0 0.0
  %3035 = vmatprep.subr.mxu0 0.0
  %3036 = vmatpush1.msra.mxu0 0.0
  %3037 = vmatprep.subr.mxu0 0.0
  %3038 = vmatpush1.msra.mxu0 0.0
  %3039 = vmatprep.subr.mxu0 0.0
  %3040 = vmatpush1.msra.mxu0 0.0
  %3041 = vmatprep.subr.mxu0 0.0
  %3042 = vmatpush1.msra.mxu0 0.0
  %3043 = vmatprep.subr.mxu0 0.0
  %3044 = vmatpush1.msra.mxu0 0.0
  %3045 = vmatprep.subr.mxu0 0.0
  %3046 = vmatpush1.msra.mxu0 0.0
  %3047 = vmatprep.subr.mxu0 0.0
  %3048 = vmatpush1.msra.mxu0 0.0
  %3049 = vmatprep.subr.mxu0 0.0
  %3050 = vmatpush1.msra.mxu0 0.0
  %3051 = vmatprep.subr.mxu0 0.0
  %3052 = vmatpush1.msra.mxu0 0.0
  %3053 = vmatprep.subr.mxu0 0.0
  %3054 = vmatpush1.msra.mxu0 0.0
  %3055 = vmatprep.subr.mxu0 0.0
  %3056 = vmatpush1.msra.mxu0 0.0
  %3057 = vmatprep.subr.mxu0 0.0
  %3058 = vmatpush1.msra.mxu0 0.0
  %3059 = vmatprep.subr.mxu0 0.0
  %3060 = vmatpush1.msra.mxu0 0.0
  %3061 = vmatprep.subr.mxu0 0.0
  %3062 = vmatpush1.msra.mxu0 0.0
  %3063 = vmatprep.subr.mxu0 0.0
  %3064 = vmatpush1.msra.mxu0 0.0
  %3065 = vmatprep.subr.mxu0 0.0
  %3066 = vmatpush1.msra.mxu0 0.0
  %3067 = vmatprep.subr.mxu0 0.0
  %3068 = vmatpush1.msra.mxu0 0.0
  %3069 = vmatprep.subr.mxu0 0.0
  %3070 = vmatpush1.msra.mxu0 0.0
  %3071 = vmatprep.subr.mxu0 0.0
  %3072 = vmatpush1.msra.mxu0 0.0
  %3073 = vmatprep.subr.mxu0 0.0
  %3074 = vmatpush1.msra.mxu0 0.0
  %3075 = vmatprep.subr.mxu0 0.0
  %3076 = vmatpush1.msra.mxu0 0.0
  %3077 = vmatprep.subr.mxu0 0.0
  %3078 = vmatpush1.msra.mxu0 0.0
  %3079 = vmatprep.subr.mxu0 0.0
  %3080 = vmatpush1.msra.mxu0 0.0
  %3081 = vmatprep.subr.mxu0 0.0
  %3082 = vmatpush1.msra.mxu0 0.0
  %3083 = vmatprep.subr.mxu0 0.0
  %3084 = vmatpush1.msra.mxu0 0.0
  %3085 = vmatprep.subr.mxu0 0.0
  %3086 = vmatpush1.msra.mxu0 0.0
  %3087 = vmatprep.subr.mxu0 0.0
  %3088 = vmatpush1.msra.mxu0 0.0
  %3089 = vmatprep.subr.mxu0 0.0
  %3090 = vmatpush1.msra.mxu0 0.0
  %3091 = vmatprep.mubr.f32.mxu0 0.0
  %3092 = vmatmul.mubr.f32.gmra.mrb[0].mxu0 %v3025
  %v3093 = vpop.f32.mrb[0].mxu0
  %v3094 = vadd.f32 0.0, %v3093
  %v3095 = vpop.f32.mrb[0].mxu0
  %v3096 = vadd.f32 0.0, %v3095
  %3097 = vdwg.mxu0
  %3098 = vmatprep.subr.mxu0 %v3021
  %3099 = vmatpush1.msra.mxu0 %v3020
  %3100 = vmatprep.subr.mxu0 0.0
  %3101 = vmatpush1.msra.mxu0 0.0
  %3102 = vmatprep.subr.mxu0 0.0
  %3103 = vmatpush1.msra.mxu0 0.0
  %3104 = vmatprep.subr.mxu0 0.0
  %3105 = vmatpush1.msra.mxu0 0.0
  %3106 = vmatprep.subr.mxu0 0.0
  %3107 = vmatpush1.msra.mxu0 0.0
  %3108 = vmatprep.subr.mxu0 0.0
  %3109 = vmatpush1.msra.mxu0 0.0
  %3110 = vmatprep.subr.mxu0 0.0
  %3111 = vmatpush1.msra.mxu0 0.0
  %3112 = vmatprep.subr.mxu0 0.0
  %3113 = vmatpush1.msra.mxu0 0.0
  %3114 = vmatprep.subr.mxu0 0.0
  %3115 = vmatpush1.msra.mxu0 0.0
  %3116 = vmatprep.subr.mxu0 0.0
  %3117 = vmatpush1.msra.mxu0 0.0
  %3118 = vmatprep.subr.mxu0 0.0
  %3119 = vmatpush1.msra.mxu0 0.0
  %3120 = vmatprep.subr.mxu0 0.0
  %3121 = vmatpush1.msra.mxu0 0.0
  %3122 = vmatprep.subr.mxu0 0.0
  %3123 = vmatpush1.msra.mxu0 0.0
  %3124 = vmatprep.subr.mxu0 0.0
  %3125 = vmatpush1.msra.mxu0 0.0
  %3126 = vmatprep.subr.mxu0 0.0
  %3127 = vmatpush1.msra.mxu0 0.0
  %3128 = vmatprep.subr.mxu0 0.0
  %3129 = vmatpush1.msra.mxu0 0.0
  %3130 = vmatprep.subr.mxu0 0.0
  %3131 = vmatpush1.msra.mxu0 0.0
  %3132 = vmatprep.subr.mxu0 0.0
  %3133 = vmatpush1.msra.mxu0 0.0
  %3134 = vmatprep.subr.mxu0 0.0
  %3135 = vmatpush1.msra.mxu0 0.0
  %3136 = vmatprep.subr.mxu0 0.0
  %3137 = vmatpush1.msra.mxu0 0.0
  %3138 = vmatprep.subr.mxu0 0.0
  %3139 = vmatpush1.msra.mxu0 0.0
  %3140 = vmatprep.subr.mxu0 0.0
  %3141 = vmatpush1.msra.mxu0 0.0
  %3142 = vmatprep.subr.mxu0 0.0
  %3143 = vmatpush1.msra.mxu0 0.0
  %3144 = vmatprep.subr.mxu0 0.0
  %3145 = vmatpush1.msra.mxu0 0.0
  %3146 = vmatprep.subr.mxu0 0.0
  %3147 = vmatpush1.msra.mxu0 0.0
  %3148 = vmatprep.subr.mxu0 0.0
  %3149 = vmatpush1.msra.mxu0 0.0
  %3150 = vmatprep.subr.mxu0 0.0
  %3151 = vmatpush1.msra.mxu0 0.0
  %3152 = vmatprep.subr.mxu0 0.0
  %3153 = vmatpush1.msra.mxu0 0.0
  %3154 = vmatprep.subr.mxu0 0.0
  %3155 = vmatpush1.msra.mxu0 0.0
  %3156 = vmatprep.subr.mxu0 0.0
  %3157 = vmatpush1.msra.mxu0 0.0
  %3158 = vmatprep.subr.mxu0 0.0
  %3159 = vmatpush1.msra.mxu0 0.0
  %3160 = vmatprep.subr.mxu0 0.0
  %3161 = vmatpush1.msra.mxu0 0.0
  %3162 = vmatprep.mubr.f32.mxu0 0.0
  %3163 = vmatmul.mubr.f32.gmra.mrb[0].mxu0 %v3025
  %v3164 = vpop.f32.mrb[0].mxu0
  %v3165 = vadd.f32 0.0, %v3164
  %v3166 = vpop.f32.mrb[0].mxu0
  %v3167 = vadd.f32 0.0, %v3166
  %3168 = vdwg.mxu0
  %v3169 = vadd.f32 %v3002, %v3094
  %v3170 = vadd.f32 %v3003, %v3096
  %v3171 = vadd.f32 %v3004, %v3165
  %v3172 = vadd.f32 %v3005, %v3167
  %3173 = vrot.lane.b32.xlu0 %v1857, 111
  %v3174 = vpop.permute.xlu0 %3173
  %3175 = vrot.lane.b32.xlu0 %v1858, 111
  %v3176 = vpop.permute.xlu0 %3175
  %3177 = vrot.lane.b32.xlu0 %v1859, 111
  %v3178 = vpop.permute.xlu0 %3177
  %3179 = vrot.lane.b32.xlu0 %v1860, 111
  %v3180 = vpop.permute.xlu0 %3179
  %v3181 = vsel %vm1619, %v3178, %v3180
  %v3182 = vsel %vm1619, %v3176, %v3178
  %v3183 = vsel %vm1619, %v3174, %v3176
  %v3184 = vsel %vm1619, %v3180, %v3174
  %v3185 = vmul.f32 %v3183, %v1630
  %v3186 = vmul.f32 %v3182, %v1634
  %v3187 = vmul.f32 %v3181, %v1638
  %v3188 = vmul.f32 %v3184, %v1642
  %s3189 = scalar_lea.vmem %s2, 64
  %v3190 = vld [vmem:[%s3189] sm:$0xff]
  %v3192 = vsel %vm1880, %v3190, 0
  %3194 = vmatprep.subr.mxu0 %v3186
  %3195 = vmatpush1.msra.mxu0 %v3185
  %3196 = vmatprep.subr.mxu0 0.0
  %3197 = vmatpush1.msra.mxu0 0.0
  %3198 = vmatprep.subr.mxu0 0.0
  %3199 = vmatpush1.msra.mxu0 0.0
  %3200 = vmatprep.subr.mxu0 0.0
  %3201 = vmatpush1.msra.mxu0 0.0
  %3202 = vmatprep.subr.mxu0 0.0
  %3203 = vmatpush1.msra.mxu0 0.0
  %3204 = vmatprep.subr.mxu0 0.0
  %3205 = vmatpush1.msra.mxu0 0.0
  %3206 = vmatprep.subr.mxu0 0.0
  %3207 = vmatpush1.msra.mxu0 0.0
  %3208 = vmatprep.subr.mxu0 0.0
  %3209 = vmatpush1.msra.mxu0 0.0
  %3210 = vmatprep.subr.mxu0 0.0
  %3211 = vmatpush1.msra.mxu0 0.0
  %3212 = vmatprep.subr.mxu0 0.0
  %3213 = vmatpush1.msra.mxu0 0.0
  %3214 = vmatprep.subr.mxu0 0.0
  %3215 = vmatpush1.msra.mxu0 0.0
  %3216 = vmatprep.subr.mxu0 0.0
  %3217 = vmatpush1.msra.mxu0 0.0
  %3218 = vmatprep.subr.mxu0 0.0
  %3219 = vmatpush1.msra.mxu0 0.0
  %3220 = vmatprep.subr.mxu0 0.0
  %3221 = vmatpush1.msra.mxu0 0.0
  %3222 = vmatprep.subr.mxu0 0.0
  %3223 = vmatpush1.msra.mxu0 0.0
  %3224 = vmatprep.subr.mxu0 0.0
  %3225 = vmatpush1.msra.mxu0 0.0
  %3226 = vmatprep.subr.mxu0 0.0
  %3227 = vmatpush1.msra.mxu0 0.0
  %3228 = vmatprep.subr.mxu0 0.0
  %3229 = vmatpush1.msra.mxu0 0.0
  %3230 = vmatprep.subr.mxu0 0.0
  %3231 = vmatpush1.msra.mxu0 0.0
  %3232 = vmatprep.subr.mxu0 0.0
  %3233 = vmatpush1.msra.mxu0 0.0
  %3234 = vmatprep.subr.mxu0 0.0
  %3235 = vmatpush1.msra.mxu0 0.0
  %3236 = vmatprep.subr.mxu0 0.0
  %3237 = vmatpush1.msra.mxu0 0.0
  %3238 = vmatprep.subr.mxu0 0.0
  %3239 = vmatpush1.msra.mxu0 0.0
  %3240 = vmatprep.subr.mxu0 0.0
  %3241 = vmatpush1.msra.mxu0 0.0
  %3242 = vmatprep.subr.mxu0 0.0
  %3243 = vmatpush1.msra.mxu0 0.0
  %3244 = vmatprep.subr.mxu0 0.0
  %3245 = vmatpush1.msra.mxu0 0.0
  %3246 = vmatprep.subr.mxu0 0.0
  %3247 = vmatpush1.msra.mxu0 0.0
  %3248 = vmatprep.subr.mxu0 0.0
  %3249 = vmatpush1.msra.mxu0 0.0
  %3250 = vmatprep.subr.mxu0 0.0
  %3251 = vmatpush1.msra.mxu0 0.0
  %3252 = vmatprep.subr.mxu0 0.0
  %3253 = vmatpush1.msra.mxu0 0.0
  %3254 = vmatprep.subr.mxu0 0.0
  %3255 = vmatpush1.msra.mxu0 0.0
  %3256 = vmatprep.subr.mxu0 0.0
  %3257 = vmatpush1.msra.mxu0 0.0
  %3258 = vmatprep.mubr.f32.mxu0 0.0
  %3259 = vmatmul.mubr.f32.gmra.mrb[0].mxu0 %v3192
  %v3260 = vpop.f32.mrb[0].mxu0
  %v3261 = vadd.f32 0.0, %v3260
  %v3262 = vpop.f32.mrb[0].mxu0
  %v3263 = vadd.f32 0.0, %v3262
  %3264 = vdwg.mxu0
  %3265 = vmatprep.subr.mxu0 %v3188
  %3266 = vmatpush1.msra.mxu0 %v3187
  %3267 = vmatprep.subr.mxu0 0.0
  %3268 = vmatpush1.msra.mxu0 0.0
  %3269 = vmatprep.subr.mxu0 0.0
  %3270 = vmatpush1.msra.mxu0 0.0
  %3271 = vmatprep.subr.mxu0 0.0
  %3272 = vmatpush1.msra.mxu0 0.0
  %3273 = vmatprep.subr.mxu0 0.0
  %3274 = vmatpush1.msra.mxu0 0.0
  %3275 = vmatprep.subr.mxu0 0.0
  %3276 = vmatpush1.msra.mxu0 0.0
  %3277 = vmatprep.subr.mxu0 0.0
  %3278 = vmatpush1.msra.mxu0 0.0
  %3279 = vmatprep.subr.mxu0 0.0
  %3280 = vmatpush1.msra.mxu0 0.0
  %3281 = vmatprep.subr.mxu0 0.0
  %3282 = vmatpush1.msra.mxu0 0.0
  %3283 = vmatprep.subr.mxu0 0.0
  %3284 = vmatpush1.msra.mxu0 0.0
  %3285 = vmatprep.subr.mxu0 0.0
  %3286 = vmatpush1.msra.mxu0 0.0
  %3287 = vmatprep.subr.mxu0 0.0
  %3288 = vmatpush1.msra.mxu0 0.0
  %3289 = vmatprep.subr.mxu0 0.0
  %3290 = vmatpush1.msra.mxu0 0.0
  %3291 = vmatprep.subr.mxu0 0.0
  %3292 = vmatpush1.msra.mxu0 0.0
  %3293 = vmatprep.subr.mxu0 0.0
  %3294 = vmatpush1.msra.mxu0 0.0
  %3295 = vmatprep.subr.mxu0 0.0
  %3296 = vmatpush1.msra.mxu0 0.0
  %3297 = vmatprep.subr.mxu0 0.0
  %3298 = vmatpush1.msra.mxu0 0.0
  %3299 = vmatprep.subr.mxu0 0.0
  %3300 = vmatpush1.msra.mxu0 0.0
  %3301 = vmatprep.subr.mxu0 0.0
  %3302 = vmatpush1.msra.mxu0 0.0
  %3303 = vmatprep.subr.mxu0 0.0
  %3304 = vmatpush1.msra.mxu0 0.0
  %3305 = vmatprep.subr.mxu0 0.0
  %3306 = vmatpush1.msra.mxu0 0.0
  %3307 = vmatprep.subr.mxu0 0.0
  %3308 = vmatpush1.msra.mxu0 0.0
  %3309 = vmatprep.subr.mxu0 0.0
  %3310 = vmatpush1.msra.mxu0 0.0
  %3311 = vmatprep.subr.mxu0 0.0
  %3312 = vmatpush1.msra.mxu0 0.0
  %3313 = vmatprep.subr.mxu0 0.0
  %3314 = vmatpush1.msra.mxu0 0.0
  %3315 = vmatprep.subr.mxu0 0.0
  %3316 = vmatpush1.msra.mxu0 0.0
  %3317 = vmatprep.subr.mxu0 0.0
  %3318 = vmatpush1.msra.mxu0 0.0
  %3319 = vmatprep.subr.mxu0 0.0
  %3320 = vmatpush1.msra.mxu0 0.0
  %3321 = vmatprep.subr.mxu0 0.0
  %3322 = vmatpush1.msra.mxu0 0.0
  %3323 = vmatprep.subr.mxu0 0.0
  %3324 = vmatpush1.msra.mxu0 0.0
  %3325 = vmatprep.subr.mxu0 0.0
  %3326 = vmatpush1.msra.mxu0 0.0
  %3327 = vmatprep.subr.mxu0 0.0
  %3328 = vmatpush1.msra.mxu0 0.0
  %3329 = vmatprep.mubr.f32.mxu0 0.0
  %3330 = vmatmul.mubr.f32.gmra.mrb[0].mxu0 %v3192
  %v3331 = vpop.f32.mrb[0].mxu0
  %v3332 = vadd.f32 0.0, %v3331
  %v3333 = vpop.f32.mrb[0].mxu0
  %v3334 = vadd.f32 0.0, %v3333
  %3335 = vdwg.mxu0
  %v3336 = vadd.f32 %v3169, %v3261
  %v3337 = vadd.f32 %v3170, %v3263
  %v3338 = vadd.f32 %v3171, %v3332
  %v3339 = vadd.f32 %v3172, %v3334
  %v3340 = vadd.f32 %v3336, %v3337
  %v3341 = vadd.f32 %v3340, %v3338
  %v3342 = vadd.f32 %v3341, %v3339
  %3343 = vadd.xlane.f32.xlu0 %v3342
  %v3344 = vpop.xlane.xlu0 %3343
  %v3345 = vmul.f32 %v3344, 0.001953125
  %v3346 = vmul.f32 %v3336, %v3336
  %v3347 = vmul.f32 %v3337, %v3337
  %v3348 = vmul.f32 %v3338, %v3338
  %v3349 = vmul.f32 %v3339, %v3339
  %v3350 = vadd.f32 %v3346, %v3347
  %v3351 = vadd.f32 %v3350, %v3348
  %v3352 = vadd.f32 %v3351, %v3349
  %3353 = vadd.xlane.f32.xlu0 %v3352
  %v3354 = vpop.xlane.xlu0 %3353
  %v3355 = vmul.f32 %v3354, 0.001953125
  %v3356 = vmul.f32 %v3345, %v3345
  %v3357 = vsub.f32 %v3355, %v3356
  %v3358 = vadd.f32 %v3357, 1e-05
  %v3359 = vrsqrt.pop %v3358
  %v3360 = vld [vmem:[%s5] sm:$0xff]
  %v3361 = vmul.f32 %v3359, %v3360
  %v3362 = vld [vmem:[%s6] sm:$0xff]
  %v3363 = vmul.f32 %v3345, %v3361
  %v3364 = vsub.f32 %v3362, %v3363
  %3366 = vset.pattern.permute.xlu0 0
  %3367 = vperm.xlu0 %3366, %v3361
  %v3368 = vpop.permute.xlu0 %3367
  %v3370 = vmul.f32 %v3336, %v3368
  %v3371 = vmul.f32 %v3337, %v3368
  %v3372 = vmul.f32 %v3338, %v3368
  %v3373 = vmul.f32 %v3339, %v3368
  %3375 = vset.pattern.permute.xlu0 0
  %3376 = vperm.xlu0 %3375, %v3364
  %v3377 = vpop.permute.xlu0 %3376
  %v3379 = vadd.f32 %v3370, %v3377
  %v3380 = vadd.f32 %v3371, %v3377
  %v3381 = vadd.f32 %v3372, %v3377
  %v3382 = vadd.f32 %v3373, %v3377
  %v3383 = vmax.f32 %v3379, 0.0
  %v3384 = vmax.f32 %v3380, 0.0
  %v3385 = vmax.f32 %v3381, 0.0
  %v3386 = vmax.f32 %v3382, 0.0
  %3387 = vst [vmem:[%s8] sm:$0xff] %v3383
  %3388 = vst [vmem:[%s8 + $0x8] sm:$0xff] %v3384
  %3389 = vst [vmem:[%s8 + $0x10] sm:$0xff] %v3385
  %3390 = vst [vmem:[%s8 + $0x18] sm:$0xff] %v3386
  // Predicated region
  $region34: #{conv_block.1} parent=0 // pred_check
    _
  $region35: #{conv_block.1} parent=0 // pred_check_branch
    %3392 = sbr.rel (0) target = $region37
  $region36: #{conv_block.1} parent=0 // pred_region
    _
  $region37: #{conv_block.1} parent=0 // pred_fallthru
    _
  // Predicated region
  $region38: #{conv_block.1} parent=0 // pred_check
    _
  $region39: #{conv_block.1} parent=0 // pred_check_branch
    %3394 = sbr.rel (0) target = $region41
  $region40: #{conv_block.1} parent=0 // pred_region
    _
  $region41: #{conv_block.1} parent=0 // pred_fallthru
    _

</llo_original>
